<compile_context>
chip_gen: v5e
topology: v5e:2x2
jax: 0.10.0
libtpu: 0.0.40
codegen_flags: <defaults>
</compile_context>

<pallas_src>
import math

import numpy as np
import jax
import jax.numpy as jnp
from jax.experimental import pallas as pl
from jax.experimental.pallas import tpu as pltpu

HEADS = 2
INNER_DIM = 64
NUM_CLASSES = 40
LANES = 128                 # lane-dense block width for packed weights / activations
NBLK = 3 * HEADS + 1        # q_h0,q_h1,k_h0,k_h1,v_h0,v_h1,skip  -> 7 blocks
PROJ_W = NBLK * LANES       # 896
NEG_INF = -1e30


def _vmem():
    return pl.BlockSpec(memory_space=pltpu.MemorySpace.VMEM)


def _bdot(a, b):
    # MXU policy used by the pure-JAX reference: bf16 operands, f32 accumulation.
    return jnp.dot(a.astype(jnp.bfloat16), b.astype(jnp.bfloat16),
                   preferred_element_type=jnp.float32)


# --------------------------- fused kernel body -------------------------------
def _unimp_kernel(node_ref, abias_ref, wslab_ref, emb_ref, pbias_ref, rows_ref, o_ref):
    abias = abias_ref[...]                 # [N, N] f32 additive attention mask (0 / -1e30)
    rv = node_ref[2]                       # [N, 128] has-in-edge indicator (pre-broadcast)

    # MaskLabel (method='add'):  h = x + (mask * onehot(y)) @ emb
    h = node_ref[0] + jnp.dot(node_ref[1].astype(jnp.bfloat16), emb_ref[...],
                              preferred_element_type=jnp.float32)

    for layer in range(3):                 # static unroll: conv1, conv2, conv3
        concat = layer < 2
        # One fused projection per layer: [N,128] @ [128, 896] -> q/k/v(per head)/skip,
        # each in its own 128-lane block; biases (scale-folded for q) added in one go.
        proj = jnp.dot(h.astype(jnp.bfloat16), wslab_ref[layer],
                       preferred_element_type=jnp.float32) + pbias_ref[layer]

        out = None
        for hh in range(HEADS):            # static unroll (HEADS == 2)
            q = proj[:, (0 * HEADS + hh) * LANES:(0 * HEADS + hh + 1) * LANES]
            k = proj[:, (1 * HEADS + hh) * LANES:(1 * HEADS + hh + 1) * LANES]
            v = proj[:, (2 * HEADS + hh) * LANES:(2 * HEADS + hh + 1) * LANES]
            # s[i, j] = <q_i, k_j> + mask   (1/sqrt(head_dim) folded into Wq/bq)
            s = jax.lax.dot_general(q.astype(jnp.bfloat16), k.astype(jnp.bfloat16),
                                    (((1,), (1,)), ((), ())),
                                    preferred_element_type=jnp.float32) + abias
            m = jnp.max(s, axis=-1, keepdims=True)
            p = jnp.exp(s - m)             # masked entries underflow to exactly 0
            denom = jnp.sum(p, axis=-1, keepdims=True)
            alpha = p * pl.reciprocal(denom, approx=True)
            oh = jnp.dot(alpha.astype(jnp.bfloat16), v.astype(jnp.bfloat16),
                         preferred_element_type=jnp.float32)
            out = oh if out is None else out + oh   # wide-V placement == head concat

        if not concat:
            out = out * jnp.float32(1.0 / HEADS)    # head averaging (conv3)
        out = out * rv                               # in-degree-0 nodes -> 0 (PyG sum aggr)

        x_r = proj[:, 3 * HEADS * LANES:(3 * HEADS + 1) * LANES]   # skip (bias included)
        w_out = rows_ref[4 * layer]
        w_xr = rows_ref[4 * layer + 1]
        logit = jnp.sum(out * w_out + x_r * w_xr, axis=-1, keepdims=True)
        g = jax.nn.sigmoid(logit)
        h = g * x_r + (1.0 - g) * out

        if layer < 2:                                # LayerNorm(INNER_DIM) + ReLU
            gamma = rows_ref[4 * layer + 2]
            beta = rows_ref[4 * layer + 3]
            inv_d = jnp.float32(1.0 / INNER_DIM)
            mu = jnp.sum(h, axis=-1, keepdims=True) * inv_d        # pad lanes are zero
            ex2 = jnp.sum(h * h, axis=-1, keepdims=True) * inv_d
            var = ex2 - mu * mu
            h = (h - mu) * jax.lax.rsqrt(var + 1e-5) * gamma + beta
            h = jnp.maximum(h, 0.0)

    o_ref[...] = h.astype(jnp.bfloat16)              # [N, 128] lane-dense bf16 store


# ------------------------------ wrapper --------------------------------------
def unimp_forward(node_in, attn_bias, wslab, emb, pbias, rows):
    n = node_in.shape[1]
    out = pl.pallas_call(
        _unimp_kernel,
        out_shape=jax.ShapeDtypeStruct((n, LANES), jnp.bfloat16),
        in_specs=[_vmem()] * 6,
        out_specs=_vmem(),
    )(node_in, attn_bias, wslab, emb, pbias, rows)
    return out[:, :NUM_CLASSES].astype(jnp.float32)


# ---------------------- one-time parameter / graph prep ----------------------
def _prepare_layer(p, heads, head_dim, concat):
    """Pack one TransformerConv's weights into a [128, 896] projection slab + biases."""
    fin = p["wq"].shape[0]
    d = heads * head_dim if concat else head_dim
    scale = 1.0 / math.sqrt(head_dim)

    wq, bq = np.asarray(p["wq"]), np.asarray(p["bq"])
    wk, bk = np.asarray(p["wk"]), np.asarray(p["bk"])
    wv, bv = np.asarray(p["wv"]), np.asarray(p["bv"])
    wskip, bskip = np.asarray(p["wskip"]), np.asarray(p["bskip"])
    wb = np.asarray(p["wbeta"])

    W = np.zeros((LANES, PROJ_W), np.float32)
    B = np.zeros((1, PROJ_W), np.float32)
    for h in range(heads):
        sl = slice(h * head_dim, (h + 1) * head_dim)
        # q blocks 0..H-1  (softmax scale folded into Wq / bq)
        W[:fin, h * LANES:h * LANES + head_dim] = wq[:, sl] * scale
        B[0, h * LANES:h * LANES + head_dim] = bq[0, sl] * scale
        # k blocks H..2H-1
        W[:fin, (heads + h) * LANES:(heads + h) * LANES + head_dim] = wk[:, sl]
        B[0, (heads + h) * LANES:(heads + h) * LANES + head_dim] = bk[0, sl]
        # v blocks 2H..3H-1, placed at the concat offset (free "concat")
        off = h * head_dim if concat else 0
        c0 = (2 * heads + h) * LANES + off
        W[:fin, c0:c0 + head_dim] = wv[:, sl]
        B[0, c0:c0 + head_dim] = bv[0, sl]
    # skip block 3H
    W[:fin, 3 * heads * LANES:3 * heads * LANES + d] = wskip
    B[0, 3 * heads * LANES:3 * heads * LANES + d] = bskip

    # beta-gate weights folded: logit = sum(out*w_out + x_r*w_xr)
    w_out = np.zeros((1, LANES), np.float32)
    w_xr = np.zeros((1, LANES), np.float32)
    w_out[0, :d] = wb[0, :d] + wb[0, 2 * d:3 * d]
    w_xr[0, :d] = wb[0, d:2 * d] - wb[0, 2 * d:3 * d]
    return W, B, w_out, w_xr


def prepare_params(params):
    hd = INNER_DIM // HEADS
    W1, B1, wo1, wx1 = _prepare_layer(params["conv1"], HEADS, hd, True)
    W2, B2, wo2, wx2 = _prepare_layer(params["conv2"], HEADS, hd, True)
    W3, B3, wo3, wx3 = _prepare_layer(params["conv3"], HEADS, NUM_CLASSES, False)

    def pad_row(v):
        r = np.zeros((1, LANES), np.float32)
        v = np.asarray(v)
        r[0, :v.shape[1]] = v
        return r

    g1, be1 = pad_row(params["norm1"]["gamma"]), pad_row(params["norm1"]["beta"])
    g2, be2 = pad_row(params["norm2"]["gamma"]), pad_row(params["norm2"]["beta"])

    wslab = jnp.asarray(np.stack([W1, W2, W3]), jnp.bfloat16)            # [3,128,896]
    pbias = jnp.asarray(np.stack([B1, B2, B3]), jnp.float32)             # [3,1,896]
    rows = jnp.asarray(np.stack([wo1, wx1, g1, be1,
                                 wo2, wx2, g2, be2,
                                 wo3, wx3]), jnp.float32)                # [10,1,128]

    emb_np = np.zeros((LANES, LANES), np.float32)
    e = np.asarray(params["emb"])                                        # [40, feat]
    emb_np[:e.shape[0], :e.shape[1]] = e
    emb = jnp.asarray(emb_np, jnp.bfloat16)                              # [128,128]
    return wslab, pbias, rows, emb


def prepare_inputs(x, y_onehot, mask_f, adj):
    n, f = x.shape
    xp = np.zeros((n, LANES), np.float32)
    xp[:, :f] = np.asarray(x)
    ylm = np.asarray(y_onehot) * np.asarray(mask_f)                      # masked one-hot
    yp = np.zeros((n, LANES), np.float32)
    yp[:, :ylm.shape[1]] = ylm
    adj_np = np.asarray(adj)
    rv = (adj_np.sum(axis=1, keepdims=True) > 0).astype(np.float32)
    rvb = np.broadcast_to(rv, (n, LANES)).copy()
    node_in = jnp.asarray(np.stack([xp, yp, rvb]), jnp.float32)          # [3,N,128]
    attn_bias = jnp.asarray(np.where(adj_np > 0, 0.0, NEG_INF), jnp.float32)
    return node_in, attn_bias


# ------------------------------ parameters ------------------------------------
def _linear_params(key, fin, fout):
    kw, kb = jax.random.split(key)
    w = jax.random.normal(kw, (fin, fout), jnp.float32) / jnp.sqrt(float(fin))
    b = 0.01 * jax.random.normal(kb, (1, fout), jnp.float32)
    return w, b


def _conv_params(key, fin, head_dim, heads, concat):
    ks = jax.random.split(key, 5)
    hc = heads * head_dim
    out_dim = hc if concat else head_dim
    wq, bq = _linear_params(ks[0], fin, hc)
    wk, bk = _linear_params(ks[1], fin, hc)
    wv, bv = _linear_params(ks[2], fin, hc)
    wskip, bskip = _linear_params(ks[3], fin, out_dim)
    wbeta = jax.random.normal(ks[4], (1, 3 * out_dim), jnp.float32) \
        / jnp.sqrt(float(3 * out_dim))
    return dict(wq=wq, bq=bq, wk=wk, bk=bk, wv=wv, bv=bv,
                wskip=wskip, bskip=bskip, wbeta=wbeta)


def init_params(key, feature_size):
    ks = jax.random.split(key, 4)
    head_dim = INNER_DIM // HEADS
    ln = lambda: dict(gamma=jnp.ones((1, INNER_DIM), jnp.float32),
                      beta=jnp.zeros((1, INNER_DIM), jnp.float32))
    return dict(
        emb=0.1 * jax.random.normal(ks[0], (NUM_CLASSES, feature_size), jnp.float32),
        conv1=_conv_params(ks[1], feature_size, head_dim, HEADS, True),
        norm1=ln(),
        conv2=_conv_params(ks[2], INNER_DIM, head_dim, HEADS, True),
        norm2=ln(),
        conv3=_conv_params(ks[3], INNER_DIM, NUM_CLASSES, HEADS, False),
    )


# ---------------------- pure-JAX reference (checking) -------------------------
# Mirrors the kernel's precision policy (bf16 MXU operands incl. the scale-folded Wq,
# f32 accumulate/elementwise) but uses the ORIGINAL (unsplit, unpadded) parameters.
def _conv_ref(x, adj, p, heads, head_dim, concat):
    scale = 1.0 / math.sqrt(head_dim)
    q = _bdot(x, p["wq"] * scale) + p["bq"] * scale      # scale folded (mirrors kernel)
    k = _bdot(x, p["wk"]) + p["bk"]
    v = _bdot(x, p["wv"]) + p["bv"]
    outs = []
    for h in range(heads):
        sl = slice(h * head_dim, (h + 1) * head_dim)
        s = _bdot(q[:, sl], k[:, sl].T)
        s = jnp.where(adj > 0, s, NEG_INF)
        m = jnp.max(s, -1, keepdims=True)
        pe = jnp.where(adj > 0, jnp.exp(s - m), 0.0)
        alpha = pe / jnp.maximum(jnp.sum(pe, -1, keepdims=True), 1e-16)
        outs.append(_bdot(alpha, v[:, sl]))
    out = jnp.concatenate(outs, -1) if concat else sum(outs) / heads
    x_r = _bdot(x, p["wskip"]) + p["bskip"]
    d = out.shape[-1]
    wb = p["wbeta"]
    logit = jnp.sum(out * wb[:, :d] + x_r * wb[:, d:2 * d]
                    + (out - x_r) * wb[:, 2 * d:], -1, keepdims=True)
    g = jax.nn.sigmoid(logit)
    return g * x_r + (1 - g) * out


def _ln_relu_ref(x, g, b):
    mu = jnp.mean(x, -1, keepdims=True)
    var = jnp.mean((x - mu) ** 2, -1, keepdims=True)
    return jnp.maximum((x - mu) * jax.lax.rsqrt(var + 1e-5) * g + b, 0.0)


def unimp_forward_ref(x, y_onehot, mask_f, adj, p):
    hd = INNER_DIM // HEADS
    h = x + mask_f * _bdot(y_onehot, p["emb"])
    h = _conv_ref(h, adj, p["conv1"], HEADS, hd, True)
    h = _ln_relu_ref(h, p["norm1"]["gamma"], p["norm1"]["beta"])
    h = _conv_ref(h, adj, p["conv2"], HEADS, hd, True)
    h = _ln_relu_ref(h, p["norm2"]["gamma"], p["norm2"]["beta"])
    h = _conv_ref(h, adj, p["conv3"], HEADS, NUM_CLASSES, False)
    return h


# -------------------------------- main ----------------------------------------
if __name__ == "__main__":
    N = 64             # nodes
    FEATURE_SIZE = 32  # input node-feature dim

    key = jax.random.PRNGKey(0)
    k_x, k_y, k_m, k_p = jax.random.split(key, 4)

    x = jax.random.normal(k_x, (N, FEATURE_SIZE), jnp.float32)
    y = jax.random.randint(k_y, (N,), 0, NUM_CLASSES)
    label_mask = jax.random.bernoulli(k_m, 0.5, (N,))

    # edge_index [2, E]: row 0 = source, row 1 = target (every node gets 3 in-edges)
    src, dst = [], []
    for i in range(N):
        for d in (1, 3, 7):
            src.append((i + d) % N)
            dst.append(i)
    edge_index = jnp.array([src, dst], dtype=jnp.int32)

    # dense adjacency mask: adj[target, source] = 1
    adj = jnp.zeros((N, N), jnp.float32).at[edge_index[1], edge_index[0]].set(1.0)
    y_onehot = jax.nn.one_hot(y, NUM_CLASSES, dtype=jnp.float32)
    mask_f = label_mask.astype(jnp.float32)[:, None]

    params = init_params(k_p, FEATURE_SIZE)

    # one-time prep (outside the jitted forward)
    wslab, pbias, rows, emb = prepare_params(params)
    node_in, attn_bias = prepare_inputs(x, y_onehot, mask_f, adj)

    fwd = jax.jit(unimp_forward)
    out = fwd(node_in, attn_bias, wslab, emb, pbias, rows)
    out = jax.block_until_ready(out)
    assert out.shape == (N, NUM_CLASSES)

    ref = unimp_forward_ref(x, y_onehot, mask_f, adj, params)
    np.testing.assert_allclose(np.asarray(out), np.asarray(ref),
                               rtol=2e-2, atol=2e-2)

    print("KERNEL_OK")
</pallas_src>

<mosaic_0001>
module attributes {stable_mosaic.version = 11 : i64} {
  func.func @_unimp_kernel(%arg0: memref<3x64x128xf32, #tpu.memory_space<vmem>>, %arg1: memref<64x64xf32, #tpu.memory_space<vmem>>, %arg2: memref<3x128x896xbf16, #tpu.memory_space<vmem>>, %arg3: memref<128x128xbf16, #tpu.memory_space<vmem>>, %arg4: memref<3x1x896xf32, #tpu.memory_space<vmem>>, %arg5: memref<10x1x128xf32, #tpu.memory_space<vmem>>, %arg6: memref<64x128xbf16, #tpu.memory_space<vmem>>) attributes {dimension_semantics = [], scalar_prefetch = 0 : i64, scratch_operands = 0 : i64, tpu.core_type = #tpu.core_type<tc>} {
    %c0 = arith.constant 0 : index
    %c0_0 = arith.constant 0 : index
    %0 = vector.load %arg1[%c0, %c0_0] : memref<64x64xf32, #tpu.memory_space<vmem>>, vector<64x64xf32>
    %c2 = arith.constant 2 : index
    %c0_1 = arith.constant 0 : index
    %c0_2 = arith.constant 0 : index
    %1 = vector.load %arg0[%c2, %c0_1, %c0_2] : memref<3x64x128xf32, #tpu.memory_space<vmem>>, vector<1x64x128xf32>
    %2 = vector.shape_cast %1 : vector<1x64x128xf32> to vector<64x128xf32>
    %c0_3 = arith.constant 0 : index
    %c0_4 = arith.constant 0 : index
    %c0_5 = arith.constant 0 : index
    %3 = vector.load %arg0[%c0_3, %c0_4, %c0_5] : memref<3x64x128xf32, #tpu.memory_space<vmem>>, vector<1x64x128xf32>
    %4 = vector.shape_cast %3 : vector<1x64x128xf32> to vector<64x128xf32>
    %c1 = arith.constant 1 : index
    %c0_6 = arith.constant 0 : index
    %c0_7 = arith.constant 0 : index
    %5 = vector.load %arg0[%c1, %c0_6, %c0_7] : memref<3x64x128xf32, #tpu.memory_space<vmem>>, vector<1x64x128xf32>
    %6 = vector.shape_cast %5 : vector<1x64x128xf32> to vector<64x128xf32>
    %7 = arith.truncf %6 : vector<64x128xf32> to vector<64x128xbf16>
    %c0_8 = arith.constant 0 : index
    %c0_9 = arith.constant 0 : index
    %8 = vector.load %arg3[%c0_8, %c0_9] : memref<128x128xbf16, #tpu.memory_space<vmem>>, vector<128x128xbf16>
    %cst = arith.constant dense<0.000000e+00> : vector<64x128xf32>
    %9 = tpu.matmul %7, %8, %cst {dimension_numbers = #tpu.dot_dimension_numbers<[1], [0], [0], [1], [0, 0, 1, 1], [], []>} : vector<64x128xbf16>, vector<128x128xbf16>, vector<64x128xf32> -> vector<64x128xf32>
    %10 = arith.addf %4, %9 : vector<64x128xf32>
    %11 = arith.truncf %10 : vector<64x128xf32> to vector<64x128xbf16>
    %c0_10 = arith.constant 0 : index
    %c0_11 = arith.constant 0 : index
    %c0_12 = arith.constant 0 : index
    %12 = vector.load %arg2[%c0_10, %c0_11, %c0_12] : memref<3x128x896xbf16, #tpu.memory_space<vmem>>, vector<1x128x896xbf16>
    %13 = vector.shape_cast %12 : vector<1x128x896xbf16> to vector<128x896xbf16>
    %cst_13 = arith.constant dense<0.000000e+00> : vector<64x896xf32>
    %14 = tpu.matmul %11, %13, %cst_13 {dimension_numbers = #tpu.dot_dimension_numbers<[1], [0], [0], [1], [0, 0, 1, 1], [], []>} : vector<64x128xbf16>, vector<128x896xbf16>, vector<64x896xf32> -> vector<64x896xf32>
    %c0_14 = arith.constant 0 : index
    %c0_15 = arith.constant 0 : index
    %c0_16 = arith.constant 0 : index
    %15 = vector.load %arg4[%c0_14, %c0_15, %c0_16] : memref<3x1x896xf32, #tpu.memory_space<vmem>>, vector<1x1x896xf32>
    %16 = vector.shape_cast %15 : vector<1x1x896xf32> to vector<1x896xf32>
    %17 = vector.broadcast %16 : vector<1x896xf32> to vector<64x896xf32>
    %18 = arith.addf %14, %17 : vector<64x896xf32>
    %19 = vector.extract_strided_slice %18 {offsets = [0, 0], sizes = [64, 128], strides = [1, 1]} : vector<64x896xf32> to vector<64x128xf32>
    %20 = vector.extract_strided_slice %18 {offsets = [0, 256], sizes = [64, 128], strides = [1, 1]} : vector<64x896xf32> to vector<64x128xf32>
    %21 = vector.extract_strided_slice %18 {offsets = [0, 512], sizes = [64, 128], strides = [1, 1]} : vector<64x896xf32> to vector<64x128xf32>
    %22 = arith.truncf %19 : vector<64x128xf32> to vector<64x128xbf16>
    %23 = arith.truncf %20 : vector<64x128xf32> to vector<64x128xbf16>
    %cst_17 = arith.constant dense<0.000000e+00> : vector<64x64xf32>
    %24 = tpu.matmul %22, %23, %cst_17 {dimension_numbers = #tpu.dot_dimension_numbers<[1], [1], [0], [0], [0, 0, 1, 0], [], []>} : vector<64x128xbf16>, vector<64x128xbf16>, vector<64x64xf32> -> vector<64x64xf32>
    %25 = arith.addf %24, %0 : vector<64x64xf32>
    %cst_18 = arith.constant dense<0xFF800000> : vector<64xf32>
    %26 = vector.multi_reduction <maximumf>, %25, %cst_18 [1] : vector<64x64xf32> to vector<64xf32>
    %27 = vector.shape_cast %26 : vector<64xf32> to vector<64x1xf32>
    %28 = vector.broadcast %27 : vector<64x1xf32> to vector<64x64xf32>
    %29 = arith.subf %25, %28 : vector<64x64xf32>
    %30 = math.exp %29 : vector<64x64xf32>
    %cst_19 = arith.constant dense<0.000000e+00> : vector<64xf32>
    %31 = vector.multi_reduction <add>, %30, %cst_19 [1] : vector<64x64xf32> to vector<64xf32>
    %32 = vector.shape_cast %31 : vector<64xf32> to vector<64x1xf32>
    %33 = tpu.reciprocal %32 {approx = true} : vector<64x1xf32> -> vector<64x1xf32>
    %34 = vector.broadcast %33 : vector<64x1xf32> to vector<64x64xf32>
    %35 = arith.mulf %30, %34 : vector<64x64xf32>
    %36 = arith.truncf %35 : vector<64x64xf32> to vector<64x64xbf16>
    %37 = arith.truncf %21 : vector<64x128xf32> to vector<64x128xbf16>
    %cst_20 = arith.constant dense<0.000000e+00> : vector<64x128xf32>
    %38 = tpu.matmul %36, %37, %cst_20 {dimension_numbers = #tpu.dot_dimension_numbers<[1], [0], [0], [1], [0, 0, 1, 1], [], []>} : vector<64x64xbf16>, vector<64x128xbf16>, vector<64x128xf32> -> vector<64x128xf32>
    %39 = vector.extract_strided_slice %18 {offsets = [0, 128], sizes = [64, 128], strides = [1, 1]} : vector<64x896xf32> to vector<64x128xf32>
    %40 = vector.extract_strided_slice %18 {offsets = [0, 384], sizes = [64, 128], strides = [1, 1]} : vector<64x896xf32> to vector<64x128xf32>
    %41 = vector.extract_strided_slice %18 {offsets = [0, 640], sizes = [64, 128], strides = [1, 1]} : vector<64x896xf32> to vector<64x128xf32>
    %42 = arith.truncf %39 : vector<64x128xf32> to vector<64x128xbf16>
    %43 = arith.truncf %40 : vector<64x128xf32> to vector<64x128xbf16>
    %cst_21 = arith.constant dense<0.000000e+00> : vector<64x64xf32>
    %44 = tpu.matmul %42, %43, %cst_21 {dimension_numbers = #tpu.dot_dimension_numbers<[1], [1], [0], [0], [0, 0, 1, 0], [], []>} : vector<64x128xbf16>, vector<64x128xbf16>, vector<64x64xf32> -> vector<64x64xf32>
    %45 = arith.addf %44, %0 : vector<64x64xf32>
    %cst_22 = arith.constant dense<0xFF800000> : vector<64xf32>
    %46 = vector.multi_reduction <maximumf>, %45, %cst_22 [1] : vector<64x64xf32> to vector<64xf32>
    %47 = vector.shape_cast %46 : vector<64xf32> to vector<64x1xf32>
    %48 = vector.broadcast %47 : vector<64x1xf32> to vector<64x64xf32>
    %49 = arith.subf %45, %48 : vector<64x64xf32>
    %50 = math.exp %49 : vector<64x64xf32>
    %cst_23 = arith.constant dense<0.000000e+00> : vector<64xf32>
    %51 = vector.multi_reduction <add>, %50, %cst_23 [1] : vector<64x64xf32> to vector<64xf32>
    %52 = vector.shape_cast %51 : vector<64xf32> to vector<64x1xf32>
    %53 = tpu.reciprocal %52 {approx = true} : vector<64x1xf32> -> vector<64x1xf32>
    %54 = vector.broadcast %53 : vector<64x1xf32> to vector<64x64xf32>
    %55 = arith.mulf %50, %54 : vector<64x64xf32>
    %56 = arith.truncf %55 : vector<64x64xf32> to vector<64x64xbf16>
    %57 = arith.truncf %41 : vector<64x128xf32> to vector<64x128xbf16>
    %cst_24 = arith.constant dense<0.000000e+00> : vector<64x128xf32>
    %58 = tpu.matmul %56, %57, %cst_24 {dimension_numbers = #tpu.dot_dimension_numbers<[1], [0], [0], [1], [0, 0, 1, 1], [], []>} : vector<64x64xbf16>, vector<64x128xbf16>, vector<64x128xf32> -> vector<64x128xf32>
    %59 = arith.addf %38, %58 : vector<64x128xf32>
    %60 = arith.mulf %59, %2 : vector<64x128xf32>
    %61 = vector.extract_strided_slice %18 {offsets = [0, 768], sizes = [64, 128], strides = [1, 1]} : vector<64x896xf32> to vector<64x128xf32>
    %c0_25 = arith.constant 0 : index
    %c0_26 = arith.constant 0 : index
    %c0_27 = arith.constant 0 : index
    %62 = vector.load %arg5[%c0_25, %c0_26, %c0_27] : memref<10x1x128xf32, #tpu.memory_space<vmem>>, vector<1x1x128xf32>
    %63 = vector.shape_cast %62 : vector<1x1x128xf32> to vector<1x128xf32>
    %c1_28 = arith.constant 1 : index
    %c0_29 = arith.constant 0 : index
    %c0_30 = arith.constant 0 : index
    %64 = vector.load %arg5[%c1_28, %c0_29, %c0_30] : memref<10x1x128xf32, #tpu.memory_space<vmem>>, vector<1x1x128xf32>
    %65 = vector.shape_cast %64 : vector<1x1x128xf32> to vector<1x128xf32>
    %66 = vector.broadcast %63 : vector<1x128xf32> to vector<64x128xf32>
    %67 = arith.mulf %60, %66 : vector<64x128xf32>
    %68 = vector.broadcast %65 : vector<1x128xf32> to vector<64x128xf32>
    %69 = arith.mulf %61, %68 : vector<64x128xf32>
    %70 = arith.addf %67, %69 : vector<64x128xf32>
    %cst_31 = arith.constant dense<0.000000e+00> : vector<64xf32>
    %71 = vector.multi_reduction <add>, %70, %cst_31 [1] : vector<64x128xf32> to vector<64xf32>
    %72 = vector.shape_cast %71 : vector<64xf32> to vector<64x1xf32>
    %73 = arith.negf %72 : vector<64x1xf32>
    %74 = math.exp %73 : vector<64x1xf32>
    %cst_32 = arith.constant 1.000000e+00 : f32
    %75 = vector.broadcast %cst_32 : f32 to vector<64x1xf32>
    %76 = arith.addf %75, %74 : vector<64x1xf32>
    %77 = arith.divf %75, %76 : vector<64x1xf32>
    %78 = vector.broadcast %77 : vector<64x1xf32> to vector<64x128xf32>
    %79 = arith.mulf %78, %61 : vector<64x128xf32>
    %cst_33 = arith.constant 1.000000e+00 : f32
    %80 = vector.broadcast %cst_33 : f32 to vector<64x1xf32>
    %81 = arith.subf %80, %77 : vector<64x1xf32>
    %82 = vector.broadcast %81 : vector<64x1xf32> to vector<64x128xf32>
    %83 = arith.mulf %82, %60 : vector<64x128xf32>
    %84 = arith.addf %79, %83 : vector<64x128xf32>
    %c2_34 = arith.constant 2 : index
    %c0_35 = arith.constant 0 : index
    %c0_36 = arith.constant 0 : index
    %85 = vector.load %arg5[%c2_34, %c0_35, %c0_36] : memref<10x1x128xf32, #tpu.memory_space<vmem>>, vector<1x1x128xf32>
    %86 = vector.shape_cast %85 : vector<1x1x128xf32> to vector<1x128xf32>
    %c3 = arith.constant 3 : index
    %c0_37 = arith.constant 0 : index
    %c0_38 = arith.constant 0 : index
    %87 = vector.load %arg5[%c3, %c0_37, %c0_38] : memref<10x1x128xf32, #tpu.memory_space<vmem>>, vector<1x1x128xf32>
    %88 = vector.shape_cast %87 : vector<1x1x128xf32> to vector<1x128xf32>
    %cst_39 = arith.constant dense<0.000000e+00> : vector<64xf32>
    %89 = vector.multi_reduction <add>, %84, %cst_39 [1] : vector<64x128xf32> to vector<64xf32>
    %90 = vector.shape_cast %89 : vector<64xf32> to vector<64x1xf32>
    %cst_40 = arith.constant 1.562500e-02 : f32
    %91 = vector.broadcast %cst_40 : f32 to vector<64x1xf32>
    %92 = arith.mulf %90, %91 : vector<64x1xf32>
    %93 = arith.mulf %84, %84 : vector<64x128xf32>
    %cst_41 = arith.constant dense<0.000000e+00> : vector<64xf32>
    %94 = vector.multi_reduction <add>, %93, %cst_41 [1] : vector<64x128xf32> to vector<64xf32>
    %95 = vector.shape_cast %94 : vector<64xf32> to vector<64x1xf32>
    %cst_42 = arith.constant 1.562500e-02 : f32
    %96 = vector.broadcast %cst_42 : f32 to vector<64x1xf32>
    %97 = arith.mulf %95, %96 : vector<64x1xf32>
    %98 = arith.mulf %92, %92 : vector<64x1xf32>
    %99 = arith.subf %97, %98 : vector<64x1xf32>
    %100 = vector.broadcast %92 : vector<64x1xf32> to vector<64x128xf32>
    %101 = arith.subf %84, %100 : vector<64x128xf32>
    %cst_43 = arith.constant 9.99999974E-6 : f32
    %102 = vector.broadcast %cst_43 : f32 to vector<64x1xf32>
    %103 = arith.addf %99, %102 : vector<64x1xf32>
    %104 = math.rsqrt %103 : vector<64x1xf32>
    %105 = vector.broadcast %104 : vector<64x1xf32> to vector<64x128xf32>
    %106 = arith.mulf %101, %105 : vector<64x128xf32>
    %107 = vector.broadcast %86 : vector<1x128xf32> to vector<64x128xf32>
    %108 = arith.mulf %106, %107 : vector<64x128xf32>
    %109 = vector.broadcast %88 : vector<1x128xf32> to vector<64x128xf32>
    %110 = arith.addf %108, %109 : vector<64x128xf32>
    %cst_44 = arith.constant 0.000000e+00 : f32
    %111 = vector.broadcast %cst_44 : f32 to vector<64x128xf32>
    %112 = arith.maximumf %110, %111 : vector<64x128xf32>
    %113 = arith.truncf %112 : vector<64x128xf32> to vector<64x128xbf16>
    %c1_45 = arith.constant 1 : index
    %c0_46 = arith.constant 0 : index
    %c0_47 = arith.constant 0 : index
    %114 = vector.load %arg2[%c1_45, %c0_46, %c0_47] : memref<3x128x896xbf16, #tpu.memory_space<vmem>>, vector<1x128x896xbf16>
    %115 = vector.shape_cast %114 : vector<1x128x896xbf16> to vector<128x896xbf16>
    %cst_48 = arith.constant dense<0.000000e+00> : vector<64x896xf32>
    %116 = tpu.matmul %113, %115, %cst_48 {dimension_numbers = #tpu.dot_dimension_numbers<[1], [0], [0], [1], [0, 0, 1, 1], [], []>} : vector<64x128xbf16>, vector<128x896xbf16>, vector<64x896xf32> -> vector<64x896xf32>
    %c1_49 = arith.constant 1 : index
    %c0_50 = arith.constant 0 : index
    %c0_51 = arith.constant 0 : index
    %117 = vector.load %arg4[%c1_49, %c0_50, %c0_51] : memref<3x1x896xf32, #tpu.memory_space<vmem>>, vector<1x1x896xf32>
    %118 = vector.shape_cast %117 : vector<1x1x896xf32> to vector<1x896xf32>
    %119 = vector.broadcast %118 : vector<1x896xf32> to vector<64x896xf32>
    %120 = arith.addf %116, %119 : vector<64x896xf32>
    %121 = vector.extract_strided_slice %120 {offsets = [0, 0], sizes = [64, 128], strides = [1, 1]} : vector<64x896xf32> to vector<64x128xf32>
    %122 = vector.extract_strided_slice %120 {offsets = [0, 256], sizes = [64, 128], strides = [1, 1]} : vector<64x896xf32> to vector<64x128xf32>
    %123 = vector.extract_strided_slice %120 {offsets = [0, 512], sizes = [64, 128], strides = [1, 1]} : vector<64x896xf32> to vector<64x128xf32>
    %124 = arith.truncf %121 : vector<64x128xf32> to vector<64x128xbf16>
    %125 = arith.truncf %122 : vector<64x128xf32> to vector<64x128xbf16>
    %cst_52 = arith.constant dense<0.000000e+00> : vector<64x64xf32>
    %126 = tpu.matmul %124, %125, %cst_52 {dimension_numbers = #tpu.dot_dimension_numbers<[1], [1], [0], [0], [0, 0, 1, 0], [], []>} : vector<64x128xbf16>, vector<64x128xbf16>, vector<64x64xf32> -> vector<64x64xf32>
    %127 = arith.addf %126, %0 : vector<64x64xf32>
    %cst_53 = arith.constant dense<0xFF800000> : vector<64xf32>
    %128 = vector.multi_reduction <maximumf>, %127, %cst_53 [1] : vector<64x64xf32> to vector<64xf32>
    %129 = vector.shape_cast %128 : vector<64xf32> to vector<64x1xf32>
    %130 = vector.broadcast %129 : vector<64x1xf32> to vector<64x64xf32>
    %131 = arith.subf %127, %130 : vector<64x64xf32>
    %132 = math.exp %131 : vector<64x64xf32>
    %cst_54 = arith.constant dense<0.000000e+00> : vector<64xf32>
    %133 = vector.multi_reduction <add>, %132, %cst_54 [1] : vector<64x64xf32> to vector<64xf32>
    %134 = vector.shape_cast %133 : vector<64xf32> to vector<64x1xf32>
    %135 = tpu.reciprocal %134 {approx = true} : vector<64x1xf32> -> vector<64x1xf32>
    %136 = vector.broadcast %135 : vector<64x1xf32> to vector<64x64xf32>
    %137 = arith.mulf %132, %136 : vector<64x64xf32>
    %138 = arith.truncf %137 : vector<64x64xf32> to vector<64x64xbf16>
    %139 = arith.truncf %123 : vector<64x128xf32> to vector<64x128xbf16>
    %cst_55 = arith.constant dense<0.000000e+00> : vector<64x128xf32>
    %140 = tpu.matmul %138, %139, %cst_55 {dimension_numbers = #tpu.dot_dimension_numbers<[1], [0], [0], [1], [0, 0, 1, 1], [], []>} : vector<64x64xbf16>, vector<64x128xbf16>, vector<64x128xf32> -> vector<64x128xf32>
    %141 = vector.extract_strided_slice %120 {offsets = [0, 128], sizes = [64, 128], strides = [1, 1]} : vector<64x896xf32> to vector<64x128xf32>
    %142 = vector.extract_strided_slice %120 {offsets = [0, 384], sizes = [64, 128], strides = [1, 1]} : vector<64x896xf32> to vector<64x128xf32>
    %143 = vector.extract_strided_slice %120 {offsets = [0, 640], sizes = [64, 128], strides = [1, 1]} : vector<64x896xf32> to vector<64x128xf32>
    %144 = arith.truncf %141 : vector<64x128xf32> to vector<64x128xbf16>
    %145 = arith.truncf %142 : vector<64x128xf32> to vector<64x128xbf16>
    %cst_56 = arith.constant dense<0.000000e+00> : vector<64x64xf32>
    %146 = tpu.matmul %144, %145, %cst_56 {dimension_numbers = #tpu.dot_dimension_numbers<[1], [1], [0], [0], [0, 0, 1, 0], [], []>} : vector<64x128xbf16>, vector<64x128xbf16>, vector<64x64xf32> -> vector<64x64xf32>
    %147 = arith.addf %146, %0 : vector<64x64xf32>
    %cst_57 = arith.constant dense<0xFF800000> : vector<64xf32>
    %148 = vector.multi_reduction <maximumf>, %147, %cst_57 [1] : vector<64x64xf32> to vector<64xf32>
    %149 = vector.shape_cast %148 : vector<64xf32> to vector<64x1xf32>
    %150 = vector.broadcast %149 : vector<64x1xf32> to vector<64x64xf32>
    %151 = arith.subf %147, %150 : vector<64x64xf32>
    %152 = math.exp %151 : vector<64x64xf32>
    %cst_58 = arith.constant dense<0.000000e+00> : vector<64xf32>
    %153 = vector.multi_reduction <add>, %152, %cst_58 [1] : vector<64x64xf32> to vector<64xf32>
    %154 = vector.shape_cast %153 : vector<64xf32> to vector<64x1xf32>
    %155 = tpu.reciprocal %154 {approx = true} : vector<64x1xf32> -> vector<64x1xf32>
    %156 = vector.broadcast %155 : vector<64x1xf32> to vector<64x64xf32>
    %157 = arith.mulf %152, %156 : vector<64x64xf32>
    %158 = arith.truncf %157 : vector<64x64xf32> to vector<64x64xbf16>
    %159 = arith.truncf %143 : vector<64x128xf32> to vector<64x128xbf16>
    %cst_59 = arith.constant dense<0.000000e+00> : vector<64x128xf32>
    %160 = tpu.matmul %158, %159, %cst_59 {dimension_numbers = #tpu.dot_dimension_numbers<[1], [0], [0], [1], [0, 0, 1, 1], [], []>} : vector<64x64xbf16>, vector<64x128xbf16>, vector<64x128xf32> -> vector<64x128xf32>
    %161 = arith.addf %140, %160 : vector<64x128xf32>
    %162 = arith.mulf %161, %2 : vector<64x128xf32>
    %163 = vector.extract_strided_slice %120 {offsets = [0, 768], sizes = [64, 128], strides = [1, 1]} : vector<64x896xf32> to vector<64x128xf32>
    %c4 = arith.constant 4 : index
    %c0_60 = arith.constant 0 : index
    %c0_61 = arith.constant 0 : index
    %164 = vector.load %arg5[%c4, %c0_60, %c0_61] : memref<10x1x128xf32, #tpu.memory_space<vmem>>, vector<1x1x128xf32>
    %165 = vector.shape_cast %164 : vector<1x1x128xf32> to vector<1x128xf32>
    %c5 = arith.constant 5 : index
    %c0_62 = arith.constant 0 : index
    %c0_63 = arith.constant 0 : index
    %166 = vector.load %arg5[%c5, %c0_62, %c0_63] : memref<10x1x128xf32, #tpu.memory_space<vmem>>, vector<1x1x128xf32>
    %167 = vector.shape_cast %166 : vector<1x1x128xf32> to vector<1x128xf32>
    %168 = vector.broadcast %165 : vector<1x128xf32> to vector<64x128xf32>
    %169 = arith.mulf %162, %168 : vector<64x128xf32>
    %170 = vector.broadcast %167 : vector<1x128xf32> to vector<64x128xf32>
    %171 = arith.mulf %163, %170 : vector<64x128xf32>
    %172 = arith.addf %169, %171 : vector<64x128xf32>
    %cst_64 = arith.constant dense<0.000000e+00> : vector<64xf32>
    %173 = vector.multi_reduction <add>, %172, %cst_64 [1] : vector<64x128xf32> to vector<64xf32>
    %174 = vector.shape_cast %173 : vector<64xf32> to vector<64x1xf32>
    %175 = arith.negf %174 : vector<64x1xf32>
    %176 = math.exp %175 : vector<64x1xf32>
    %cst_65 = arith.constant 1.000000e+00 : f32
    %177 = vector.broadcast %cst_65 : f32 to vector<64x1xf32>
    %178 = arith.addf %177, %176 : vector<64x1xf32>
    %179 = arith.divf %177, %178 : vector<64x1xf32>
    %180 = vector.broadcast %179 : vector<64x1xf32> to vector<64x128xf32>
    %181 = arith.mulf %180, %163 : vector<64x128xf32>
    %cst_66 = arith.constant 1.000000e+00 : f32
    %182 = vector.broadcast %cst_66 : f32 to vector<64x1xf32>
    %183 = arith.subf %182, %179 : vector<64x1xf32>
    %184 = vector.broadcast %183 : vector<64x1xf32> to vector<64x128xf32>
    %185 = arith.mulf %184, %162 : vector<64x128xf32>
    %186 = arith.addf %181, %185 : vector<64x128xf32>
    %c6 = arith.constant 6 : index
    %c0_67 = arith.constant 0 : index
    %c0_68 = arith.constant 0 : index
    %187 = vector.load %arg5[%c6, %c0_67, %c0_68] : memref<10x1x128xf32, #tpu.memory_space<vmem>>, vector<1x1x128xf32>
    %188 = vector.shape_cast %187 : vector<1x1x128xf32> to vector<1x128xf32>
    %c7 = arith.constant 7 : index
    %c0_69 = arith.constant 0 : index
    %c0_70 = arith.constant 0 : index
    %189 = vector.load %arg5[%c7, %c0_69, %c0_70] : memref<10x1x128xf32, #tpu.memory_space<vmem>>, vector<1x1x128xf32>
    %190 = vector.shape_cast %189 : vector<1x1x128xf32> to vector<1x128xf32>
    %cst_71 = arith.constant dense<0.000000e+00> : vector<64xf32>
    %191 = vector.multi_reduction <add>, %186, %cst_71 [1] : vector<64x128xf32> to vector<64xf32>
    %192 = vector.shape_cast %191 : vector<64xf32> to vector<64x1xf32>
    %cst_72 = arith.constant 1.562500e-02 : f32
    %193 = vector.broadcast %cst_72 : f32 to vector<64x1xf32>
    %194 = arith.mulf %192, %193 : vector<64x1xf32>
    %195 = arith.mulf %186, %186 : vector<64x128xf32>
    %cst_73 = arith.constant dense<0.000000e+00> : vector<64xf32>
    %196 = vector.multi_reduction <add>, %195, %cst_73 [1] : vector<64x128xf32> to vector<64xf32>
    %197 = vector.shape_cast %196 : vector<64xf32> to vector<64x1xf32>
    %cst_74 = arith.constant 1.562500e-02 : f32
    %198 = vector.broadcast %cst_74 : f32 to vector<64x1xf32>
    %199 = arith.mulf %197, %198 : vector<64x1xf32>
    %200 = arith.mulf %194, %194 : vector<64x1xf32>
    %201 = arith.subf %199, %200 : vector<64x1xf32>
    %202 = vector.broadcast %194 : vector<64x1xf32> to vector<64x128xf32>
    %203 = arith.subf %186, %202 : vector<64x128xf32>
    %cst_75 = arith.constant 9.99999974E-6 : f32
    %204 = vector.broadcast %cst_75 : f32 to vector<64x1xf32>
    %205 = arith.addf %201, %204 : vector<64x1xf32>
    %206 = math.rsqrt %205 : vector<64x1xf32>
    %207 = vector.broadcast %206 : vector<64x1xf32> to vector<64x128xf32>
    %208 = arith.mulf %203, %207 : vector<64x128xf32>
    %209 = vector.broadcast %188 : vector<1x128xf32> to vector<64x128xf32>
    %210 = arith.mulf %208, %209 : vector<64x128xf32>
    %211 = vector.broadcast %190 : vector<1x128xf32> to vector<64x128xf32>
    %212 = arith.addf %210, %211 : vector<64x128xf32>
    %cst_76 = arith.constant 0.000000e+00 : f32
    %213 = vector.broadcast %cst_76 : f32 to vector<64x128xf32>
    %214 = arith.maximumf %212, %213 : vector<64x128xf32>
    %215 = arith.truncf %214 : vector<64x128xf32> to vector<64x128xbf16>
    %c2_77 = arith.constant 2 : index
    %c0_78 = arith.constant 0 : index
    %c0_79 = arith.constant 0 : index
    %216 = vector.load %arg2[%c2_77, %c0_78, %c0_79] : memref<3x128x896xbf16, #tpu.memory_space<vmem>>, vector<1x128x896xbf16>
    %217 = vector.shape_cast %216 : vector<1x128x896xbf16> to vector<128x896xbf16>
    %cst_80 = arith.constant dense<0.000000e+00> : vector<64x896xf32>
    %218 = tpu.matmul %215, %217, %cst_80 {dimension_numbers = #tpu.dot_dimension_numbers<[1], [0], [0], [1], [0, 0, 1, 1], [], []>} : vector<64x128xbf16>, vector<128x896xbf16>, vector<64x896xf32> -> vector<64x896xf32>
    %c2_81 = arith.constant 2 : index
    %c0_82 = arith.constant 0 : index
    %c0_83 = arith.constant 0 : index
    %219 = vector.load %arg4[%c2_81, %c0_82, %c0_83] : memref<3x1x896xf32, #tpu.memory_space<vmem>>, vector<1x1x896xf32>
    %220 = vector.shape_cast %219 : vector<1x1x896xf32> to vector<1x896xf32>
    %221 = vector.broadcast %220 : vector<1x896xf32> to vector<64x896xf32>
    %222 = arith.addf %218, %221 : vector<64x896xf32>
    %223 = vector.extract_strided_slice %222 {offsets = [0, 0], sizes = [64, 128], strides = [1, 1]} : vector<64x896xf32> to vector<64x128xf32>
    %224 = vector.extract_strided_slice %222 {offsets = [0, 256], sizes = [64, 128], strides = [1, 1]} : vector<64x896xf32> to vector<64x128xf32>
    %225 = vector.extract_strided_slice %222 {offsets = [0, 512], sizes = [64, 128], strides = [1, 1]} : vector<64x896xf32> to vector<64x128xf32>
    %226 = arith.truncf %223 : vector<64x128xf32> to vector<64x128xbf16>
    %227 = arith.truncf %224 : vector<64x128xf32> to vector<64x128xbf16>
    %cst_84 = arith.constant dense<0.000000e+00> : vector<64x64xf32>
    %228 = tpu.matmul %226, %227, %cst_84 {dimension_numbers = #tpu.dot_dimension_numbers<[1], [1], [0], [0], [0, 0, 1, 0], [], []>} : vector<64x128xbf16>, vector<64x128xbf16>, vector<64x64xf32> -> vector<64x64xf32>
    %229 = arith.addf %228, %0 : vector<64x64xf32>
    %cst_85 = arith.constant dense<0xFF800000> : vector<64xf32>
    %230 = vector.multi_reduction <maximumf>, %229, %cst_85 [1] : vector<64x64xf32> to vector<64xf32>
    %231 = vector.shape_cast %230 : vector<64xf32> to vector<64x1xf32>
    %232 = vector.broadcast %231 : vector<64x1xf32> to vector<64x64xf32>
    %233 = arith.subf %229, %232 : vector<64x64xf32>
    %234 = math.exp %233 : vector<64x64xf32>
    %cst_86 = arith.constant dense<0.000000e+00> : vector<64xf32>
    %235 = vector.multi_reduction <add>, %234, %cst_86 [1] : vector<64x64xf32> to vector<64xf32>
    %236 = vector.shape_cast %235 : vector<64xf32> to vector<64x1xf32>
    %237 = tpu.reciprocal %236 {approx = true} : vector<64x1xf32> -> vector<64x1xf32>
    %238 = vector.broadcast %237 : vector<64x1xf32> to vector<64x64xf32>
    %239 = arith.mulf %234, %238 : vector<64x64xf32>
    %240 = arith.truncf %239 : vector<64x64xf32> to vector<64x64xbf16>
    %241 = arith.truncf %225 : vector<64x128xf32> to vector<64x128xbf16>
    %cst_87 = arith.constant dense<0.000000e+00> : vector<64x128xf32>
    %242 = tpu.matmul %240, %241, %cst_87 {dimension_numbers = #tpu.dot_dimension_numbers<[1], [0], [0], [1], [0, 0, 1, 1], [], []>} : vector<64x64xbf16>, vector<64x128xbf16>, vector<64x128xf32> -> vector<64x128xf32>
    %243 = vector.extract_strided_slice %222 {offsets = [0, 128], sizes = [64, 128], strides = [1, 1]} : vector<64x896xf32> to vector<64x128xf32>
    %244 = vector.extract_strided_slice %222 {offsets = [0, 384], sizes = [64, 128], strides = [1, 1]} : vector<64x896xf32> to vector<64x128xf32>
    %245 = vector.extract_strided_slice %222 {offsets = [0, 640], sizes = [64, 128], strides = [1, 1]} : vector<64x896xf32> to vector<64x128xf32>
    %246 = arith.truncf %243 : vector<64x128xf32> to vector<64x128xbf16>
    %247 = arith.truncf %244 : vector<64x128xf32> to vector<64x128xbf16>
    %cst_88 = arith.constant dense<0.000000e+00> : vector<64x64xf32>
    %248 = tpu.matmul %246, %247, %cst_88 {dimension_numbers = #tpu.dot_dimension_numbers<[1], [1], [0], [0], [0, 0, 1, 0], [], []>} : vector<64x128xbf16>, vector<64x128xbf16>, vector<64x64xf32> -> vector<64x64xf32>
    %249 = arith.addf %248, %0 : vector<64x64xf32>
    %cst_89 = arith.constant dense<0xFF800000> : vector<64xf32>
    %250 = vector.multi_reduction <maximumf>, %249, %cst_89 [1] : vector<64x64xf32> to vector<64xf32>
    %251 = vector.shape_cast %250 : vector<64xf32> to vector<64x1xf32>
    %252 = vector.broadcast %251 : vector<64x1xf32> to vector<64x64xf32>
    %253 = arith.subf %249, %252 : vector<64x64xf32>
    %254 = math.exp %253 : vector<64x64xf32>
    %cst_90 = arith.constant dense<0.000000e+00> : vector<64xf32>
    %255 = vector.multi_reduction <add>, %254, %cst_90 [1] : vector<64x64xf32> to vector<64xf32>
    %256 = vector.shape_cast %255 : vector<64xf32> to vector<64x1xf32>
    %257 = tpu.reciprocal %256 {approx = true} : vector<64x1xf32> -> vector<64x1xf32>
    %258 = vector.broadcast %257 : vector<64x1xf32> to vector<64x64xf32>
    %259 = arith.mulf %254, %258 : vector<64x64xf32>
    %260 = arith.truncf %259 : vector<64x64xf32> to vector<64x64xbf16>
    %261 = arith.truncf %245 : vector<64x128xf32> to vector<64x128xbf16>
    %cst_91 = arith.constant dense<0.000000e+00> : vector<64x128xf32>
    %262 = tpu.matmul %260, %261, %cst_91 {dimension_numbers = #tpu.dot_dimension_numbers<[1], [0], [0], [1], [0, 0, 1, 1], [], []>} : vector<64x64xbf16>, vector<64x128xbf16>, vector<64x128xf32> -> vector<64x128xf32>
    %263 = arith.addf %242, %262 : vector<64x128xf32>
    %cst_92 = arith.constant 5.000000e-01 : f32
    %264 = vector.broadcast %cst_92 : f32 to vector<64x128xf32>
    %265 = arith.mulf %263, %264 : vector<64x128xf32>
    %266 = arith.mulf %265, %2 : vector<64x128xf32>
    %267 = vector.extract_strided_slice %222 {offsets = [0, 768], sizes = [64, 128], strides = [1, 1]} : vector<64x896xf32> to vector<64x128xf32>
    %c8 = arith.constant 8 : index
    %c0_93 = arith.constant 0 : index
    %c0_94 = arith.constant 0 : index
    %268 = vector.load %arg5[%c8, %c0_93, %c0_94] : memref<10x1x128xf32, #tpu.memory_space<vmem>>, vector<1x1x128xf32>
    %269 = vector.shape_cast %268 : vector<1x1x128xf32> to vector<1x128xf32>
    %c9 = arith.constant 9 : index
    %c0_95 = arith.constant 0 : index
    %c0_96 = arith.constant 0 : index
    %270 = vector.load %arg5[%c9, %c0_95, %c0_96] : memref<10x1x128xf32, #tpu.memory_space<vmem>>, vector<1x1x128xf32>
    %271 = vector.shape_cast %270 : vector<1x1x128xf32> to vector<1x128xf32>
    %272 = vector.broadcast %269 : vector<1x128xf32> to vector<64x128xf32>
    %273 = arith.mulf %266, %272 : vector<64x128xf32>
    %274 = vector.broadcast %271 : vector<1x128xf32> to vector<64x128xf32>
    %275 = arith.mulf %267, %274 : vector<64x128xf32>
    %276 = arith.addf %273, %275 : vector<64x128xf32>
    %cst_97 = arith.constant dense<0.000000e+00> : vector<64xf32>
    %277 = vector.multi_reduction <add>, %276, %cst_97 [1] : vector<64x128xf32> to vector<64xf32>
    %278 = vector.shape_cast %277 : vector<64xf32> to vector<64x1xf32>
    %279 = arith.negf %278 : vector<64x1xf32>
    %280 = math.exp %279 : vector<64x1xf32>
    %cst_98 = arith.constant 1.000000e+00 : f32
    %281 = vector.broadcast %cst_98 : f32 to vector<64x1xf32>
    %282 = arith.addf %281, %280 : vector<64x1xf32>
    %283 = arith.divf %281, %282 : vector<64x1xf32>
    %284 = vector.broadcast %283 : vector<64x1xf32> to vector<64x128xf32>
    %285 = arith.mulf %284, %267 : vector<64x128xf32>
    %cst_99 = arith.constant 1.000000e+00 : f32
    %286 = vector.broadcast %cst_99 : f32 to vector<64x1xf32>
    %287 = arith.subf %286, %283 : vector<64x1xf32>
    %288 = vector.broadcast %287 : vector<64x1xf32> to vector<64x128xf32>
    %289 = arith.mulf %288, %266 : vector<64x128xf32>
    %290 = arith.addf %285, %289 : vector<64x128xf32>
    %291 = arith.truncf %290 : vector<64x128xf32> to vector<64x128xbf16>
    %c0_100 = arith.constant 0 : index
    %c0_101 = arith.constant 0 : index
    %292 = vector.load %arg6[%c0_100, %c0_101] : memref<64x128xbf16, #tpu.memory_space<vmem>>, vector<64x128xbf16>
    tpu.vector_store %arg6[%c0_100, %c0_101], %291 {strides = array<i32>} : memref<64x128xbf16, #tpu.memory_space<vmem>>, vector<64x128xbf16>,
    return
  }
}

</mosaic_0001>

<llo_original>
// kernel: unimp_forward.1
$region0: #{unimp_forward.1}
  #allocation0 [shape = 'u32[]', space=smem, size = 0x4, offset = 0x4, fixed_abs, tag = 'smem constant byte address 0x4 - core index']
  #allocation1 [shape = 'u32[72,128]{1,0:T(1,128)}', space=vmem, size = 0x9000, scoped, tag = 'internal scratch']
  %s0 = inlined_call_operand.hbm [shape: f32[3,64,128], index: 0, kind: input, shape index: {}]
  %s1 = inlined_call_operand.hbm [shape: f32[64,64], index: 1, kind: input, shape index: {}]
  %s2 = inlined_call_operand.hbm [shape: bf16[3,128,896], index: 2, kind: input, shape index: {}]
  %s3 = inlined_call_operand.hbm [shape: bf16[128,128], index: 3, kind: input, shape index: {}]
  %s4 = inlined_call_operand.hbm [shape: f32[3,1,896], index: 4, kind: input, shape index: {}]
  %s5 = inlined_call_operand.hbm [shape: f32[10,1,128], index: 5, kind: input, shape index: {}]
  %s6 = inlined_call_operand.vmem [shape: bf16[64,128], index: 6, kind: output, shape index: {}]
  %s7 = sld [smem:[#allocation0]]
  $region58: #{unimp_forward.1} parent=0
    _
  %s9 = ssub.s32 1, %s7
  %s10 = scalar_select 0, %s9, %s7
  $region1: #{unimp_forward.1} parent=0
    #allocation2 [shape = 'u8[98304]{0}', space=vmem, size = 0x18000, scoped, tag = 'input window, operand 0, single buffered']
    #allocation3 [shape = 's32[1]{0}', space=sflag, size = 0x4, scoped, tag = 'scoped memory for unimp_forward.1']
    #allocation4 [shape = 'u8[32768]{0}', space=vmem, size = 0x8000, scoped, tag = 'input window, operand 1, single buffered']
    #allocation5 [shape = 's32[1]{0}', space=sflag, size = 0x4, scoped, tag = 'scoped memory for unimp_forward.1']
    #allocation6 [shape = 'u8[688128]{0}', space=vmem, size = 0xa8000, scoped, tag = 'input window, operand 2, single buffered']
    #allocation7 [shape = 'u8[32768]{0}', space=vmem, size = 0x8000, scoped, tag = 'input window, operand 3, single buffered']
    #allocation8 [shape = 's32[1]{0}', space=sflag, size = 0x4, scoped, tag = 'scoped memory for unimp_forward.1']
    #allocation9 [shape = 'u8[10752]{0}', space=vmem, size = 0x2c00, scoped, tag = 'input window, operand 4, single buffered']
    #allocation10 [shape = 'u8[5120]{0}', space=vmem, size = 0x1400, scoped, tag = 'input window, operand 5, single buffered']
    #allocation11 [shape = 's32[1]{0}', space=sflag, size = 0x4, scoped, tag = 'scoped memory for unimp_forward.1']
    %11 = vsyncpa [#allocation3], 0
    %12 = vsyncpa [#allocation5], 0
    %13 = vsyncpa [#allocation8], 0
    %14 = vsyncpa [#allocation11], 0
    // Predicated region
    $region2: #{unimp_forward.1} parent=1 // pred_check
      _
    $region3: #{unimp_forward.1} parent=1 // pred_check_branch
      %16 = sbr.rel (0) target = $region5
    $region4: #{unimp_forward.1} parent=1 // pred_region
      %18 = vsyncadd [#allocation3], 0
      %s19 = sshll.u32 %s0, 4
      %s20 = int_to_ptr.hbm [resolvable:$true] %s19
      %s21 = sshll.u32 [#allocation2], 4
      %s22 = int_to_ptr.vmem [resolvable:$true] %s21
      %27 = dma.hbm_to_vmem [thread:$0]  %s20, 3072, %s22, [#allocation3], 128, 128, 8
    $region5: #{unimp_forward.1} parent=1 // pred_fallthru
      _
    // Predicated region
    $region6: #{unimp_forward.1} parent=1 // pred_check
      _
    $region7: #{unimp_forward.1} parent=1 // pred_check_branch
      %29 = sbr.rel (0) target = $region9
    $region8: #{unimp_forward.1} parent=1 // pred_region
      %31 = vsyncadd [#allocation5], 0
      %s32 = sshll.u32 %s1, 4
      %s33 = int_to_ptr.hbm [resolvable:$true] %s32
      %s34 = sshll.u32 [#allocation4], 4
      %s35 = int_to_ptr.vmem [resolvable:$true] %s34
      %40 = dma.hbm_to_vmem [thread:$0]  %s33, 1024, %s35, [#allocation5], 128, 128, 8
    $region9: #{unimp_forward.1} parent=1 // pred_fallthru
      _
    // Predicated region
    $region10: #{unimp_forward.1} parent=1 // pred_check
      _
    $region11: #{unimp_forward.1} parent=1 // pred_check_branch
      %42 = sbr.rel (0) target = $region13
    $region12: #{unimp_forward.1} parent=1 // pred_region
      %44 = vsyncadd [#allocation5], 0
      %s45 = sshll.u32 %s2, 4
      %s46 = int_to_ptr.hbm [resolvable:$true] %s45
      %s47 = sshll.u32 [#allocation6], 4
      %s48 = int_to_ptr.vmem [resolvable:$true] %s47
      %53 = dma.hbm_to_vmem [thread:$0]  %s46, 21504, %s48, [#allocation5], 448, 448, 28
    $region13: #{unimp_forward.1} parent=1 // pred_fallthru
      _
    // Predicated region
    $region14: #{unimp_forward.1} parent=1 // pred_check
      _
    $region15: #{unimp_forward.1} parent=1 // pred_check_branch
      %55 = sbr.rel (0) target = $region17
    $region16: #{unimp_forward.1} parent=1 // pred_region
      %57 = vsyncadd [#allocation8], 0
      %s58 = sshll.u32 %s3, 4
      %s59 = int_to_ptr.hbm [resolvable:$true] %s58
      %s60 = sshll.u32 [#allocation7], 4
      %s61 = int_to_ptr.vmem [resolvable:$true] %s60
      %66 = dma.hbm_to_vmem [thread:$0]  %s59, 1024, %s61, [#allocation8], 64, 64, 4
    $region17: #{unimp_forward.1} parent=1 // pred_fallthru
      _
    // Predicated region
    $region18: #{unimp_forward.1} parent=1 // pred_check
      _
    $region19: #{unimp_forward.1} parent=1 // pred_check_branch
      %68 = sbr.rel (0) target = $region21
    $region20: #{unimp_forward.1} parent=1 // pred_region
      %70 = vsyncadd [#allocation8], 0
      %s71 = sshll.u32 %s4, 4
      %s72 = int_to_ptr.hbm [resolvable:$true] %s71
      %s73 = sshll.u32 [#allocation9], 4
      %s74 = int_to_ptr.vmem [resolvable:$true] %s73
      %79 = dma.hbm_to_vmem [thread:$0]  %s72, 336, %s74, [#allocation8], 112, 112, 7
    $region21: #{unimp_forward.1} parent=1 // pred_fallthru
      _
    // Predicated region
    $region22: #{unimp_forward.1} parent=1 // pred_check
      _
    $region23: #{unimp_forward.1} parent=1 // pred_check_branch
      %81 = sbr.rel (0) target = $region25
    $region24: #{unimp_forward.1} parent=1 // pred_region
      %83 = vsyncadd [#allocation11], 0
      %s84 = sshll.u32 %s5, 4
      %s85 = int_to_ptr.hbm [resolvable:$true] %s84
      %s86 = sshll.u32 [#allocation10], 4
      %s87 = int_to_ptr.vmem [resolvable:$true] %s86
      %92 = dma.hbm_to_vmem [thread:$0]  %s85, 160, %s87, [#allocation11], 16, 16, 1
    $region25: #{unimp_forward.1} parent=1 // pred_fallthru
      _
    // Predicated region
    $region26: #{unimp_forward.1} parent=1 // pred_check
      _
    $region27: #{unimp_forward.1} parent=1 // pred_check_branch
      %94 = sbr.rel (0) target = $region29
    $region28: #{unimp_forward.1} parent=1 // pred_region
      %96 = dma.done [#allocation3], 3072
    $region29: #{unimp_forward.1} parent=1 // pred_fallthru
      _
    // Predicated region
    $region30: #{unimp_forward.1} parent=1 // pred_check
      _
    $region31: #{unimp_forward.1} parent=1 // pred_check_branch
      %98 = sbr.rel (0) target = $region33
    $region32: #{unimp_forward.1} parent=1 // pred_region
      %100 = dma.done [#allocation5], 1024
    $region33: #{unimp_forward.1} parent=1 // pred_fallthru
      _
    // Predicated region
    $region34: #{unimp_forward.1} parent=1 // pred_check
      _
    $region35: #{unimp_forward.1} parent=1 // pred_check_branch
      %102 = sbr.rel (0) target = $region37
    $region36: #{unimp_forward.1} parent=1 // pred_region
      %104 = dma.done [#allocation5], 21504
    $region37: #{unimp_forward.1} parent=1 // pred_fallthru
      _
    // Predicated region
    $region38: #{unimp_forward.1} parent=1 // pred_check
      _
    $region39: #{unimp_forward.1} parent=1 // pred_check_branch
      %106 = sbr.rel (0) target = $region41
    $region40: #{unimp_forward.1} parent=1 // pred_region
      %108 = dma.done [#allocation8], 1024
    $region41: #{unimp_forward.1} parent=1 // pred_fallthru
      _
    // Predicated region
    $region42: #{unimp_forward.1} parent=1 // pred_check
      _
    $region43: #{unimp_forward.1} parent=1 // pred_check_branch
      %110 = sbr.rel (0) target = $region45
    $region44: #{unimp_forward.1} parent=1 // pred_region
      %112 = dma.done [#allocation8], 336
    $region45: #{unimp_forward.1} parent=1 // pred_fallthru
      _
    // Predicated region
    $region46: #{unimp_forward.1} parent=1 // pred_check
      _
    $region47: #{unimp_forward.1} parent=1 // pred_check_branch
      %114 = sbr.rel (0) target = $region49
    $region48: #{unimp_forward.1} parent=1 // pred_region
      %116 = dma.done [#allocation11], 160
    $region49: #{unimp_forward.1} parent=1 // pred_fallthru
      _
    %v118 = vld [vmem:[#allocation4] sm:$0xff]
    %v119 = vld [vmem:[#allocation4 + $0x8] sm:$0xff]
    %v120 = vld [vmem:[#allocation4 + $0x10] sm:$0xff]
    %v121 = vld [vmem:[#allocation4 + $0x18] sm:$0xff]
    %v122 = vld [vmem:[#allocation4 + $0x20] sm:$0xff]
    %v123 = vld [vmem:[#allocation4 + $0x28] sm:$0xff]
    %v124 = vld [vmem:[#allocation4 + $0x30] sm:$0xff]
    %v125 = vld [vmem:[#allocation4 + $0x38] sm:$0xff]
    %s126 = scalar_lea.vmem [#allocation2], 128
    %v127 = vld [vmem:[%s126] sm:$0xff]
    %v128 = vld [vmem:[%s126 + $0x8] sm:$0xff]
    %v129 = vld [vmem:[%s126 + $0x10] sm:$0xff]
    %v130 = vld [vmem:[%s126 + $0x18] sm:$0xff]
    %v131 = vld [vmem:[%s126 + $0x20] sm:$0xff]
    %v132 = vld [vmem:[%s126 + $0x28] sm:$0xff]
    %v133 = vld [vmem:[%s126 + $0x30] sm:$0xff]
    %v134 = vld [vmem:[%s126 + $0x38] sm:$0xff]
    %v135 = vld [vmem:[#allocation2] sm:$0xff]
    %v136 = vld [vmem:[#allocation2 + $0x8] sm:$0xff]
    %v137 = vld [vmem:[#allocation2 + $0x10] sm:$0xff]
    %v138 = vld [vmem:[#allocation2 + $0x18] sm:$0xff]
    %v139 = vld [vmem:[#allocation2 + $0x20] sm:$0xff]
    %v140 = vld [vmem:[#allocation2 + $0x28] sm:$0xff]
    %v141 = vld [vmem:[#allocation2 + $0x30] sm:$0xff]
    %v142 = vld [vmem:[#allocation2 + $0x38] sm:$0xff]
    %s143 = scalar_lea.vmem [#allocation2], 64
    %v144 = vld [vmem:[%s143] sm:$0xff]
    %v145 = vld [vmem:[%s143 + $0x8] sm:$0xff]
    %v146 = vld [vmem:[%s143 + $0x10] sm:$0xff]
    %v147 = vld [vmem:[%s143 + $0x18] sm:$0xff]
    %v148 = vld [vmem:[%s143 + $0x20] sm:$0xff]
    %v149 = vld [vmem:[%s143 + $0x28] sm:$0xff]
    %v150 = vld [vmem:[%s143 + $0x30] sm:$0xff]
    %v151 = vld [vmem:[%s143 + $0x38] sm:$0xff]
    %v152 = vpack.c.bf16 %v145, %v144
    %v153 = vpack.c.bf16 %v147, %v146
    %v154 = vpack.c.bf16 %v149, %v148
    %v155 = vpack.c.bf16 %v151, %v150
    %v156 = vld [vmem:[#allocation7] sm:$0xf]
    %v157 = vld [vmem:[#allocation7 + $0x4] sm:$0xf]
    %v158 = vld [vmem:[#allocation7 + $0x8] sm:$0xf]
    %v159 = vld [vmem:[#allocation7 + $0xc] sm:$0xf]
    %v160 = vld [vmem:[#allocation7 + $0x10] sm:$0xf]
    %v161 = vld [vmem:[#allocation7 + $0x14] sm:$0xf]
    %v162 = vld [vmem:[#allocation7 + $0x18] sm:$0xf]
    %v163 = vld [vmem:[#allocation7 + $0x1c] sm:$0xf]
    %v164 = vld [vmem:[#allocation7 + $0x20] sm:$0xf]
    %v165 = vld [vmem:[#allocation7 + $0x24] sm:$0xf]
    %v166 = vld [vmem:[#allocation7 + $0x28] sm:$0xf]
    %v167 = vld [vmem:[#allocation7 + $0x2c] sm:$0xf]
    %v168 = vld [vmem:[#allocation7 + $0x30] sm:$0xf]
    %v169 = vld [vmem:[#allocation7 + $0x34] sm:$0xf]
    %v170 = vld [vmem:[#allocation7 + $0x38] sm:$0xf]
    %v171 = vld [vmem:[#allocation7 + $0x3c] sm:$0xf]
    %v188 = vunpack.c.l.b16 %v156
    %v189 = vunpack.c.l.b16 %v157
    %v190 = vunpack.c.l.b16 %v158
    %v191 = vunpack.c.l.b16 %v159
    %v192 = vunpack.c.l.b16 %v160
    %v193 = vunpack.c.l.b16 %v161
    %v194 = vunpack.c.l.b16 %v162
    %v195 = vunpack.c.l.b16 %v163
    %v196 = vunpack.c.l.b16 %v164
    %v197 = vunpack.c.l.b16 %v165
    %v198 = vunpack.c.l.b16 %v166
    %v199 = vunpack.c.l.b16 %v167
    %v200 = vunpack.c.l.b16 %v168
    %v201 = vunpack.c.l.b16 %v169
    %v202 = vunpack.c.l.b16 %v170
    %v203 = vunpack.c.l.b16 %v171
    %v204 = vpack.c.b16 %v189, %v188
    %v205 = vpack.c.b16 %v191, %v190
    %v206 = vpack.c.b16 %v193, %v192
    %v207 = vpack.c.b16 %v195, %v194
    %v208 = vpack.c.b16 %v197, %v196
    %v209 = vpack.c.b16 %v199, %v198
    %v210 = vpack.c.b16 %v201, %v200
    %v211 = vpack.c.b16 %v203, %v202
    %220 = vmatpush.bf16.msra.mxu0 %v211
    %221 = vmatpush.bf16.msra.mxu0 %v210
    %222 = vmatpush.bf16.msra.mxu0 %v209
    %223 = vmatpush.bf16.msra.mxu0 %v208
    %224 = vmatpush.bf16.msra.mxu0 %v207
    %225 = vmatpush.bf16.msra.mxu0 %v206
    %226 = vmatpush.bf16.msra.mxu0 %v205
    %227 = vmatpush.bf16.msra.mxu0 %v204
    %228 = vmatmul.bf16.gmra.mxu0 %v152
    %v229 = vpop.f32.mrf.mxu0
    %v230 = vadd.f32 0.0, %v229
    %v231 = vpop.f32.mrf.mxu0
    %v232 = vadd.f32 0.0, %v231
    %233 = vmatmul.bf16.gmra.mxu0 %v153
    %v234 = vpop.f32.mrf.mxu0
    %v235 = vadd.f32 0.0, %v234
    %v236 = vpop.f32.mrf.mxu0
    %v237 = vadd.f32 0.0, %v236
    %238 = vmatmul.bf16.gmra.mxu0 %v154
    %v239 = vpop.f32.mrf.mxu0
    %v240 = vadd.f32 0.0, %v239
    %v241 = vpop.f32.mrf.mxu0
    %v242 = vadd.f32 0.0, %v241
    %243 = vmatmul.bf16.gmra.mxu0 %v155
    %v244 = vpop.f32.mrf.mxu0
    %v245 = vadd.f32 0.0, %v244
    %v246 = vpop.f32.mrf.mxu0
    %v247 = vadd.f32 0.0, %v246
    %248 = vdwg.mxu0
    %v249 = vadd.f32 %v135, %v230
    %v250 = vadd.f32 %v136, %v232
    %v251 = vadd.f32 %v137, %v235
    %v252 = vadd.f32 %v138, %v237
    %v253 = vadd.f32 %v139, %v240
    %v254 = vadd.f32 %v140, %v242
    %v255 = vadd.f32 %v141, %v245
    %v256 = vadd.f32 %v142, %v247
    %v257 = vpack.c.bf16 %v250, %v249
    %v258 = vpack.c.bf16 %v252, %v251
    %v259 = vpack.c.bf16 %v254, %v253
    %v260 = vpack.c.bf16 %v256, %v255
    %v261 = vld [vmem:[#allocation6] sm:$0xff]
    %v262 = vld [vmem:[#allocation6 + $0x8] sm:$0xff]
    %v263 = vld [vmem:[#allocation6 + $0x10] sm:$0xff]
    %v264 = vld [vmem:[#allocation6 + $0x18] sm:$0xf]
    %v265 = vld [vmem:[#allocation6 + $0x1c] sm:$0xff]
    %v266 = vld [vmem:[#allocation6 + $0x24] sm:$0xff]
    %v267 = vld [vmem:[#allocation6 + $0x2c] sm:$0xff]
    %v268 = vld [vmem:[#allocation6 + $0x34] sm:$0xf]
    %v269 = vld [vmem:[#allocation6 + $0x38] sm:$0xff]
    %v270 = vld [vmem:[#allocation6 + $0x40] sm:$0xff]
    %v271 = vld [vmem:[#allocation6 + $0x48] sm:$0xff]
    %v272 = vld [vmem:[#allocation6 + $0x50] sm:$0xf]
    %v273 = vld [vmem:[#allocation6 + $0x54] sm:$0xff]
    %v274 = vld [vmem:[#allocation6 + $0x5c] sm:$0xff]
    %v275 = vld [vmem:[#allocation6 + $0x64] sm:$0xff]
    %v276 = vld [vmem:[#allocation6 + $0x6c] sm:$0xf]
    %v277 = vld [vmem:[#allocation6 + $0x70] sm:$0xff]
    %v278 = vld [vmem:[#allocation6 + $0x78] sm:$0xff]
    %v279 = vld [vmem:[#allocation6 + $0x80] sm:$0xff]
    %v280 = vld [vmem:[#allocation6 + $0x88] sm:$0xf]
    %v281 = vld [vmem:[#allocation6 + $0x8c] sm:$0xff]
    %v282 = vld [vmem:[#allocation6 + $0x94] sm:$0xff]
    %v283 = vld [vmem:[#allocation6 + $0x9c] sm:$0xff]
    %v284 = vld [vmem:[#allocation6 + $0xa4] sm:$0xf]
    %v285 = vld [vmem:[#allocation6 + $0xa8] sm:$0xff]
    %v286 = vld [vmem:[#allocation6 + $0xb0] sm:$0xff]
    %v287 = vld [vmem:[#allocation6 + $0xb8] sm:$0xff]
    %v288 = vld [vmem:[#allocation6 + $0xc0] sm:$0xf]
    %v289 = vld [vmem:[#allocation6 + $0xc4] sm:$0xff]
    %v290 = vld [vmem:[#allocation6 + $0xcc] sm:$0xff]
    %v291 = vld [vmem:[#allocation6 + $0xd4] sm:$0xff]
    %v292 = vld [vmem:[#allocation6 + $0xdc] sm:$0xf]
    %v293 = vld [vmem:[#allocation6 + $0xe0] sm:$0xff]
    %v294 = vld [vmem:[#allocation6 + $0xe8] sm:$0xff]
    %v295 = vld [vmem:[#allocation6 + $0xf0] sm:$0xff]
    %v296 = vld [vmem:[#allocation6 + $0xf8] sm:$0xf]
    %v297 = vld [vmem:[#allocation6 + $0xfc] sm:$0xff]
    %v298 = vld [vmem:[#allocation6 + $0x104] sm:$0xff]
    %v299 = vld [vmem:[#allocation6 + $0x10c] sm:$0xff]
    %v300 = vld [vmem:[#allocation6 + $0x114] sm:$0xf]
    %v301 = vld [vmem:[#allocation6 + $0x118] sm:$0xff]
    %v302 = vld [vmem:[#allocation6 + $0x120] sm:$0xff]
    %v303 = vld [vmem:[#allocation6 + $0x128] sm:$0xff]
    %v304 = vld [vmem:[#allocation6 + $0x130] sm:$0xf]
    %v305 = vld [vmem:[#allocation6 + $0x134] sm:$0xff]
    %v306 = vld [vmem:[#allocation6 + $0x13c] sm:$0xff]
    %v307 = vld [vmem:[#allocation6 + $0x144] sm:$0xff]
    %v308 = vld [vmem:[#allocation6 + $0x14c] sm:$0xf]
    %v309 = vld [vmem:[#allocation6 + $0x150] sm:$0xff]
    %v310 = vld [vmem:[#allocation6 + $0x158] sm:$0xff]
    %v311 = vld [vmem:[#allocation6 + $0x160] sm:$0xff]
    %v312 = vld [vmem:[#allocation6 + $0x168] sm:$0xf]
    %v313 = vld [vmem:[#allocation6 + $0x16c] sm:$0xff]
    %v314 = vld [vmem:[#allocation6 + $0x174] sm:$0xff]
    %v315 = vld [vmem:[#allocation6 + $0x17c] sm:$0xff]
    %v316 = vld [vmem:[#allocation6 + $0x184] sm:$0xf]
    %v317 = vld [vmem:[#allocation6 + $0x188] sm:$0xff]
    %v318 = vld [vmem:[#allocation6 + $0x190] sm:$0xff]
    %v319 = vld [vmem:[#allocation6 + $0x198] sm:$0xff]
    %v320 = vld [vmem:[#allocation6 + $0x1a0] sm:$0xf]
    %v321 = vld [vmem:[#allocation6 + $0x1a4] sm:$0xff]
    %v322 = vld [vmem:[#allocation6 + $0x1ac] sm:$0xff]
    %v323 = vld [vmem:[#allocation6 + $0x1b4] sm:$0xff]
    %v324 = vld [vmem:[#allocation6 + $0x1bc] sm:$0xf]
    %v325 = vld [vmem:[#allocation9] sm:$0xff]
    %v327 = vperm.slane %v325, 0
    %v328 = vperm.slane %v325, 1
    %v329 = vperm.slane %v325, 2
    %v330 = vperm.slane %v325, 3
    %v331 = vperm.slane %v325, 4
    %v332 = vperm.slane %v325, 5
    %v333 = vperm.slane %v325, 6
    %v405 = vunpack.c.l.b16 %v261
    %v406 = vunpack.c.h.b16 %v261
    %v407 = vunpack.c.l.b16 %v262
    %v408 = vunpack.c.h.b16 %v262
    %v409 = vunpack.c.l.b16 %v263
    %v410 = vunpack.c.h.b16 %v263
    %v411 = vunpack.c.l.b16 %v264
    %v412 = vunpack.c.l.b16 %v265
    %v413 = vunpack.c.h.b16 %v265
    %v414 = vunpack.c.l.b16 %v266
    %v415 = vunpack.c.h.b16 %v266
    %v416 = vunpack.c.l.b16 %v267
    %v417 = vunpack.c.h.b16 %v267
    %v418 = vunpack.c.l.b16 %v268
    %v419 = vunpack.c.l.b16 %v269
    %v420 = vunpack.c.h.b16 %v269
    %v421 = vunpack.c.l.b16 %v270
    %v422 = vunpack.c.h.b16 %v270
    %v423 = vunpack.c.l.b16 %v271
    %v424 = vunpack.c.h.b16 %v271
    %v425 = vunpack.c.l.b16 %v272
    %v426 = vunpack.c.l.b16 %v273
    %v427 = vunpack.c.h.b16 %v273
    %v428 = vunpack.c.l.b16 %v274
    %v429 = vunpack.c.h.b16 %v274
    %v430 = vunpack.c.l.b16 %v275
    %v431 = vunpack.c.h.b16 %v275
    %v432 = vunpack.c.l.b16 %v276
    %v433 = vunpack.c.l.b16 %v277
    %v434 = vunpack.c.h.b16 %v277
    %v435 = vunpack.c.l.b16 %v278
    %v436 = vunpack.c.h.b16 %v278
    %v437 = vunpack.c.l.b16 %v279
    %v438 = vunpack.c.h.b16 %v279
    %v439 = vunpack.c.l.b16 %v280
    %v440 = vunpack.c.l.b16 %v281
    %v441 = vunpack.c.h.b16 %v281
    %v442 = vunpack.c.l.b16 %v282
    %v443 = vunpack.c.h.b16 %v282
    %v444 = vunpack.c.l.b16 %v283
    %v445 = vunpack.c.h.b16 %v283
    %v446 = vunpack.c.l.b16 %v284
    %v447 = vunpack.c.l.b16 %v285
    %v448 = vunpack.c.h.b16 %v285
    %v449 = vunpack.c.l.b16 %v286
    %v450 = vunpack.c.h.b16 %v286
    %v451 = vunpack.c.l.b16 %v287
    %v452 = vunpack.c.h.b16 %v287
    %v453 = vunpack.c.l.b16 %v288
    %v454 = vunpack.c.l.b16 %v289
    %v455 = vunpack.c.h.b16 %v289
    %v456 = vunpack.c.l.b16 %v290
    %v457 = vunpack.c.h.b16 %v290
    %v458 = vunpack.c.l.b16 %v291
    %v459 = vunpack.c.h.b16 %v291
    %v460 = vunpack.c.l.b16 %v292
    %v461 = vunpack.c.l.b16 %v293
    %v462 = vunpack.c.h.b16 %v293
    %v463 = vunpack.c.l.b16 %v294
    %v464 = vunpack.c.h.b16 %v294
    %v465 = vunpack.c.l.b16 %v295
    %v466 = vunpack.c.h.b16 %v295
    %v467 = vunpack.c.l.b16 %v296
    %v468 = vunpack.c.l.b16 %v297
    %v469 = vunpack.c.h.b16 %v297
    %v470 = vunpack.c.l.b16 %v298
    %v471 = vunpack.c.h.b16 %v298
    %v472 = vunpack.c.l.b16 %v299
    %v473 = vunpack.c.h.b16 %v299
    %v474 = vunpack.c.l.b16 %v300
    %v475 = vunpack.c.l.b16 %v301
    %v476 = vunpack.c.h.b16 %v301
    %v477 = vunpack.c.l.b16 %v302
    %v478 = vunpack.c.h.b16 %v302
    %v479 = vunpack.c.l.b16 %v303
    %v480 = vunpack.c.h.b16 %v303
    %v481 = vunpack.c.l.b16 %v304
    %v482 = vunpack.c.l.b16 %v305
    %v483 = vunpack.c.h.b16 %v305
    %v484 = vunpack.c.l.b16 %v306
    %v485 = vunpack.c.h.b16 %v306
    %v486 = vunpack.c.l.b16 %v307
    %v487 = vunpack.c.h.b16 %v307
    %v488 = vunpack.c.l.b16 %v308
    %v489 = vunpack.c.l.b16 %v309
    %v490 = vunpack.c.h.b16 %v309
    %v491 = vunpack.c.l.b16 %v310
    %v492 = vunpack.c.h.b16 %v310
    %v493 = vunpack.c.l.b16 %v311
    %v494 = vunpack.c.h.b16 %v311
    %v495 = vunpack.c.l.b16 %v312
    %v496 = vunpack.c.l.b16 %v313
    %v497 = vunpack.c.h.b16 %v313
    %v498 = vunpack.c.l.b16 %v314
    %v499 = vunpack.c.h.b16 %v314
    %v500 = vunpack.c.l.b16 %v315
    %v501 = vunpack.c.h.b16 %v315
    %v502 = vunpack.c.l.b16 %v316
    %v503 = vunpack.c.l.b16 %v317
    %v504 = vunpack.c.h.b16 %v317
    %v505 = vunpack.c.l.b16 %v318
    %v506 = vunpack.c.h.b16 %v318
    %v507 = vunpack.c.l.b16 %v319
    %v508 = vunpack.c.h.b16 %v319
    %v509 = vunpack.c.l.b16 %v320
    %v510 = vunpack.c.l.b16 %v321
    %v511 = vunpack.c.h.b16 %v321
    %v512 = vunpack.c.l.b16 %v322
    %v513 = vunpack.c.h.b16 %v322
    %v514 = vunpack.c.l.b16 %v323
    %v515 = vunpack.c.h.b16 %v323
    %v516 = vunpack.c.l.b16 %v324
    %v517 = vpack.c.b16 %v412, %v405
    %v518 = vpack.c.b16 %v413, %v406
    %v519 = vpack.c.b16 %v414, %v407
    %v520 = vpack.c.b16 %v415, %v408
    %v521 = vpack.c.b16 %v416, %v409
    %v522 = vpack.c.b16 %v417, %v410
    %v523 = vpack.c.b16 %v418, %v411
    %v524 = vpack.c.b16 %v426, %v419
    %v525 = vpack.c.b16 %v427, %v420
    %v526 = vpack.c.b16 %v428, %v421
    %v527 = vpack.c.b16 %v429, %v422
    %v528 = vpack.c.b16 %v430, %v423
    %v529 = vpack.c.b16 %v431, %v424
    %v530 = vpack.c.b16 %v432, %v425
    %v531 = vpack.c.b16 %v440, %v433
    %v532 = vpack.c.b16 %v441, %v434
    %v533 = vpack.c.b16 %v442, %v435
    %v534 = vpack.c.b16 %v443, %v436
    %v535 = vpack.c.b16 %v444, %v437
    %v536 = vpack.c.b16 %v445, %v438
    %v537 = vpack.c.b16 %v446, %v439
    %v538 = vpack.c.b16 %v454, %v447
    %v539 = vpack.c.b16 %v455, %v448
    %v540 = vpack.c.b16 %v456, %v449
    %v541 = vpack.c.b16 %v457, %v450
    %v542 = vpack.c.b16 %v458, %v451
    %v543 = vpack.c.b16 %v459, %v452
    %v544 = vpack.c.b16 %v460, %v453
    %v545 = vpack.c.b16 %v468, %v461
    %v546 = vpack.c.b16 %v469, %v462
    %v547 = vpack.c.b16 %v470, %v463
    %v548 = vpack.c.b16 %v471, %v464
    %v549 = vpack.c.b16 %v472, %v465
    %v550 = vpack.c.b16 %v473, %v466
    %v551 = vpack.c.b16 %v474, %v467
    %v552 = vpack.c.b16 %v482, %v475
    %v553 = vpack.c.b16 %v483, %v476
    %v554 = vpack.c.b16 %v484, %v477
    %v555 = vpack.c.b16 %v485, %v478
    %v556 = vpack.c.b16 %v486, %v479
    %v557 = vpack.c.b16 %v487, %v480
    %v558 = vpack.c.b16 %v488, %v481
    %v559 = vpack.c.b16 %v496, %v489
    %v560 = vpack.c.b16 %v497, %v490
    %v561 = vpack.c.b16 %v498, %v491
    %v562 = vpack.c.b16 %v499, %v492
    %v563 = vpack.c.b16 %v500, %v493
    %v564 = vpack.c.b16 %v501, %v494
    %v565 = vpack.c.b16 %v502, %v495
    %v566 = vpack.c.b16 %v510, %v503
    %v567 = vpack.c.b16 %v511, %v504
    %v568 = vpack.c.b16 %v512, %v505
    %v569 = vpack.c.b16 %v513, %v506
    %v570 = vpack.c.b16 %v514, %v507
    %v571 = vpack.c.b16 %v515, %v508
    %v572 = vpack.c.b16 %v516, %v509
    %629 = vmatpush.bf16.msra.mxu0 %v566
    %630 = vmatpush.bf16.msra.mxu0 %v559
    %631 = vmatpush.bf16.msra.mxu0 %v552
    %632 = vmatpush.bf16.msra.mxu0 %v545
    %633 = vmatpush.bf16.msra.mxu0 %v538
    %634 = vmatpush.bf16.msra.mxu0 %v531
    %635 = vmatpush.bf16.msra.mxu0 %v524
    %636 = vmatpush.bf16.msra.mxu0 %v517
    %637 = vmatmul.bf16.gmra.mxu0 %v257
    %v638 = vpop.f32.mrf.mxu0
    %v639 = vadd.f32 %v327, %v638
    %v640 = vpop.f32.mrf.mxu0
    %v641 = vadd.f32 %v327, %v640
    %642 = vmatmul.bf16.gmra.mxu0 %v258
    %v643 = vpop.f32.mrf.mxu0
    %v644 = vadd.f32 %v327, %v643
    %v645 = vpop.f32.mrf.mxu0
    %v646 = vadd.f32 %v327, %v645
    %647 = vmatmul.bf16.gmra.mxu0 %v259
    %v648 = vpop.f32.mrf.mxu0
    %v649 = vadd.f32 %v327, %v648
    %v650 = vpop.f32.mrf.mxu0
    %v651 = vadd.f32 %v327, %v650
    %652 = vmatmul.bf16.gmra.mxu0 %v260
    %v653 = vpop.f32.mrf.mxu0
    %v654 = vadd.f32 %v327, %v653
    %v655 = vpop.f32.mrf.mxu0
    %v656 = vadd.f32 %v327, %v655
    %657 = vdwg.mxu0
    %658 = vmatpush.bf16.msra.mxu0 %v567
    %659 = vmatpush.bf16.msra.mxu0 %v560
    %660 = vmatpush.bf16.msra.mxu0 %v553
    %661 = vmatpush.bf16.msra.mxu0 %v546
    %662 = vmatpush.bf16.msra.mxu0 %v539
    %663 = vmatpush.bf16.msra.mxu0 %v532
    %664 = vmatpush.bf16.msra.mxu0 %v525
    %665 = vmatpush.bf16.msra.mxu0 %v518
    %666 = vmatmul.bf16.gmra.mxu0 %v257
    %v667 = vpop.f32.mrf.mxu0
    %v668 = vadd.f32 %v328, %v667
    %v669 = vpop.f32.mrf.mxu0
    %v670 = vadd.f32 %v328, %v669
    %671 = vmatmul.bf16.gmra.mxu0 %v258
    %v672 = vpop.f32.mrf.mxu0
    %v673 = vadd.f32 %v328, %v672
    %v674 = vpop.f32.mrf.mxu0
    %v675 = vadd.f32 %v328, %v674
    %676 = vmatmul.bf16.gmra.mxu0 %v259
    %v677 = vpop.f32.mrf.mxu0
    %v678 = vadd.f32 %v328, %v677
    %v679 = vpop.f32.mrf.mxu0
    %v680 = vadd.f32 %v328, %v679
    %681 = vmatmul.bf16.gmra.mxu0 %v260
    %v682 = vpop.f32.mrf.mxu0
    %v683 = vadd.f32 %v328, %v682
    %v684 = vpop.f32.mrf.mxu0
    %v685 = vadd.f32 %v328, %v684
    %686 = vdwg.mxu0
    %687 = vmatpush.bf16.msra.mxu0 %v568
    %688 = vmatpush.bf16.msra.mxu0 %v561
    %689 = vmatpush.bf16.msra.mxu0 %v554
    %690 = vmatpush.bf16.msra.mxu0 %v547
    %691 = vmatpush.bf16.msra.mxu0 %v540
    %692 = vmatpush.bf16.msra.mxu0 %v533
    %693 = vmatpush.bf16.msra.mxu0 %v526
    %694 = vmatpush.bf16.msra.mxu0 %v519
    %695 = vmatmul.bf16.gmra.mxu0 %v257
    %v696 = vpop.f32.mrf.mxu0
    %v697 = vadd.f32 %v329, %v696
    %v698 = vpop.f32.mrf.mxu0
    %v699 = vadd.f32 %v329, %v698
    %700 = vmatmul.bf16.gmra.mxu0 %v258
    %v701 = vpop.f32.mrf.mxu0
    %v702 = vadd.f32 %v329, %v701
    %v703 = vpop.f32.mrf.mxu0
    %v704 = vadd.f32 %v329, %v703
    %705 = vmatmul.bf16.gmra.mxu0 %v259
    %v706 = vpop.f32.mrf.mxu0
    %v707 = vadd.f32 %v329, %v706
    %v708 = vpop.f32.mrf.mxu0
    %v709 = vadd.f32 %v329, %v708
    %710 = vmatmul.bf16.gmra.mxu0 %v260
    %v711 = vpop.f32.mrf.mxu0
    %v712 = vadd.f32 %v329, %v711
    %v713 = vpop.f32.mrf.mxu0
    %v714 = vadd.f32 %v329, %v713
    %715 = vdwg.mxu0
    %716 = vmatpush.bf16.msra.mxu0 %v569
    %717 = vmatpush.bf16.msra.mxu0 %v562
    %718 = vmatpush.bf16.msra.mxu0 %v555
    %719 = vmatpush.bf16.msra.mxu0 %v548
    %720 = vmatpush.bf16.msra.mxu0 %v541
    %721 = vmatpush.bf16.msra.mxu0 %v534
    %722 = vmatpush.bf16.msra.mxu0 %v527
    %723 = vmatpush.bf16.msra.mxu0 %v520
    %724 = vmatmul.bf16.gmra.mxu0 %v257
    %v725 = vpop.f32.mrf.mxu0
    %v726 = vadd.f32 %v330, %v725
    %v727 = vpop.f32.mrf.mxu0
    %v728 = vadd.f32 %v330, %v727
    %729 = vmatmul.bf16.gmra.mxu0 %v258
    %v730 = vpop.f32.mrf.mxu0
    %v731 = vadd.f32 %v330, %v730
    %v732 = vpop.f32.mrf.mxu0
    %v733 = vadd.f32 %v330, %v732
    %734 = vmatmul.bf16.gmra.mxu0 %v259
    %v735 = vpop.f32.mrf.mxu0
    %v736 = vadd.f32 %v330, %v735
    %v737 = vpop.f32.mrf.mxu0
    %v738 = vadd.f32 %v330, %v737
    %739 = vmatmul.bf16.gmra.mxu0 %v260
    %v740 = vpop.f32.mrf.mxu0
    %v741 = vadd.f32 %v330, %v740
    %v742 = vpop.f32.mrf.mxu0
    %v743 = vadd.f32 %v330, %v742
    %744 = vdwg.mxu0
    %745 = vmatpush.bf16.msra.mxu0 %v570
    %746 = vmatpush.bf16.msra.mxu0 %v563
    %747 = vmatpush.bf16.msra.mxu0 %v556
    %748 = vmatpush.bf16.msra.mxu0 %v549
    %749 = vmatpush.bf16.msra.mxu0 %v542
    %750 = vmatpush.bf16.msra.mxu0 %v535
    %751 = vmatpush.bf16.msra.mxu0 %v528
    %752 = vmatpush.bf16.msra.mxu0 %v521
    %753 = vmatmul.bf16.gmra.mxu0 %v257
    %v754 = vpop.f32.mrf.mxu0
    %v755 = vadd.f32 %v331, %v754
    %v756 = vpop.f32.mrf.mxu0
    %v757 = vadd.f32 %v331, %v756
    %758 = vmatmul.bf16.gmra.mxu0 %v258
    %v759 = vpop.f32.mrf.mxu0
    %v760 = vadd.f32 %v331, %v759
    %v761 = vpop.f32.mrf.mxu0
    %v762 = vadd.f32 %v331, %v761
    %763 = vmatmul.bf16.gmra.mxu0 %v259
    %v764 = vpop.f32.mrf.mxu0
    %v765 = vadd.f32 %v331, %v764
    %v766 = vpop.f32.mrf.mxu0
    %v767 = vadd.f32 %v331, %v766
    %768 = vmatmul.bf16.gmra.mxu0 %v260
    %v769 = vpop.f32.mrf.mxu0
    %v770 = vadd.f32 %v331, %v769
    %v771 = vpop.f32.mrf.mxu0
    %v772 = vadd.f32 %v331, %v771
    %773 = vdwg.mxu0
    %774 = vmatpush.bf16.msra.mxu0 %v571
    %775 = vmatpush.bf16.msra.mxu0 %v564
    %776 = vmatpush.bf16.msra.mxu0 %v557
    %777 = vmatpush.bf16.msra.mxu0 %v550
    %778 = vmatpush.bf16.msra.mxu0 %v543
    %779 = vmatpush.bf16.msra.mxu0 %v536
    %780 = vmatpush.bf16.msra.mxu0 %v529
    %781 = vmatpush.bf16.msra.mxu0 %v522
    %782 = vmatmul.bf16.gmra.mxu0 %v257
    %v783 = vpop.f32.mrf.mxu0
    %v784 = vadd.f32 %v332, %v783
    %v785 = vpop.f32.mrf.mxu0
    %v786 = vadd.f32 %v332, %v785
    %787 = vmatmul.bf16.gmra.mxu0 %v258
    %v788 = vpop.f32.mrf.mxu0
    %v789 = vadd.f32 %v332, %v788
    %v790 = vpop.f32.mrf.mxu0
    %v791 = vadd.f32 %v332, %v790
    %792 = vmatmul.bf16.gmra.mxu0 %v259
    %v793 = vpop.f32.mrf.mxu0
    %v794 = vadd.f32 %v332, %v793
    %v795 = vpop.f32.mrf.mxu0
    %v796 = vadd.f32 %v332, %v795
    %797 = vmatmul.bf16.gmra.mxu0 %v260
    %v798 = vpop.f32.mrf.mxu0
    %v799 = vadd.f32 %v332, %v798
    %v800 = vpop.f32.mrf.mxu0
    %v801 = vadd.f32 %v332, %v800
    %802 = vdwg.mxu0
    %803 = vmatpush.bf16.msra.mxu0 %v572
    %804 = vmatpush.bf16.msra.mxu0 %v565
    %805 = vmatpush.bf16.msra.mxu0 %v558
    %806 = vmatpush.bf16.msra.mxu0 %v551
    %807 = vmatpush.bf16.msra.mxu0 %v544
    %808 = vmatpush.bf16.msra.mxu0 %v537
    %809 = vmatpush.bf16.msra.mxu0 %v530
    %810 = vmatpush.bf16.msra.mxu0 %v523
    %811 = vmatmul.bf16.gmra.mxu0 %v257
    %v812 = vpop.f32.mrf.mxu0
    %v813 = vadd.f32 %v333, %v812
    %v814 = vpop.f32.mrf.mxu0
    %v815 = vadd.f32 %v333, %v814
    %816 = vmatmul.bf16.gmra.mxu0 %v258
    %v817 = vpop.f32.mrf.mxu0
    %v818 = vadd.f32 %v333, %v817
    %v819 = vpop.f32.mrf.mxu0
    %v820 = vadd.f32 %v333, %v819
    %821 = vmatmul.bf16.gmra.mxu0 %v259
    %v822 = vpop.f32.mrf.mxu0
    %v823 = vadd.f32 %v333, %v822
    %v824 = vpop.f32.mrf.mxu0
    %v825 = vadd.f32 %v333, %v824
    %826 = vmatmul.bf16.gmra.mxu0 %v260
    %v827 = vpop.f32.mrf.mxu0
    %v828 = vadd.f32 %v333, %v827
    %v829 = vpop.f32.mrf.mxu0
    %v830 = vadd.f32 %v333, %v829
    %831 = vdwg.mxu0
    %v832 = vpack.c.bf16 %v641, %v639
    %v833 = vpack.c.bf16 %v646, %v644
    %v834 = vpack.c.bf16 %v651, %v649
    %v835 = vpack.c.bf16 %v656, %v654
    %v836 = vpack.c.bf16 %v699, %v697
    %v837 = vpack.c.bf16 %v704, %v702
    %v838 = vpack.c.bf16 %v709, %v707
    %v839 = vpack.c.bf16 %v714, %v712
    %840 = vmatpush.bf16.xpose.msra.mxu0 0
    %841 = vmatpush.bf16.xpose.msra.mxu0 0
    %842 = vmatpush.bf16.xpose.msra.mxu0 0
    %843 = vmatpush.bf16.xpose.msra.mxu0 0
    %844 = vmatpush.bf16.xpose.msra.mxu0 %v839
    %845 = vmatpush.bf16.xpose.msra.mxu0 %v838
    %846 = vmatpush.bf16.xpose.msra.mxu0 %v837
    %847 = vmatpush.bf16.xpose.msra.mxu0 %v836
    %848 = vmatmul.bf16.gmra.mxu0 %v832
    %v849 = vpop.f32.mrf.mxu0
    %v850 = vadd.f32 %v118, %v849
    %v851 = vpop.f32.mrf.mxu0
    %v852 = vadd.f32 %v119, %v851
    %853 = vmatmul.bf16.gmra.mxu0 %v833
    %v854 = vpop.f32.mrf.mxu0
    %v855 = vadd.f32 %v120, %v854
    %v856 = vpop.f32.mrf.mxu0
    %v857 = vadd.f32 %v121, %v856
    %858 = vmatmul.bf16.gmra.mxu0 %v834
    %v859 = vpop.f32.mrf.mxu0
    %v860 = vadd.f32 %v122, %v859
    %v861 = vpop.f32.mrf.mxu0
    %v862 = vadd.f32 %v123, %v861
    %863 = vmatmul.bf16.gmra.mxu0 %v835
    %v864 = vpop.f32.mrf.mxu0
    %v865 = vadd.f32 %v124, %v864
    %v866 = vpop.f32.mrf.mxu0
    %v867 = vadd.f32 %v125, %v866
    %868 = vdwg.mxu0
    %vm869 = vcmask 523264
    %v870 = vsel %vm869, %v850, -inf
    %871 = vmax.xlane.f32.xlu0 %v870
    %v872 = vpop.xlane.xlu0 %871
    %v873 = vsel %vm869, %v852, -inf
    %874 = vmax.xlane.f32.xlu0 %v873
    %v875 = vpop.xlane.xlu0 %874
    %v876 = vsel %vm869, %v855, -inf
    %877 = vmax.xlane.f32.xlu0 %v876
    %v878 = vpop.xlane.xlu0 %877
    %v879 = vsel %vm869, %v857, -inf
    %880 = vmax.xlane.f32.xlu0 %v879
    %v881 = vpop.xlane.xlu0 %880
    %v882 = vsel %vm869, %v860, -inf
    %883 = vmax.xlane.f32.xlu0 %v882
    %v884 = vpop.xlane.xlu0 %883
    %v885 = vsel %vm869, %v862, -inf
    %886 = vmax.xlane.f32.xlu0 %v885
    %v887 = vpop.xlane.xlu0 %886
    %v888 = vsel %vm869, %v865, -inf
    %889 = vmax.xlane.f32.xlu0 %v888
    %v890 = vpop.xlane.xlu0 %889
    %v891 = vsel %vm869, %v867, -inf
    %892 = vmax.xlane.f32.xlu0 %v891
    %v893 = vpop.xlane.xlu0 %892
    %v894 = vsub.f32 %v850, %v872
    %v895 = vsub.f32 %v852, %v875
    %v896 = vsub.f32 %v855, %v878
    %v897 = vsub.f32 %v857, %v881
    %v898 = vsub.f32 %v860, %v884
    %v899 = vsub.f32 %v862, %v887
    %v900 = vsub.f32 %v865, %v890
    %v901 = vsub.f32 %v867, %v893
    %v902 = vmul.f32 %v894, 1.442695
    %v903 = vpow.pop %v902
    %v904 = vmul.f32 %v895, 1.442695
    %v905 = vpow.pop %v904
    %v906 = vmul.f32 %v896, 1.442695
    %v907 = vpow.pop %v906
    %v908 = vmul.f32 %v897, 1.442695
    %v909 = vpow.pop %v908
    %v910 = vmul.f32 %v898, 1.442695
    %v911 = vpow.pop %v910
    %v912 = vmul.f32 %v899, 1.442695
    %v913 = vpow.pop %v912
    %v914 = vmul.f32 %v900, 1.442695
    %v915 = vpow.pop %v914
    %v916 = vmul.f32 %v901, 1.442695
    %v917 = vpow.pop %v916
    %v918 = vsel %vm869, %v903, 0.0
    %919 = vadd.xlane.f32.xlu0 %v918
    %v920 = vpop.xlane.xlu0 %919
    %v921 = vsel %vm869, %v905, 0.0
    %922 = vadd.xlane.f32.xlu0 %v921
    %v923 = vpop.xlane.xlu0 %922
    %v924 = vsel %vm869, %v907, 0.0
    %925 = vadd.xlane.f32.xlu0 %v924
    %v926 = vpop.xlane.xlu0 %925
    %v927 = vsel %vm869, %v909, 0.0
    %928 = vadd.xlane.f32.xlu0 %v927
    %v929 = vpop.xlane.xlu0 %928
    %v930 = vsel %vm869, %v911, 0.0
    %931 = vadd.xlane.f32.xlu0 %v930
    %v932 = vpop.xlane.xlu0 %931
    %v933 = vsel %vm869, %v913, 0.0
    %934 = vadd.xlane.f32.xlu0 %v933
    %v935 = vpop.xlane.xlu0 %934
    %v936 = vsel %vm869, %v915, 0.0
    %937 = vadd.xlane.f32.xlu0 %v936
    %v938 = vpop.xlane.xlu0 %937
    %v939 = vsel %vm869, %v917, 0.0
    %940 = vadd.xlane.f32.xlu0 %v939
    %v941 = vpop.xlane.xlu0 %940
    %v942 = vrcp.pop %v920
    %v943 = vrcp.pop %v923
    %v944 = vrcp.pop %v926
    %v945 = vrcp.pop %v929
    %v946 = vrcp.pop %v932
    %v947 = vrcp.pop %v935
    %v948 = vrcp.pop %v938
    %v949 = vrcp.pop %v941
    %v950 = vmul.f32 %v903, %v942
    %v951 = vmul.f32 %v905, %v943
    %v952 = vmul.f32 %v907, %v944
    %v953 = vmul.f32 %v909, %v945
    %v954 = vmul.f32 %v911, %v946
    %v955 = vmul.f32 %v913, %v947
    %v956 = vmul.f32 %v915, %v948
    %v957 = vmul.f32 %v917, %v949
    %v958 = vpack.c.bf16 %v951, %v950
    %v959 = vpack.c.bf16 %v953, %v952
    %v960 = vpack.c.bf16 %v955, %v954
    %v961 = vpack.c.bf16 %v957, %v956
    %v962 = vpack.c.bf16 %v757, %v755
    %v963 = vpack.c.bf16 %v762, %v760
    %v964 = vpack.c.bf16 %v767, %v765
    %v965 = vpack.c.bf16 %v772, %v770
    %v966 = vpack.c.bf16 %v670, %v668
    %v967 = vpack.c.bf16 %v675, %v673
    %v968 = vpack.c.bf16 %v680, %v678
    %v969 = vpack.c.bf16 %v685, %v683
    %v970 = vpack.c.bf16 %v728, %v726
    %v971 = vpack.c.bf16 %v733, %v731
    %v972 = vpack.c.bf16 %v738, %v736
    %v973 = vpack.c.bf16 %v743, %v741
    %974 = vmatpush.bf16.xpose.msra.mxu0 0
    %975 = vmatpush.bf16.xpose.msra.mxu0 0
    %976 = vmatpush.bf16.xpose.msra.mxu0 0
    %977 = vmatpush.bf16.xpose.msra.mxu0 0
    %978 = vmatpush.bf16.xpose.msra.mxu0 %v973
    %979 = vmatpush.bf16.xpose.msra.mxu0 %v972
    %980 = vmatpush.bf16.xpose.msra.mxu0 %v971
    %981 = vmatpush.bf16.xpose.msra.mxu0 %v970
    %982 = vmatmul.bf16.gmra.mxu0 %v966
    %v983 = vpop.f32.mrf.mxu0
    %v984 = vadd.f32 %v118, %v983
    %v985 = vpop.f32.mrf.mxu0
    %v986 = vadd.f32 %v119, %v985
    %987 = vmatmul.bf16.gmra.mxu0 %v967
    %v988 = vpop.f32.mrf.mxu0
    %v989 = vadd.f32 %v120, %v988
    %v990 = vpop.f32.mrf.mxu0
    %v991 = vadd.f32 %v121, %v990
    %992 = vmatmul.bf16.gmra.mxu0 %v968
    %v993 = vpop.f32.mrf.mxu0
    %v994 = vadd.f32 %v122, %v993
    %v995 = vpop.f32.mrf.mxu0
    %v996 = vadd.f32 %v123, %v995
    %997 = vmatmul.bf16.gmra.mxu0 %v969
    %v998 = vpop.f32.mrf.mxu0
    %v999 = vadd.f32 %v124, %v998
    %v1000 = vpop.f32.mrf.mxu0
    %v1001 = vadd.f32 %v125, %v1000
    %1002 = vdwg.mxu0
    %v1003 = vsel %vm869, %v984, -inf
    %1004 = vmax.xlane.f32.xlu0 %v1003
    %v1005 = vpop.xlane.xlu0 %1004
    %v1006 = vsel %vm869, %v986, -inf
    %1007 = vmax.xlane.f32.xlu0 %v1006
    %v1008 = vpop.xlane.xlu0 %1007
    %v1009 = vsel %vm869, %v989, -inf
    %1010 = vmax.xlane.f32.xlu0 %v1009
    %v1011 = vpop.xlane.xlu0 %1010
    %v1012 = vsel %vm869, %v991, -inf
    %1013 = vmax.xlane.f32.xlu0 %v1012
    %v1014 = vpop.xlane.xlu0 %1013
    %v1015 = vsel %vm869, %v994, -inf
    %1016 = vmax.xlane.f32.xlu0 %v1015
    %v1017 = vpop.xlane.xlu0 %1016
    %v1018 = vsel %vm869, %v996, -inf
    %1019 = vmax.xlane.f32.xlu0 %v1018
    %v1020 = vpop.xlane.xlu0 %1019
    %v1021 = vsel %vm869, %v999, -inf
    %1022 = vmax.xlane.f32.xlu0 %v1021
    %v1023 = vpop.xlane.xlu0 %1022
    %v1024 = vsel %vm869, %v1001, -inf
    %1025 = vmax.xlane.f32.xlu0 %v1024
    %v1026 = vpop.xlane.xlu0 %1025
    %v1027 = vsub.f32 %v984, %v1005
    %v1028 = vsub.f32 %v986, %v1008
    %v1029 = vsub.f32 %v989, %v1011
    %v1030 = vsub.f32 %v991, %v1014
    %v1031 = vsub.f32 %v994, %v1017
    %v1032 = vsub.f32 %v996, %v1020
    %v1033 = vsub.f32 %v999, %v1023
    %v1034 = vsub.f32 %v1001, %v1026
    %v1035 = vmul.f32 %v1027, 1.442695
    %v1036 = vpow.pop %v1035
    %v1037 = vmul.f32 %v1028, 1.442695
    %v1038 = vpow.pop %v1037
    %v1039 = vmul.f32 %v1029, 1.442695
    %v1040 = vpow.pop %v1039
    %v1041 = vmul.f32 %v1030, 1.442695
    %v1042 = vpow.pop %v1041
    %v1043 = vmul.f32 %v1031, 1.442695
    %v1044 = vpow.pop %v1043
    %v1045 = vmul.f32 %v1032, 1.442695
    %v1046 = vpow.pop %v1045
    %v1047 = vmul.f32 %v1033, 1.442695
    %v1048 = vpow.pop %v1047
    %v1049 = vmul.f32 %v1034, 1.442695
    %v1050 = vpow.pop %v1049
    %v1051 = vsel %vm869, %v1036, 0.0
    %1052 = vadd.xlane.f32.xlu0 %v1051
    %v1053 = vpop.xlane.xlu0 %1052
    %v1054 = vsel %vm869, %v1038, 0.0
    %1055 = vadd.xlane.f32.xlu0 %v1054
    %v1056 = vpop.xlane.xlu0 %1055
    %v1057 = vsel %vm869, %v1040, 0.0
    %1058 = vadd.xlane.f32.xlu0 %v1057
    %v1059 = vpop.xlane.xlu0 %1058
    %v1060 = vsel %vm869, %v1042, 0.0
    %1061 = vadd.xlane.f32.xlu0 %v1060
    %v1062 = vpop.xlane.xlu0 %1061
    %v1063 = vsel %vm869, %v1044, 0.0
    %1064 = vadd.xlane.f32.xlu0 %v1063
    %v1065 = vpop.xlane.xlu0 %1064
    %v1066 = vsel %vm869, %v1046, 0.0
    %1067 = vadd.xlane.f32.xlu0 %v1066
    %v1068 = vpop.xlane.xlu0 %1067
    %v1069 = vsel %vm869, %v1048, 0.0
    %1070 = vadd.xlane.f32.xlu0 %v1069
    %v1071 = vpop.xlane.xlu0 %1070
    %v1072 = vsel %vm869, %v1050, 0.0
    %1073 = vadd.xlane.f32.xlu0 %v1072
    %v1074 = vpop.xlane.xlu0 %1073
    %v1075 = vrcp.pop %v1053
    %v1076 = vrcp.pop %v1056
    %v1077 = vrcp.pop %v1059
    %v1078 = vrcp.pop %v1062
    %v1079 = vrcp.pop %v1065
    %v1080 = vrcp.pop %v1068
    %v1081 = vrcp.pop %v1071
    %v1082 = vrcp.pop %v1074
    %v1083 = vmul.f32 %v1036, %v1075
    %v1084 = vmul.f32 %v1038, %v1076
    %v1085 = vmul.f32 %v1040, %v1077
    %v1086 = vmul.f32 %v1042, %v1078
    %v1087 = vmul.f32 %v1044, %v1079
    %v1088 = vmul.f32 %v1046, %v1080
    %v1089 = vmul.f32 %v1048, %v1081
    %v1090 = vmul.f32 %v1050, %v1082
    %v1091 = vpack.c.bf16 %v1084, %v1083
    %v1092 = vpack.c.bf16 %v1086, %v1085
    %v1093 = vpack.c.bf16 %v1088, %v1087
    %v1094 = vpack.c.bf16 %v1090, %v1089
    %v1095 = vpack.c.bf16 %v786, %v784
    %v1096 = vpack.c.bf16 %v791, %v789
    %v1097 = vpack.c.bf16 %v796, %v794
    %v1098 = vpack.c.bf16 %v801, %v799
    %v1100 = vsel %vm869, %v1091, 0
    %v1103 = vsel %vm869, %v1092, 0
    %v1106 = vsel %vm869, %v1093, 0
    %v1109 = vsel %vm869, %v1094, 0
    %1111 = vmatpush.bf16.msra.mxu0 0
    %1112 = vmatpush.bf16.msra.mxu0 0
    %1113 = vmatpush.bf16.msra.mxu0 0
    %1114 = vmatpush.bf16.msra.mxu0 0
    %1115 = vmatpush.bf16.msra.mxu0 %v1098
    %1116 = vmatpush.bf16.msra.mxu0 %v1097
    %1117 = vmatpush.bf16.msra.mxu0 %v1096
    %1118 = vmatpush.bf16.msra.mxu0 %v1095
    %1119 = vmatmul.bf16.gmra.mxu0 %v1100
    %v1120 = vpop.f32.mrf.mxu0
    %v1121 = vadd.f32 0.0, %v1120
    %v1122 = vpop.f32.mrf.mxu0
    %v1123 = vadd.f32 0.0, %v1122
    %1124 = vmatmul.bf16.gmra.mxu0 %v1103
    %v1125 = vpop.f32.mrf.mxu0
    %v1126 = vadd.f32 0.0, %v1125
    %v1127 = vpop.f32.mrf.mxu0
    %v1128 = vadd.f32 0.0, %v1127
    %1129 = vmatmul.bf16.gmra.mxu0 %v1106
    %v1130 = vpop.f32.mrf.mxu0
    %v1131 = vadd.f32 0.0, %v1130
    %v1132 = vpop.f32.mrf.mxu0
    %v1133 = vadd.f32 0.0, %v1132
    %1134 = vmatmul.bf16.gmra.mxu0 %v1109
    %v1135 = vpop.f32.mrf.mxu0
    %v1136 = vadd.f32 0.0, %v1135
    %v1137 = vpop.f32.mrf.mxu0
    %v1138 = vadd.f32 0.0, %v1137
    %1139 = vdwg.mxu0
    %v1141 = vsel %vm869, %v958, 0
    %v1144 = vsel %vm869, %v959, 0
    %v1147 = vsel %vm869, %v960, 0
    %v1150 = vsel %vm869, %v961, 0
    %1152 = vmatpush.bf16.msra.mxu0 0
    %1153 = vmatpush.bf16.msra.mxu0 0
    %1154 = vmatpush.bf16.msra.mxu0 0
    %1155 = vmatpush.bf16.msra.mxu0 0
    %1156 = vmatpush.bf16.msra.mxu0 %v965
    %1157 = vmatpush.bf16.msra.mxu0 %v964
    %1158 = vmatpush.bf16.msra.mxu0 %v963
    %1159 = vmatpush.bf16.msra.mxu0 %v962
    %1160 = vmatmul.bf16.gmra.mxu0 %v1141
    %v1161 = vpop.f32.mrf.mxu0
    %v1162 = vadd.f32 %v1121, %v1161
    %v1163 = vpop.f32.mrf.mxu0
    %v1164 = vadd.f32 %v1123, %v1163
    %1165 = vmatmul.bf16.gmra.mxu0 %v1144
    %v1166 = vpop.f32.mrf.mxu0
    %v1167 = vadd.f32 %v1126, %v1166
    %v1168 = vpop.f32.mrf.mxu0
    %v1169 = vadd.f32 %v1128, %v1168
    %1170 = vmatmul.bf16.gmra.mxu0 %v1147
    %v1171 = vpop.f32.mrf.mxu0
    %v1172 = vadd.f32 %v1131, %v1171
    %v1173 = vpop.f32.mrf.mxu0
    %v1174 = vadd.f32 %v1133, %v1173
    %1175 = vmatmul.bf16.gmra.mxu0 %v1150
    %v1176 = vpop.f32.mrf.mxu0
    %v1177 = vadd.f32 %v1136, %v1176
    %v1178 = vpop.f32.mrf.mxu0
    %v1179 = vadd.f32 %v1138, %v1178
    %1180 = vdwg.mxu0
    %v1181 = vmul.f32 %v1162, %v127
    %v1182 = vmul.f32 %v1164, %v128
    %v1183 = vmul.f32 %v1167, %v129
    %v1184 = vmul.f32 %v1169, %v130
    %v1185 = vmul.f32 %v1172, %v131
    %v1186 = vmul.f32 %v1174, %v132
    %v1187 = vmul.f32 %v1177, %v133
    %v1188 = vmul.f32 %v1179, %v134
    %v1189 = vld [vmem:[#allocation10] sm:$0x1]
    %s1190 = scalar_lea.vmem [#allocation10], 1
    %v1191 = vld [vmem:[%s1190] sm:$0x1]
    %v1193 = vperm.slane %v1189, 0
    %v1195 = vmul.f32 %v1181, %v1193
    %v1196 = vmul.f32 %v1182, %v1193
    %v1197 = vmul.f32 %v1183, %v1193
    %v1198 = vmul.f32 %v1184, %v1193
    %v1199 = vmul.f32 %v1185, %v1193
    %v1200 = vmul.f32 %v1186, %v1193
    %v1201 = vmul.f32 %v1187, %v1193
    %v1202 = vmul.f32 %v1188, %v1193
    %v1204 = vperm.slane %v1191, 0
    %v1206 = vmul.f32 %v813, %v1204
    %v1207 = vmul.f32 %v815, %v1204
    %v1208 = vmul.f32 %v818, %v1204
    %v1209 = vmul.f32 %v820, %v1204
    %v1210 = vmul.f32 %v823, %v1204
    %v1211 = vmul.f32 %v825, %v1204
    %v1212 = vmul.f32 %v828, %v1204
    %v1213 = vmul.f32 %v830, %v1204
    %v1214 = vadd.f32 %v1195, %v1206
    %v1215 = vadd.f32 %v1196, %v1207
    %v1216 = vadd.f32 %v1197, %v1208
    %v1217 = vadd.f32 %v1198, %v1209
    %v1218 = vadd.f32 %v1199, %v1210
    %v1219 = vadd.f32 %v1200, %v1211
    %v1220 = vadd.f32 %v1201, %v1212
    %v1221 = vadd.f32 %v1202, %v1213
    %1222 = vadd.xlane.f32.xlu0 %v1214
    %v1223 = vpop.xlane.xlu0 %1222
    %1224 = vadd.xlane.f32.xlu0 %v1215
    %v1225 = vpop.xlane.xlu0 %1224
    %1226 = vadd.xlane.f32.xlu0 %v1216
    %v1227 = vpop.xlane.xlu0 %1226
    %1228 = vadd.xlane.f32.xlu0 %v1217
    %v1229 = vpop.xlane.xlu0 %1228
    %1230 = vadd.xlane.f32.xlu0 %v1218
    %v1231 = vpop.xlane.xlu0 %1230
    %1232 = vadd.xlane.f32.xlu0 %v1219
    %v1233 = vpop.xlane.xlu0 %1232
    %1234 = vadd.xlane.f32.xlu0 %v1220
    %v1235 = vpop.xlane.xlu0 %1234
    %1236 = vadd.xlane.f32.xlu0 %v1221
    %v1237 = vpop.xlane.xlu0 %1236
    %v1238 = vxor.u32 %v1223, 2147483648
    %v1239 = vxor.u32 %v1225, 2147483648
    %v1240 = vxor.u32 %v1227, 2147483648
    %v1241 = vxor.u32 %v1229, 2147483648
    %v1242 = vxor.u32 %v1231, 2147483648
    %v1243 = vxor.u32 %v1233, 2147483648
    %v1244 = vxor.u32 %v1235, 2147483648
    %v1245 = vxor.u32 %v1237, 2147483648
    %v1246 = vmul.f32 %v1238, 1.442695
    %v1247 = vpow.pop %v1246
    %v1248 = vmul.f32 %v1239, 1.442695
    %v1249 = vpow.pop %v1248
    %v1250 = vmul.f32 %v1240, 1.442695
    %v1251 = vpow.pop %v1250
    %v1252 = vmul.f32 %v1241, 1.442695
    %v1253 = vpow.pop %v1252
    %v1254 = vmul.f32 %v1242, 1.442695
    %v1255 = vpow.pop %v1254
    %v1256 = vmul.f32 %v1243, 1.442695
    %v1257 = vpow.pop %v1256
    %v1258 = vmul.f32 %v1244, 1.442695
    %v1259 = vpow.pop %v1258
    %v1260 = vmul.f32 %v1245, 1.442695
    %v1261 = vpow.pop %v1260
    %v1262 = vadd.f32 %v1247, 1.0
    %v1263 = vadd.f32 %v1249, 1.0
    %v1264 = vadd.f32 %v1251, 1.0
    %v1265 = vadd.f32 %v1253, 1.0
    %v1266 = vadd.f32 %v1255, 1.0
    %v1267 = vadd.f32 %v1257, 1.0
    %v1268 = vadd.f32 %v1259, 1.0
    %v1269 = vadd.f32 %v1261, 1.0
    %v1270 = vrcp.pop %v1262
    %v1271 = vmul.f32 %v1262, %v1270
    %v1272 = vsub.f32 1.0, %v1271
    %v1273 = vmul.f32 %v1270, %v1272
    %v1274 = vadd.f32 %v1270, %v1273
    %vm1275 = vweird.f32 %v1262
    %vm1276 = vweird.f32 %v1270
    %vm1277 = vmor %vm1275, %vm1276
    %v1278 = vsel %vm1277, %v1270, %v1274
    %v1279 = vand.u32 2147483647, %v1262
    %vm1280 = vcmp.eq.f32.partialorder %v1279, 8.507059e+37
    %v1281 = vand.u32 %v1262, 2147483648
    %v1282 = vor.u32 1.1754944e-38, %v1281
    %v1283 = vsel %vm1280, %v1282, %v1278
    %v1284 = vmul.f32 1.0, %v1283
    %v1285 = vrcp.pop %v1263
    %v1286 = vmul.f32 %v1263, %v1285
    %v1287 = vsub.f32 1.0, %v1286
    %v1288 = vmul.f32 %v1285, %v1287
    %v1289 = vadd.f32 %v1285, %v1288
    %vm1290 = vweird.f32 %v1263
    %vm1291 = vweird.f32 %v1285
    %vm1292 = vmor %vm1290, %vm1291
    %v1293 = vsel %vm1292, %v1285, %v1289
    %v1294 = vand.u32 2147483647, %v1263
    %vm1295 = vcmp.eq.f32.partialorder %v1294, 8.507059e+37
    %v1296 = vand.u32 %v1263, 2147483648
    %v1297 = vor.u32 1.1754944e-38, %v1296
    %v1298 = vsel %vm1295, %v1297, %v1293
    %v1299 = vmul.f32 1.0, %v1298
    %v1300 = vrcp.pop %v1264
    %v1301 = vmul.f32 %v1264, %v1300
    %v1302 = vsub.f32 1.0, %v1301
    %v1303 = vmul.f32 %v1300, %v1302
    %v1304 = vadd.f32 %v1300, %v1303
    %vm1305 = vweird.f32 %v1264
    %vm1306 = vweird.f32 %v1300
    %vm1307 = vmor %vm1305, %vm1306
    %v1308 = vsel %vm1307, %v1300, %v1304
    %v1309 = vand.u32 2147483647, %v1264
    %vm1310 = vcmp.eq.f32.partialorder %v1309, 8.507059e+37
    %v1311 = vand.u32 %v1264, 2147483648
    %v1312 = vor.u32 1.1754944e-38, %v1311
    %v1313 = vsel %vm1310, %v1312, %v1308
    %v1314 = vmul.f32 1.0, %v1313
    %v1315 = vrcp.pop %v1265
    %v1316 = vmul.f32 %v1265, %v1315
    %v1317 = vsub.f32 1.0, %v1316
    %v1318 = vmul.f32 %v1315, %v1317
    %v1319 = vadd.f32 %v1315, %v1318
    %vm1320 = vweird.f32 %v1265
    %vm1321 = vweird.f32 %v1315
    %vm1322 = vmor %vm1320, %vm1321
    %v1323 = vsel %vm1322, %v1315, %v1319
    %v1324 = vand.u32 2147483647, %v1265
    %vm1325 = vcmp.eq.f32.partialorder %v1324, 8.507059e+37
    %v1326 = vand.u32 %v1265, 2147483648
    %v1327 = vor.u32 1.1754944e-38, %v1326
    %v1328 = vsel %vm1325, %v1327, %v1323
    %v1329 = vmul.f32 1.0, %v1328
    %v1330 = vrcp.pop %v1266
    %v1331 = vmul.f32 %v1266, %v1330
    %v1332 = vsub.f32 1.0, %v1331
    %v1333 = vmul.f32 %v1330, %v1332
    %v1334 = vadd.f32 %v1330, %v1333
    %vm1335 = vweird.f32 %v1266
    %vm1336 = vweird.f32 %v1330
    %vm1337 = vmor %vm1335, %vm1336
    %v1338 = vsel %vm1337, %v1330, %v1334
    %v1339 = vand.u32 2147483647, %v1266
    %vm1340 = vcmp.eq.f32.partialorder %v1339, 8.507059e+37
    %v1341 = vand.u32 %v1266, 2147483648
    %v1342 = vor.u32 1.1754944e-38, %v1341
    %v1343 = vsel %vm1340, %v1342, %v1338
    %v1344 = vmul.f32 1.0, %v1343
    %v1345 = vrcp.pop %v1267
    %v1346 = vmul.f32 %v1267, %v1345
    %v1347 = vsub.f32 1.0, %v1346
    %v1348 = vmul.f32 %v1345, %v1347
    %v1349 = vadd.f32 %v1345, %v1348
    %vm1350 = vweird.f32 %v1267
    %vm1351 = vweird.f32 %v1345
    %vm1352 = vmor %vm1350, %vm1351
    %v1353 = vsel %vm1352, %v1345, %v1349
    %v1354 = vand.u32 2147483647, %v1267
    %vm1355 = vcmp.eq.f32.partialorder %v1354, 8.507059e+37
    %v1356 = vand.u32 %v1267, 2147483648
    %v1357 = vor.u32 1.1754944e-38, %v1356
    %v1358 = vsel %vm1355, %v1357, %v1353
    %v1359 = vmul.f32 1.0, %v1358
    %v1360 = vrcp.pop %v1268
    %v1361 = vmul.f32 %v1268, %v1360
    %v1362 = vsub.f32 1.0, %v1361
    %v1363 = vmul.f32 %v1360, %v1362
    %v1364 = vadd.f32 %v1360, %v1363
    %vm1365 = vweird.f32 %v1268
    %vm1366 = vweird.f32 %v1360
    %vm1367 = vmor %vm1365, %vm1366
    %v1368 = vsel %vm1367, %v1360, %v1364
    %v1369 = vand.u32 2147483647, %v1268
    %vm1370 = vcmp.eq.f32.partialorder %v1369, 8.507059e+37
    %v1371 = vand.u32 %v1268, 2147483648
    %v1372 = vor.u32 1.1754944e-38, %v1371
    %v1373 = vsel %vm1370, %v1372, %v1368
    %v1374 = vmul.f32 1.0, %v1373
    %v1375 = vrcp.pop %v1269
    %v1376 = vmul.f32 %v1269, %v1375
    %v1377 = vsub.f32 1.0, %v1376
    %v1378 = vmul.f32 %v1375, %v1377
    %v1379 = vadd.f32 %v1375, %v1378
    %vm1380 = vweird.f32 %v1269
    %vm1381 = vweird.f32 %v1375
    %vm1382 = vmor %vm1380, %vm1381
    %v1383 = vsel %vm1382, %v1375, %v1379
    %v1384 = vand.u32 2147483647, %v1269
    %vm1385 = vcmp.eq.f32.partialorder %v1384, 8.507059e+37
    %v1386 = vand.u32 %v1269, 2147483648
    %v1387 = vor.u32 1.1754944e-38, %v1386
    %v1388 = vsel %vm1385, %v1387, %v1383
    %v1389 = vmul.f32 1.0, %v1388
    %v1390 = vmul.f32 %v1284, %v813
    %v1391 = vmul.f32 %v1299, %v815
    %v1392 = vmul.f32 %v1314, %v818
    %v1393 = vmul.f32 %v1329, %v820
    %v1394 = vmul.f32 %v1344, %v823
    %v1395 = vmul.f32 %v1359, %v825
    %v1396 = vmul.f32 %v1374, %v828
    %v1397 = vmul.f32 %v1389, %v830
    %v1398 = vsub.f32 1.0, %v1284
    %v1399 = vsub.f32 1.0, %v1299
    %v1400 = vsub.f32 1.0, %v1314
    %v1401 = vsub.f32 1.0, %v1329
    %v1402 = vsub.f32 1.0, %v1344
    %v1403 = vsub.f32 1.0, %v1359
    %v1404 = vsub.f32 1.0, %v1374
    %v1405 = vsub.f32 1.0, %v1389
    %v1406 = vmul.f32 %v1398, %v1181
    %v1407 = vmul.f32 %v1399, %v1182
    %v1408 = vmul.f32 %v1400, %v1183
    %v1409 = vmul.f32 %v1401, %v1184
    %v1410 = vmul.f32 %v1402, %v1185
    %v1411 = vmul.f32 %v1403, %v1186
    %v1412 = vmul.f32 %v1404, %v1187
    %v1413 = vmul.f32 %v1405, %v1188
    %v1414 = vadd.f32 %v1390, %v1406
    %v1415 = vadd.f32 %v1391, %v1407
    %v1416 = vadd.f32 %v1392, %v1408
    %v1417 = vadd.f32 %v1393, %v1409
    %v1418 = vadd.f32 %v1394, %v1410
    %v1419 = vadd.f32 %v1395, %v1411
    %v1420 = vadd.f32 %v1396, %v1412
    %v1421 = vadd.f32 %v1397, %v1413
    %s1422 = scalar_lea.vmem [#allocation10], 2
    %v1423 = vld [vmem:[%s1422] sm:$0x1]
    %s1424 = scalar_lea.vmem [#allocation10], 3
    %v1425 = vld [vmem:[%s1424] sm:$0x1]
    %1426 = vadd.xlane.f32.xlu0 %v1414
    %v1427 = vpop.xlane.xlu0 %1426
    %1428 = vadd.xlane.f32.xlu0 %v1415
    %v1429 = vpop.xlane.xlu0 %1428
    %1430 = vadd.xlane.f32.xlu0 %v1416
    %v1431 = vpop.xlane.xlu0 %1430
    %1432 = vadd.xlane.f32.xlu0 %v1417
    %v1433 = vpop.xlane.xlu0 %1432
    %1434 = vadd.xlane.f32.xlu0 %v1418
    %v1435 = vpop.xlane.xlu0 %1434
    %1436 = vadd.xlane.f32.xlu0 %v1419
    %v1437 = vpop.xlane.xlu0 %1436
    %1438 = vadd.xlane.f32.xlu0 %v1420
    %v1439 = vpop.xlane.xlu0 %1438
    %1440 = vadd.xlane.f32.xlu0 %v1421
    %v1441 = vpop.xlane.xlu0 %1440
    %v1442 = vmul.f32 %v1427, 0.015625
    %v1443 = vmul.f32 %v1429, 0.015625
    %v1444 = vmul.f32 %v1431, 0.015625
    %v1445 = vmul.f32 %v1433, 0.015625
    %v1446 = vmul.f32 %v1435, 0.015625
    %v1447 = vmul.f32 %v1437, 0.015625
    %v1448 = vmul.f32 %v1439, 0.015625
    %v1449 = vmul.f32 %v1441, 0.015625
    %v1450 = vmul.f32 %v1414, %v1414
    %v1451 = vmul.f32 %v1415, %v1415
    %v1452 = vmul.f32 %v1416, %v1416
    %v1453 = vmul.f32 %v1417, %v1417
    %v1454 = vmul.f32 %v1418, %v1418
    %v1455 = vmul.f32 %v1419, %v1419
    %v1456 = vmul.f32 %v1420, %v1420
    %v1457 = vmul.f32 %v1421, %v1421
    %1458 = vadd.xlane.f32.xlu0 %v1450
    %v1459 = vpop.xlane.xlu0 %1458
    %1460 = vadd.xlane.f32.xlu0 %v1451
    %v1461 = vpop.xlane.xlu0 %1460
    %1462 = vadd.xlane.f32.xlu0 %v1452
    %v1463 = vpop.xlane.xlu0 %1462
    %1464 = vadd.xlane.f32.xlu0 %v1453
    %v1465 = vpop.xlane.xlu0 %1464
    %1466 = vadd.xlane.f32.xlu0 %v1454
    %v1467 = vpop.xlane.xlu0 %1466
    %1468 = vadd.xlane.f32.xlu0 %v1455
    %v1469 = vpop.xlane.xlu0 %1468
    %1470 = vadd.xlane.f32.xlu0 %v1456
    %v1471 = vpop.xlane.xlu0 %1470
    %1472 = vadd.xlane.f32.xlu0 %v1457
    %v1473 = vpop.xlane.xlu0 %1472
    %v1474 = vmul.f32 %v1459, 0.015625
    %v1475 = vmul.f32 %v1461, 0.015625
    %v1476 = vmul.f32 %v1463, 0.015625
    %v1477 = vmul.f32 %v1465, 0.015625
    %v1478 = vmul.f32 %v1467, 0.015625
    %v1479 = vmul.f32 %v1469, 0.015625
    %v1480 = vmul.f32 %v1471, 0.015625
    %v1481 = vmul.f32 %v1473, 0.015625
    %v1482 = vmul.f32 %v1442, %v1442
    %v1483 = vmul.f32 %v1443, %v1443
    %v1484 = vmul.f32 %v1444, %v1444
    %v1485 = vmul.f32 %v1445, %v1445
    %v1486 = vmul.f32 %v1446, %v1446
    %v1487 = vmul.f32 %v1447, %v1447
    %v1488 = vmul.f32 %v1448, %v1448
    %v1489 = vmul.f32 %v1449, %v1449
    %v1490 = vsub.f32 %v1474, %v1482
    %v1491 = vsub.f32 %v1475, %v1483
    %v1492 = vsub.f32 %v1476, %v1484
    %v1493 = vsub.f32 %v1477, %v1485
    %v1494 = vsub.f32 %v1478, %v1486
    %v1495 = vsub.f32 %v1479, %v1487
    %v1496 = vsub.f32 %v1480, %v1488
    %v1497 = vsub.f32 %v1481, %v1489
    %v1498 = vsub.f32 %v1414, %v1442
    %v1499 = vsub.f32 %v1415, %v1443
    %v1500 = vsub.f32 %v1416, %v1444
    %v1501 = vsub.f32 %v1417, %v1445
    %v1502 = vsub.f32 %v1418, %v1446
    %v1503 = vsub.f32 %v1419, %v1447
    %v1504 = vsub.f32 %v1420, %v1448
    %v1505 = vsub.f32 %v1421, %v1449
    %v1506 = vadd.f32 %v1490, 1e-05
    %v1507 = vadd.f32 %v1491, 1e-05
    %v1508 = vadd.f32 %v1492, 1e-05
    %v1509 = vadd.f32 %v1493, 1e-05
    %v1510 = vadd.f32 %v1494, 1e-05
    %v1511 = vadd.f32 %v1495, 1e-05
    %v1512 = vadd.f32 %v1496, 1e-05
    %v1513 = vadd.f32 %v1497, 1e-05
    %v1514 = vrsqrt.pop %v1506
    %v1515 = vmul.f32 %v1514, %v1506
    %v1516 = vmul.f32 %v1515, %v1514
    %v1517 = vmul.f32 0.5, %v1516
    %v1518 = vsub.f32 1.5, %v1517
    %v1519 = vmul.f32 %v1514, %v1518
    %vm1520 = vweird.f32 %v1506
    %vm1521 = vweird.f32 %v1514
    %vm1522 = vmor %vm1520, %vm1521
    %v1523 = vsel %vm1522, %v1514, %v1519
    %v1524 = vrsqrt.pop %v1507
    %v1525 = vmul.f32 %v1524, %v1507
    %v1526 = vmul.f32 %v1525, %v1524
    %v1527 = vmul.f32 0.5, %v1526
    %v1528 = vsub.f32 1.5, %v1527
    %v1529 = vmul.f32 %v1524, %v1528
    %vm1530 = vweird.f32 %v1507
    %vm1531 = vweird.f32 %v1524
    %vm1532 = vmor %vm1530, %vm1531
    %v1533 = vsel %vm1532, %v1524, %v1529
    %v1534 = vrsqrt.pop %v1508
    %v1535 = vmul.f32 %v1534, %v1508
    %v1536 = vmul.f32 %v1535, %v1534
    %v1537 = vmul.f32 0.5, %v1536
    %v1538 = vsub.f32 1.5, %v1537
    %v1539 = vmul.f32 %v1534, %v1538
    %vm1540 = vweird.f32 %v1508
    %vm1541 = vweird.f32 %v1534
    %vm1542 = vmor %vm1540, %vm1541
    %v1543 = vsel %vm1542, %v1534, %v1539
    %v1544 = vrsqrt.pop %v1509
    %v1545 = vmul.f32 %v1544, %v1509
    %v1546 = vmul.f32 %v1545, %v1544
    %v1547 = vmul.f32 0.5, %v1546
    %v1548 = vsub.f32 1.5, %v1547
    %v1549 = vmul.f32 %v1544, %v1548
    %vm1550 = vweird.f32 %v1509
    %vm1551 = vweird.f32 %v1544
    %vm1552 = vmor %vm1550, %vm1551
    %v1553 = vsel %vm1552, %v1544, %v1549
    %v1554 = vrsqrt.pop %v1510
    %v1555 = vmul.f32 %v1554, %v1510
    %v1556 = vmul.f32 %v1555, %v1554
    %v1557 = vmul.f32 0.5, %v1556
    %v1558 = vsub.f32 1.5, %v1557
    %v1559 = vmul.f32 %v1554, %v1558
    %vm1560 = vweird.f32 %v1510
    %vm1561 = vweird.f32 %v1554
    %vm1562 = vmor %vm1560, %vm1561
    %v1563 = vsel %vm1562, %v1554, %v1559
    %v1564 = vrsqrt.pop %v1511
    %v1565 = vmul.f32 %v1564, %v1511
    %v1566 = vmul.f32 %v1565, %v1564
    %v1567 = vmul.f32 0.5, %v1566
    %v1568 = vsub.f32 1.5, %v1567
    %v1569 = vmul.f32 %v1564, %v1568
    %vm1570 = vweird.f32 %v1511
    %vm1571 = vweird.f32 %v1564
    %vm1572 = vmor %vm1570, %vm1571
    %v1573 = vsel %vm1572, %v1564, %v1569
    %v1574 = vrsqrt.pop %v1512
    %v1575 = vmul.f32 %v1574, %v1512
    %v1576 = vmul.f32 %v1575, %v1574
    %v1577 = vmul.f32 0.5, %v1576
    %v1578 = vsub.f32 1.5, %v1577
    %v1579 = vmul.f32 %v1574, %v1578
    %vm1580 = vweird.f32 %v1512
    %vm1581 = vweird.f32 %v1574
    %vm1582 = vmor %vm1580, %vm1581
    %v1583 = vsel %vm1582, %v1574, %v1579
    %v1584 = vrsqrt.pop %v1513
    %v1585 = vmul.f32 %v1584, %v1513
    %v1586 = vmul.f32 %v1585, %v1584
    %v1587 = vmul.f32 0.5, %v1586
    %v1588 = vsub.f32 1.5, %v1587
    %v1589 = vmul.f32 %v1584, %v1588
    %vm1590 = vweird.f32 %v1513
    %vm1591 = vweird.f32 %v1584
    %vm1592 = vmor %vm1590, %vm1591
    %v1593 = vsel %vm1592, %v1584, %v1589
    %v1594 = vmul.f32 %v1498, %v1523
    %v1595 = vmul.f32 %v1499, %v1533
    %v1596 = vmul.f32 %v1500, %v1543
    %v1597 = vmul.f32 %v1501, %v1553
    %v1598 = vmul.f32 %v1502, %v1563
    %v1599 = vmul.f32 %v1503, %v1573
    %v1600 = vmul.f32 %v1504, %v1583
    %v1601 = vmul.f32 %v1505, %v1593
    %v1603 = vperm.slane %v1423, 0
    %v1605 = vmul.f32 %v1594, %v1603
    %v1606 = vmul.f32 %v1595, %v1603
    %v1607 = vmul.f32 %v1596, %v1603
    %v1608 = vmul.f32 %v1597, %v1603
    %v1609 = vmul.f32 %v1598, %v1603
    %v1610 = vmul.f32 %v1599, %v1603
    %v1611 = vmul.f32 %v1600, %v1603
    %v1612 = vmul.f32 %v1601, %v1603
    %v1614 = vperm.slane %v1425, 0
    %v1616 = vadd.f32 %v1605, %v1614
    %v1617 = vadd.f32 %v1606, %v1614
    %v1618 = vadd.f32 %v1607, %v1614
    %v1619 = vadd.f32 %v1608, %v1614
    %v1620 = vadd.f32 %v1609, %v1614
    %v1621 = vadd.f32 %v1610, %v1614
    %v1622 = vadd.f32 %v1611, %v1614
    %v1623 = vadd.f32 %v1612, %v1614
    %v1624 = vmax.f32 %v1616, 0.0
    %v1625 = vmax.f32 %v1617, 0.0
    %v1626 = vmax.f32 %v1618, 0.0
    %v1627 = vmax.f32 %v1619, 0.0
    %v1628 = vmax.f32 %v1620, 0.0
    %v1629 = vmax.f32 %v1621, 0.0
    %v1630 = vmax.f32 %v1622, 0.0
    %v1631 = vmax.f32 %v1623, 0.0
    %v1632 = vpack.c.bf16 %v1625, %v1624
    %v1633 = vpack.c.bf16 %v1627, %v1626
    %v1634 = vpack.c.bf16 %v1629, %v1628
    %v1635 = vpack.c.bf16 %v1631, %v1630
    %s1636 = scalar_lea.vmem [#allocation6], 448
    %v1637 = vld [vmem:[%s1636] sm:$0xff]
    %v1638 = vld [vmem:[%s1636 + $0x8] sm:$0xff]
    %v1639 = vld [vmem:[%s1636 + $0x10] sm:$0xff]
    %v1640 = vld [vmem:[%s1636 + $0x18] sm:$0xf]
    %v1641 = vld [vmem:[%s1636 + $0x1c] sm:$0xff]
    %v1642 = vld [vmem:[%s1636 + $0x24] sm:$0xff]
    %v1643 = vld [vmem:[%s1636 + $0x2c] sm:$0xff]
    %v1644 = vld [vmem:[%s1636 + $0x34] sm:$0xf]
    %v1645 = vld [vmem:[%s1636 + $0x38] sm:$0xff]
    %v1646 = vld [vmem:[%s1636 + $0x40] sm:$0xff]
    %v1647 = vld [vmem:[%s1636 + $0x48] sm:$0xff]
    %v1648 = vld [vmem:[%s1636 + $0x50] sm:$0xf]
    %v1649 = vld [vmem:[%s1636 + $0x54] sm:$0xff]
    %v1650 = vld [vmem:[%s1636 + $0x5c] sm:$0xff]
    %v1651 = vld [vmem:[%s1636 + $0x64] sm:$0xff]
    %v1652 = vld [vmem:[%s1636 + $0x6c] sm:$0xf]
    %v1653 = vld [vmem:[%s1636 + $0x70] sm:$0xff]
    %v1654 = vld [vmem:[%s1636 + $0x78] sm:$0xff]
    %v1655 = vld [vmem:[%s1636 + $0x80] sm:$0xff]
    %v1656 = vld [vmem:[%s1636 + $0x88] sm:$0xf]
    %v1657 = vld [vmem:[%s1636 + $0x8c] sm:$0xff]
    %v1658 = vld [vmem:[%s1636 + $0x94] sm:$0xff]
    %v1659 = vld [vmem:[%s1636 + $0x9c] sm:$0xff]
    %v1660 = vld [vmem:[%s1636 + $0xa4] sm:$0xf]
    %v1661 = vld [vmem:[%s1636 + $0xa8] sm:$0xff]
    %v1662 = vld [vmem:[%s1636 + $0xb0] sm:$0xff]
    %v1663 = vld [vmem:[%s1636 + $0xb8] sm:$0xff]
    %v1664 = vld [vmem:[%s1636 + $0xc0] sm:$0xf]
    %v1665 = vld [vmem:[%s1636 + $0xc4] sm:$0xff]
    %v1666 = vld [vmem:[%s1636 + $0xcc] sm:$0xff]
    %v1667 = vld [vmem:[%s1636 + $0xd4] sm:$0xff]
    %v1668 = vld [vmem:[%s1636 + $0xdc] sm:$0xf]
    %v1669 = vld [vmem:[%s1636 + $0xe0] sm:$0xff]
    %v1670 = vld [vmem:[%s1636 + $0xe8] sm:$0xff]
    %v1671 = vld [vmem:[%s1636 + $0xf0] sm:$0xff]
    %v1672 = vld [vmem:[%s1636 + $0xf8] sm:$0xf]
    %v1673 = vld [vmem:[%s1636 + $0xfc] sm:$0xff]
    %v1674 = vld [vmem:[%s1636 + $0x104] sm:$0xff]
    %v1675 = vld [vmem:[%s1636 + $0x10c] sm:$0xff]
    %v1676 = vld [vmem:[%s1636 + $0x114] sm:$0xf]
    %v1677 = vld [vmem:[%s1636 + $0x118] sm:$0xff]
    %v1678 = vld [vmem:[%s1636 + $0x120] sm:$0xff]
    %v1679 = vld [vmem:[%s1636 + $0x128] sm:$0xff]
    %v1680 = vld [vmem:[%s1636 + $0x130] sm:$0xf]
    %v1681 = vld [vmem:[%s1636 + $0x134] sm:$0xff]
    %v1682 = vld [vmem:[%s1636 + $0x13c] sm:$0xff]
    %v1683 = vld [vmem:[%s1636 + $0x144] sm:$0xff]
    %v1684 = vld [vmem:[%s1636 + $0x14c] sm:$0xf]
    %v1685 = vld [vmem:[%s1636 + $0x150] sm:$0xff]
    %v1686 = vld [vmem:[%s1636 + $0x158] sm:$0xff]
    %v1687 = vld [vmem:[%s1636 + $0x160] sm:$0xff]
    %v1688 = vld [vmem:[%s1636 + $0x168] sm:$0xf]
    %v1689 = vld [vmem:[%s1636 + $0x16c] sm:$0xff]
    %v1690 = vld [vmem:[%s1636 + $0x174] sm:$0xff]
    %v1691 = vld [vmem:[%s1636 + $0x17c] sm:$0xff]
    %v1692 = vld [vmem:[%s1636 + $0x184] sm:$0xf]
    %v1693 = vld [vmem:[%s1636 + $0x188] sm:$0xff]
    %v1694 = vld [vmem:[%s1636 + $0x190] sm:$0xff]
    %v1695 = vld [vmem:[%s1636 + $0x198] sm:$0xff]
    %v1696 = vld [vmem:[%s1636 + $0x1a0] sm:$0xf]
    %v1697 = vld [vmem:[%s1636 + $0x1a4] sm:$0xff]
    %v1698 = vld [vmem:[%s1636 + $0x1ac] sm:$0xff]
    %v1699 = vld [vmem:[%s1636 + $0x1b4] sm:$0xff]
    %v1700 = vld [vmem:[%s1636 + $0x1bc] sm:$0xf]
    %s1701 = scalar_lea.vmem [#allocation9], 7
    %v1702 = vld [vmem:[%s1701] sm:$0xff]
    %v1704 = vperm.slane %v1702, 0
    %v1705 = vperm.slane %v1702, 1
    %v1706 = vperm.slane %v1702, 2
    %v1707 = vperm.slane %v1702, 3
    %v1708 = vperm.slane %v1702, 4
    %v1709 = vperm.slane %v1702, 5
    %v1710 = vperm.slane %v1702, 6
    %v1782 = vunpack.c.l.b16 %v1637
    %v1783 = vunpack.c.h.b16 %v1637
    %v1784 = vunpack.c.l.b16 %v1638
    %v1785 = vunpack.c.h.b16 %v1638
    %v1786 = vunpack.c.l.b16 %v1639
    %v1787 = vunpack.c.h.b16 %v1639
    %v1788 = vunpack.c.l.b16 %v1640
    %v1789 = vunpack.c.l.b16 %v1641
    %v1790 = vunpack.c.h.b16 %v1641
    %v1791 = vunpack.c.l.b16 %v1642
    %v1792 = vunpack.c.h.b16 %v1642
    %v1793 = vunpack.c.l.b16 %v1643
    %v1794 = vunpack.c.h.b16 %v1643
    %v1795 = vunpack.c.l.b16 %v1644
    %v1796 = vunpack.c.l.b16 %v1645
    %v1797 = vunpack.c.h.b16 %v1645
    %v1798 = vunpack.c.l.b16 %v1646
    %v1799 = vunpack.c.h.b16 %v1646
    %v1800 = vunpack.c.l.b16 %v1647
    %v1801 = vunpack.c.h.b16 %v1647
    %v1802 = vunpack.c.l.b16 %v1648
    %v1803 = vunpack.c.l.b16 %v1649
    %v1804 = vunpack.c.h.b16 %v1649
    %v1805 = vunpack.c.l.b16 %v1650
    %v1806 = vunpack.c.h.b16 %v1650
    %v1807 = vunpack.c.l.b16 %v1651
    %v1808 = vunpack.c.h.b16 %v1651
    %v1809 = vunpack.c.l.b16 %v1652
    %v1810 = vunpack.c.l.b16 %v1653
    %v1811 = vunpack.c.h.b16 %v1653
    %v1812 = vunpack.c.l.b16 %v1654
    %v1813 = vunpack.c.h.b16 %v1654
    %v1814 = vunpack.c.l.b16 %v1655
    %v1815 = vunpack.c.h.b16 %v1655
    %v1816 = vunpack.c.l.b16 %v1656
    %v1817 = vunpack.c.l.b16 %v1657
    %v1818 = vunpack.c.h.b16 %v1657
    %v1819 = vunpack.c.l.b16 %v1658
    %v1820 = vunpack.c.h.b16 %v1658
    %v1821 = vunpack.c.l.b16 %v1659
    %v1822 = vunpack.c.h.b16 %v1659
    %v1823 = vunpack.c.l.b16 %v1660
    %v1824 = vunpack.c.l.b16 %v1661
    %v1825 = vunpack.c.h.b16 %v1661
    %v1826 = vunpack.c.l.b16 %v1662
    %v1827 = vunpack.c.h.b16 %v1662
    %v1828 = vunpack.c.l.b16 %v1663
    %v1829 = vunpack.c.h.b16 %v1663
    %v1830 = vunpack.c.l.b16 %v1664
    %v1831 = vunpack.c.l.b16 %v1665
    %v1832 = vunpack.c.h.b16 %v1665
    %v1833 = vunpack.c.l.b16 %v1666
    %v1834 = vunpack.c.h.b16 %v1666
    %v1835 = vunpack.c.l.b16 %v1667
    %v1836 = vunpack.c.h.b16 %v1667
    %v1837 = vunpack.c.l.b16 %v1668
    %v1838 = vunpack.c.l.b16 %v1669
    %v1839 = vunpack.c.h.b16 %v1669
    %v1840 = vunpack.c.l.b16 %v1670
    %v1841 = vunpack.c.h.b16 %v1670
    %v1842 = vunpack.c.l.b16 %v1671
    %v1843 = vunpack.c.h.b16 %v1671
    %v1844 = vunpack.c.l.b16 %v1672
    %v1845 = vunpack.c.l.b16 %v1673
    %v1846 = vunpack.c.h.b16 %v1673
    %v1847 = vunpack.c.l.b16 %v1674
    %v1848 = vunpack.c.h.b16 %v1674
    %v1849 = vunpack.c.l.b16 %v1675
    %v1850 = vunpack.c.h.b16 %v1675
    %v1851 = vunpack.c.l.b16 %v1676
    %v1852 = vunpack.c.l.b16 %v1677
    %v1853 = vunpack.c.h.b16 %v1677
    %v1854 = vunpack.c.l.b16 %v1678
    %v1855 = vunpack.c.h.b16 %v1678
    %v1856 = vunpack.c.l.b16 %v1679
    %v1857 = vunpack.c.h.b16 %v1679
    %v1858 = vunpack.c.l.b16 %v1680
    %v1859 = vunpack.c.l.b16 %v1681
    %v1860 = vunpack.c.h.b16 %v1681
    %v1861 = vunpack.c.l.b16 %v1682
    %v1862 = vunpack.c.h.b16 %v1682
    %v1863 = vunpack.c.l.b16 %v1683
    %v1864 = vunpack.c.h.b16 %v1683
    %v1865 = vunpack.c.l.b16 %v1684
    %v1866 = vunpack.c.l.b16 %v1685
    %v1867 = vunpack.c.h.b16 %v1685
    %v1868 = vunpack.c.l.b16 %v1686
    %v1869 = vunpack.c.h.b16 %v1686
    %v1870 = vunpack.c.l.b16 %v1687
    %v1871 = vunpack.c.h.b16 %v1687
    %v1872 = vunpack.c.l.b16 %v1688
    %v1873 = vunpack.c.l.b16 %v1689
    %v1874 = vunpack.c.h.b16 %v1689
    %v1875 = vunpack.c.l.b16 %v1690
    %v1876 = vunpack.c.h.b16 %v1690
    %v1877 = vunpack.c.l.b16 %v1691
    %v1878 = vunpack.c.h.b16 %v1691
    %v1879 = vunpack.c.l.b16 %v1692
    %v1880 = vunpack.c.l.b16 %v1693
    %v1881 = vunpack.c.h.b16 %v1693
    %v1882 = vunpack.c.l.b16 %v1694
    %v1883 = vunpack.c.h.b16 %v1694
    %v1884 = vunpack.c.l.b16 %v1695
    %v1885 = vunpack.c.h.b16 %v1695
    %v1886 = vunpack.c.l.b16 %v1696
    %v1887 = vunpack.c.l.b16 %v1697
    %v1888 = vunpack.c.h.b16 %v1697
    %v1889 = vunpack.c.l.b16 %v1698
    %v1890 = vunpack.c.h.b16 %v1698
    %v1891 = vunpack.c.l.b16 %v1699
    %v1892 = vunpack.c.h.b16 %v1699
    %v1893 = vunpack.c.l.b16 %v1700
    %v1894 = vpack.c.b16 %v1789, %v1782
    %v1895 = vpack.c.b16 %v1790, %v1783
    %v1896 = vpack.c.b16 %v1791, %v1784
    %v1897 = vpack.c.b16 %v1792, %v1785
    %v1898 = vpack.c.b16 %v1793, %v1786
    %v1899 = vpack.c.b16 %v1794, %v1787
    %v1900 = vpack.c.b16 %v1795, %v1788
    %v1901 = vpack.c.b16 %v1803, %v1796
    %v1902 = vpack.c.b16 %v1804, %v1797
    %v1903 = vpack.c.b16 %v1805, %v1798
    %v1904 = vpack.c.b16 %v1806, %v1799
    %v1905 = vpack.c.b16 %v1807, %v1800
    %v1906 = vpack.c.b16 %v1808, %v1801
    %v1907 = vpack.c.b16 %v1809, %v1802
    %v1908 = vpack.c.b16 %v1817, %v1810
    %v1909 = vpack.c.b16 %v1818, %v1811
    %v1910 = vpack.c.b16 %v1819, %v1812
    %v1911 = vpack.c.b16 %v1820, %v1813
    %v1912 = vpack.c.b16 %v1821, %v1814
    %v1913 = vpack.c.b16 %v1822, %v1815
    %v1914 = vpack.c.b16 %v1823, %v1816
    %v1915 = vpack.c.b16 %v1831, %v1824
    %v1916 = vpack.c.b16 %v1832, %v1825
    %v1917 = vpack.c.b16 %v1833, %v1826
    %v1918 = vpack.c.b16 %v1834, %v1827
    %v1919 = vpack.c.b16 %v1835, %v1828
    %v1920 = vpack.c.b16 %v1836, %v1829
    %v1921 = vpack.c.b16 %v1837, %v1830
    %v1922 = vpack.c.b16 %v1845, %v1838
    %v1923 = vpack.c.b16 %v1846, %v1839
    %v1924 = vpack.c.b16 %v1847, %v1840
    %v1925 = vpack.c.b16 %v1848, %v1841
    %v1926 = vpack.c.b16 %v1849, %v1842
    %v1927 = vpack.c.b16 %v1850, %v1843
    %v1928 = vpack.c.b16 %v1851, %v1844
    %v1929 = vpack.c.b16 %v1859, %v1852
    %v1930 = vpack.c.b16 %v1860, %v1853
    %v1931 = vpack.c.b16 %v1861, %v1854
    %v1932 = vpack.c.b16 %v1862, %v1855
    %v1933 = vpack.c.b16 %v1863, %v1856
    %v1934 = vpack.c.b16 %v1864, %v1857
    %v1935 = vpack.c.b16 %v1865, %v1858
    %v1936 = vpack.c.b16 %v1873, %v1866
    %v1937 = vpack.c.b16 %v1874, %v1867
    %v1938 = vpack.c.b16 %v1875, %v1868
    %v1939 = vpack.c.b16 %v1876, %v1869
    %v1940 = vpack.c.b16 %v1877, %v1870
    %v1941 = vpack.c.b16 %v1878, %v1871
    %v1942 = vpack.c.b16 %v1879, %v1872
    %v1943 = vpack.c.b16 %v1887, %v1880
    %v1944 = vpack.c.b16 %v1888, %v1881
    %v1945 = vpack.c.b16 %v1889, %v1882
    %v1946 = vpack.c.b16 %v1890, %v1883
    %v1947 = vpack.c.b16 %v1891, %v1884
    %v1948 = vpack.c.b16 %v1892, %v1885
    %v1949 = vpack.c.b16 %v1893, %v1886
    %2006 = vmatpush.bf16.msra.mxu0 %v1943
    %2007 = vmatpush.bf16.msra.mxu0 %v1936
    %2008 = vmatpush.bf16.msra.mxu0 %v1929
    %2009 = vmatpush.bf16.msra.mxu0 %v1922
    %2010 = vmatpush.bf16.msra.mxu0 %v1915
    %2011 = vmatpush.bf16.msra.mxu0 %v1908
    %2012 = vmatpush.bf16.msra.mxu0 %v1901
    %2013 = vmatpush.bf16.msra.mxu0 %v1894
    %2014 = vmatmul.bf16.gmra.mxu0 %v1632
    %v2015 = vpop.f32.mrf.mxu0
    %v2016 = vadd.f32 %v1704, %v2015
    %v2017 = vpop.f32.mrf.mxu0
    %v2018 = vadd.f32 %v1704, %v2017
    %2019 = vmatmul.bf16.gmra.mxu0 %v1633
    %v2020 = vpop.f32.mrf.mxu0
    %v2021 = vadd.f32 %v1704, %v2020
    %v2022 = vpop.f32.mrf.mxu0
    %v2023 = vadd.f32 %v1704, %v2022
    %2024 = vmatmul.bf16.gmra.mxu0 %v1634
    %v2025 = vpop.f32.mrf.mxu0
    %v2026 = vadd.f32 %v1704, %v2025
    %v2027 = vpop.f32.mrf.mxu0
    %v2028 = vadd.f32 %v1704, %v2027
    %2029 = vmatmul.bf16.gmra.mxu0 %v1635
    %v2030 = vpop.f32.mrf.mxu0
    %v2031 = vadd.f32 %v1704, %v2030
    %v2032 = vpop.f32.mrf.mxu0
    %v2033 = vadd.f32 %v1704, %v2032
    %2034 = vdwg.mxu0
    %2035 = vmatpush.bf16.msra.mxu0 %v1944
    %2036 = vmatpush.bf16.msra.mxu0 %v1937
    %2037 = vmatpush.bf16.msra.mxu0 %v1930
    %2038 = vmatpush.bf16.msra.mxu0 %v1923
    %2039 = vmatpush.bf16.msra.mxu0 %v1916
    %2040 = vmatpush.bf16.msra.mxu0 %v1909
    %2041 = vmatpush.bf16.msra.mxu0 %v1902
    %2042 = vmatpush.bf16.msra.mxu0 %v1895
    %2043 = vmatmul.bf16.gmra.mxu0 %v1632
    %v2044 = vpop.f32.mrf.mxu0
    %v2045 = vadd.f32 %v1705, %v2044
    %v2046 = vpop.f32.mrf.mxu0
    %v2047 = vadd.f32 %v1705, %v2046
    %2048 = vmatmul.bf16.gmra.mxu0 %v1633
    %v2049 = vpop.f32.mrf.mxu0
    %v2050 = vadd.f32 %v1705, %v2049
    %v2051 = vpop.f32.mrf.mxu0
    %v2052 = vadd.f32 %v1705, %v2051
    %2053 = vmatmul.bf16.gmra.mxu0 %v1634
    %v2054 = vpop.f32.mrf.mxu0
    %v2055 = vadd.f32 %v1705, %v2054
    %v2056 = vpop.f32.mrf.mxu0
    %v2057 = vadd.f32 %v1705, %v2056
    %2058 = vmatmul.bf16.gmra.mxu0 %v1635
    %v2059 = vpop.f32.mrf.mxu0
    %v2060 = vadd.f32 %v1705, %v2059
    %v2061 = vpop.f32.mrf.mxu0
    %v2062 = vadd.f32 %v1705, %v2061
    %2063 = vdwg.mxu0
    %2064 = vmatpush.bf16.msra.mxu0 %v1945
    %2065 = vmatpush.bf16.msra.mxu0 %v1938
    %2066 = vmatpush.bf16.msra.mxu0 %v1931
    %2067 = vmatpush.bf16.msra.mxu0 %v1924
    %2068 = vmatpush.bf16.msra.mxu0 %v1917
    %2069 = vmatpush.bf16.msra.mxu0 %v1910
    %2070 = vmatpush.bf16.msra.mxu0 %v1903
    %2071 = vmatpush.bf16.msra.mxu0 %v1896
    %2072 = vmatmul.bf16.gmra.mxu0 %v1632
    %v2073 = vpop.f32.mrf.mxu0
    %v2074 = vadd.f32 %v1706, %v2073
    %v2075 = vpop.f32.mrf.mxu0
    %v2076 = vadd.f32 %v1706, %v2075
    %2077 = vmatmul.bf16.gmra.mxu0 %v1633
    %v2078 = vpop.f32.mrf.mxu0
    %v2079 = vadd.f32 %v1706, %v2078
    %v2080 = vpop.f32.mrf.mxu0
    %v2081 = vadd.f32 %v1706, %v2080
    %2082 = vmatmul.bf16.gmra.mxu0 %v1634
    %v2083 = vpop.f32.mrf.mxu0
    %v2084 = vadd.f32 %v1706, %v2083
    %v2085 = vpop.f32.mrf.mxu0
    %v2086 = vadd.f32 %v1706, %v2085
    %2087 = vmatmul.bf16.gmra.mxu0 %v1635
    %v2088 = vpop.f32.mrf.mxu0
    %v2089 = vadd.f32 %v1706, %v2088
    %v2090 = vpop.f32.mrf.mxu0
    %v2091 = vadd.f32 %v1706, %v2090
    %2092 = vdwg.mxu0
    %2093 = vmatpush.bf16.msra.mxu0 %v1946
    %2094 = vmatpush.bf16.msra.mxu0 %v1939
    %2095 = vmatpush.bf16.msra.mxu0 %v1932
    %2096 = vmatpush.bf16.msra.mxu0 %v1925
    %2097 = vmatpush.bf16.msra.mxu0 %v1918
    %2098 = vmatpush.bf16.msra.mxu0 %v1911
    %2099 = vmatpush.bf16.msra.mxu0 %v1904
    %2100 = vmatpush.bf16.msra.mxu0 %v1897
    %2101 = vmatmul.bf16.gmra.mxu0 %v1632
    %v2102 = vpop.f32.mrf.mxu0
    %v2103 = vadd.f32 %v1707, %v2102
    %v2104 = vpop.f32.mrf.mxu0
    %v2105 = vadd.f32 %v1707, %v2104
    %2106 = vmatmul.bf16.gmra.mxu0 %v1633
    %v2107 = vpop.f32.mrf.mxu0
    %v2108 = vadd.f32 %v1707, %v2107
    %v2109 = vpop.f32.mrf.mxu0
    %v2110 = vadd.f32 %v1707, %v2109
    %2111 = vmatmul.bf16.gmra.mxu0 %v1634
    %v2112 = vpop.f32.mrf.mxu0
    %v2113 = vadd.f32 %v1707, %v2112
    %v2114 = vpop.f32.mrf.mxu0
    %v2115 = vadd.f32 %v1707, %v2114
    %2116 = vmatmul.bf16.gmra.mxu0 %v1635
    %v2117 = vpop.f32.mrf.mxu0
    %v2118 = vadd.f32 %v1707, %v2117
    %v2119 = vpop.f32.mrf.mxu0
    %v2120 = vadd.f32 %v1707, %v2119
    %2121 = vdwg.mxu0
    %2122 = vmatpush.bf16.msra.mxu0 %v1947
    %2123 = vmatpush.bf16.msra.mxu0 %v1940
    %2124 = vmatpush.bf16.msra.mxu0 %v1933
    %2125 = vmatpush.bf16.msra.mxu0 %v1926
    %2126 = vmatpush.bf16.msra.mxu0 %v1919
    %2127 = vmatpush.bf16.msra.mxu0 %v1912
    %2128 = vmatpush.bf16.msra.mxu0 %v1905
    %2129 = vmatpush.bf16.msra.mxu0 %v1898
    %2130 = vmatmul.bf16.gmra.mxu0 %v1632
    %v2131 = vpop.f32.mrf.mxu0
    %v2132 = vadd.f32 %v1708, %v2131
    %v2133 = vpop.f32.mrf.mxu0
    %v2134 = vadd.f32 %v1708, %v2133
    %2135 = vmatmul.bf16.gmra.mxu0 %v1633
    %v2136 = vpop.f32.mrf.mxu0
    %v2137 = vadd.f32 %v1708, %v2136
    %v2138 = vpop.f32.mrf.mxu0
    %v2139 = vadd.f32 %v1708, %v2138
    %2140 = vmatmul.bf16.gmra.mxu0 %v1634
    %v2141 = vpop.f32.mrf.mxu0
    %v2142 = vadd.f32 %v1708, %v2141
    %v2143 = vpop.f32.mrf.mxu0
    %v2144 = vadd.f32 %v1708, %v2143
    %2145 = vmatmul.bf16.gmra.mxu0 %v1635
    %v2146 = vpop.f32.mrf.mxu0
    %v2147 = vadd.f32 %v1708, %v2146
    %v2148 = vpop.f32.mrf.mxu0
    %v2149 = vadd.f32 %v1708, %v2148
    %2150 = vdwg.mxu0
    %2151 = vmatpush.bf16.msra.mxu0 %v1948
    %2152 = vmatpush.bf16.msra.mxu0 %v1941
    %2153 = vmatpush.bf16.msra.mxu0 %v1934
    %2154 = vmatpush.bf16.msra.mxu0 %v1927
    %2155 = vmatpush.bf16.msra.mxu0 %v1920
    %2156 = vmatpush.bf16.msra.mxu0 %v1913
    %2157 = vmatpush.bf16.msra.mxu0 %v1906
    %2158 = vmatpush.bf16.msra.mxu0 %v1899
    %2159 = vmatmul.bf16.gmra.mxu0 %v1632
    %v2160 = vpop.f32.mrf.mxu0
    %v2161 = vadd.f32 %v1709, %v2160
    %v2162 = vpop.f32.mrf.mxu0
    %v2163 = vadd.f32 %v1709, %v2162
    %2164 = vmatmul.bf16.gmra.mxu0 %v1633
    %v2165 = vpop.f32.mrf.mxu0
    %v2166 = vadd.f32 %v1709, %v2165
    %v2167 = vpop.f32.mrf.mxu0
    %v2168 = vadd.f32 %v1709, %v2167
    %2169 = vmatmul.bf16.gmra.mxu0 %v1634
    %v2170 = vpop.f32.mrf.mxu0
    %v2171 = vadd.f32 %v1709, %v2170
    %v2172 = vpop.f32.mrf.mxu0
    %v2173 = vadd.f32 %v1709, %v2172
    %2174 = vmatmul.bf16.gmra.mxu0 %v1635
    %v2175 = vpop.f32.mrf.mxu0
    %v2176 = vadd.f32 %v1709, %v2175
    %v2177 = vpop.f32.mrf.mxu0
    %v2178 = vadd.f32 %v1709, %v2177
    %2179 = vdwg.mxu0
    %2180 = vmatpush.bf16.msra.mxu0 %v1949
    %2181 = vmatpush.bf16.msra.mxu0 %v1942
    %2182 = vmatpush.bf16.msra.mxu0 %v1935
    %2183 = vmatpush.bf16.msra.mxu0 %v1928
    %2184 = vmatpush.bf16.msra.mxu0 %v1921
    %2185 = vmatpush.bf16.msra.mxu0 %v1914
    %2186 = vmatpush.bf16.msra.mxu0 %v1907
    %2187 = vmatpush.bf16.msra.mxu0 %v1900
    %2188 = vmatmul.bf16.gmra.mxu0 %v1632
    %v2189 = vpop.f32.mrf.mxu0
    %v2190 = vadd.f32 %v1710, %v2189
    %v2191 = vpop.f32.mrf.mxu0
    %v2192 = vadd.f32 %v1710, %v2191
    %2193 = vmatmul.bf16.gmra.mxu0 %v1633
    %v2194 = vpop.f32.mrf.mxu0
    %v2195 = vadd.f32 %v1710, %v2194
    %v2196 = vpop.f32.mrf.mxu0
    %v2197 = vadd.f32 %v1710, %v2196
    %2198 = vmatmul.bf16.gmra.mxu0 %v1634
    %v2199 = vpop.f32.mrf.mxu0
    %v2200 = vadd.f32 %v1710, %v2199
    %v2201 = vpop.f32.mrf.mxu0
    %v2202 = vadd.f32 %v1710, %v2201
    %2203 = vmatmul.bf16.gmra.mxu0 %v1635
    %v2204 = vpop.f32.mrf.mxu0
    %v2205 = vadd.f32 %v1710, %v2204
    %v2206 = vpop.f32.mrf.mxu0
    %v2207 = vadd.f32 %v1710, %v2206
    %2208 = vdwg.mxu0
    %v2209 = vpack.c.bf16 %v2018, %v2016
    %v2210 = vpack.c.bf16 %v2023, %v2021
    %v2211 = vpack.c.bf16 %v2028, %v2026
    %v2212 = vpack.c.bf16 %v2033, %v2031
    %v2213 = vpack.c.bf16 %v2076, %v2074
    %v2214 = vpack.c.bf16 %v2081, %v2079
    %v2215 = vpack.c.bf16 %v2086, %v2084
    %v2216 = vpack.c.bf16 %v2091, %v2089
    %2217 = vmatpush.bf16.xpose.msra.mxu0 0
    %2218 = vmatpush.bf16.xpose.msra.mxu0 0
    %2219 = vmatpush.bf16.xpose.msra.mxu0 0
    %2220 = vmatpush.bf16.xpose.msra.mxu0 0
    %2221 = vmatpush.bf16.xpose.msra.mxu0 %v2216
    %2222 = vmatpush.bf16.xpose.msra.mxu0 %v2215
    %2223 = vmatpush.bf16.xpose.msra.mxu0 %v2214
    %2224 = vmatpush.bf16.xpose.msra.mxu0 %v2213
    %2225 = vmatmul.bf16.gmra.mxu0 %v2209
    %v2226 = vpop.f32.mrf.mxu0
    %v2227 = vadd.f32 %v118, %v2226
    %v2228 = vpop.f32.mrf.mxu0
    %v2229 = vadd.f32 %v119, %v2228
    %2230 = vmatmul.bf16.gmra.mxu0 %v2210
    %v2231 = vpop.f32.mrf.mxu0
    %v2232 = vadd.f32 %v120, %v2231
    %v2233 = vpop.f32.mrf.mxu0
    %v2234 = vadd.f32 %v121, %v2233
    %2235 = vmatmul.bf16.gmra.mxu0 %v2211
    %v2236 = vpop.f32.mrf.mxu0
    %v2237 = vadd.f32 %v122, %v2236
    %v2238 = vpop.f32.mrf.mxu0
    %v2239 = vadd.f32 %v123, %v2238
    %2240 = vmatmul.bf16.gmra.mxu0 %v2212
    %v2241 = vpop.f32.mrf.mxu0
    %v2242 = vadd.f32 %v124, %v2241
    %v2243 = vpop.f32.mrf.mxu0
    %v2244 = vadd.f32 %v125, %v2243
    %2245 = vdwg.mxu0
    %v2246 = vsel %vm869, %v2227, -inf
    %2247 = vmax.xlane.f32.xlu0 %v2246
    %v2248 = vpop.xlane.xlu0 %2247
    %v2249 = vsel %vm869, %v2229, -inf
    %2250 = vmax.xlane.f32.xlu0 %v2249
    %v2251 = vpop.xlane.xlu0 %2250
    %v2252 = vsel %vm869, %v2232, -inf
    %2253 = vmax.xlane.f32.xlu0 %v2252
    %v2254 = vpop.xlane.xlu0 %2253
    %v2255 = vsel %vm869, %v2234, -inf
    %2256 = vmax.xlane.f32.xlu0 %v2255
    %v2257 = vpop.xlane.xlu0 %2256
    %v2258 = vsel %vm869, %v2237, -inf
    %2259 = vmax.xlane.f32.xlu0 %v2258
    %v2260 = vpop.xlane.xlu0 %2259
    %v2261 = vsel %vm869, %v2239, -inf
    %2262 = vmax.xlane.f32.xlu0 %v2261
    %v2263 = vpop.xlane.xlu0 %2262
    %v2264 = vsel %vm869, %v2242, -inf
    %2265 = vmax.xlane.f32.xlu0 %v2264
    %v2266 = vpop.xlane.xlu0 %2265
    %v2267 = vsel %vm869, %v2244, -inf
    %2268 = vmax.xlane.f32.xlu0 %v2267
    %v2269 = vpop.xlane.xlu0 %2268
    %v2270 = vsub.f32 %v2227, %v2248
    %v2271 = vsub.f32 %v2229, %v2251
    %v2272 = vsub.f32 %v2232, %v2254
    %v2273 = vsub.f32 %v2234, %v2257
    %v2274 = vsub.f32 %v2237, %v2260
    %v2275 = vsub.f32 %v2239, %v2263
    %v2276 = vsub.f32 %v2242, %v2266
    %v2277 = vsub.f32 %v2244, %v2269
    %v2278 = vmul.f32 %v2270, 1.442695
    %v2279 = vpow.pop %v2278
    %v2280 = vmul.f32 %v2271, 1.442695
    %v2281 = vpow.pop %v2280
    %v2282 = vmul.f32 %v2272, 1.442695
    %v2283 = vpow.pop %v2282
    %v2284 = vmul.f32 %v2273, 1.442695
    %v2285 = vpow.pop %v2284
    %v2286 = vmul.f32 %v2274, 1.442695
    %v2287 = vpow.pop %v2286
    %v2288 = vmul.f32 %v2275, 1.442695
    %v2289 = vpow.pop %v2288
    %v2290 = vmul.f32 %v2276, 1.442695
    %v2291 = vpow.pop %v2290
    %v2292 = vmul.f32 %v2277, 1.442695
    %v2293 = vpow.pop %v2292
    %v2294 = vsel %vm869, %v2279, 0.0
    %2295 = vadd.xlane.f32.xlu0 %v2294
    %v2296 = vpop.xlane.xlu0 %2295
    %v2297 = vsel %vm869, %v2281, 0.0
    %2298 = vadd.xlane.f32.xlu0 %v2297
    %v2299 = vpop.xlane.xlu0 %2298
    %v2300 = vsel %vm869, %v2283, 0.0
    %2301 = vadd.xlane.f32.xlu0 %v2300
    %v2302 = vpop.xlane.xlu0 %2301
    %v2303 = vsel %vm869, %v2285, 0.0
    %2304 = vadd.xlane.f32.xlu0 %v2303
    %v2305 = vpop.xlane.xlu0 %2304
    %v2306 = vsel %vm869, %v2287, 0.0
    %2307 = vadd.xlane.f32.xlu0 %v2306
    %v2308 = vpop.xlane.xlu0 %2307
    %v2309 = vsel %vm869, %v2289, 0.0
    %2310 = vadd.xlane.f32.xlu0 %v2309
    %v2311 = vpop.xlane.xlu0 %2310
    %v2312 = vsel %vm869, %v2291, 0.0
    %2313 = vadd.xlane.f32.xlu0 %v2312
    %v2314 = vpop.xlane.xlu0 %2313
    %v2315 = vsel %vm869, %v2293, 0.0
    %2316 = vadd.xlane.f32.xlu0 %v2315
    %v2317 = vpop.xlane.xlu0 %2316
    %v2318 = vrcp.pop %v2296
    %v2319 = vrcp.pop %v2299
    %v2320 = vrcp.pop %v2302
    %v2321 = vrcp.pop %v2305
    %v2322 = vrcp.pop %v2308
    %v2323 = vrcp.pop %v2311
    %v2324 = vrcp.pop %v2314
    %v2325 = vrcp.pop %v2317
    %v2326 = vmul.f32 %v2279, %v2318
    %v2327 = vmul.f32 %v2281, %v2319
    %v2328 = vmul.f32 %v2283, %v2320
    %v2329 = vmul.f32 %v2285, %v2321
    %v2330 = vmul.f32 %v2287, %v2322
    %v2331 = vmul.f32 %v2289, %v2323
    %v2332 = vmul.f32 %v2291, %v2324
    %v2333 = vmul.f32 %v2293, %v2325
    %v2334 = vpack.c.bf16 %v2327, %v2326
    %v2335 = vpack.c.bf16 %v2329, %v2328
    %v2336 = vpack.c.bf16 %v2331, %v2330
    %v2337 = vpack.c.bf16 %v2333, %v2332
    %v2338 = vpack.c.bf16 %v2134, %v2132
    %v2339 = vpack.c.bf16 %v2139, %v2137
    %v2340 = vpack.c.bf16 %v2144, %v2142
    %v2341 = vpack.c.bf16 %v2149, %v2147
    %v2342 = vpack.c.bf16 %v2047, %v2045
    %v2343 = vpack.c.bf16 %v2052, %v2050
    %v2344 = vpack.c.bf16 %v2057, %v2055
    %v2345 = vpack.c.bf16 %v2062, %v2060
    %v2346 = vpack.c.bf16 %v2105, %v2103
    %v2347 = vpack.c.bf16 %v2110, %v2108
    %v2348 = vpack.c.bf16 %v2115, %v2113
    %v2349 = vpack.c.bf16 %v2120, %v2118
    %2350 = vmatpush.bf16.xpose.msra.mxu0 0
    %2351 = vmatpush.bf16.xpose.msra.mxu0 0
    %2352 = vmatpush.bf16.xpose.msra.mxu0 0
    %2353 = vmatpush.bf16.xpose.msra.mxu0 0
    %2354 = vmatpush.bf16.xpose.msra.mxu0 %v2349
    %2355 = vmatpush.bf16.xpose.msra.mxu0 %v2348
    %2356 = vmatpush.bf16.xpose.msra.mxu0 %v2347
    %2357 = vmatpush.bf16.xpose.msra.mxu0 %v2346
    %2358 = vmatmul.bf16.gmra.mxu0 %v2342
    %v2359 = vpop.f32.mrf.mxu0
    %v2360 = vadd.f32 %v118, %v2359
    %v2361 = vpop.f32.mrf.mxu0
    %v2362 = vadd.f32 %v119, %v2361
    %2363 = vmatmul.bf16.gmra.mxu0 %v2343
    %v2364 = vpop.f32.mrf.mxu0
    %v2365 = vadd.f32 %v120, %v2364
    %v2366 = vpop.f32.mrf.mxu0
    %v2367 = vadd.f32 %v121, %v2366
    %2368 = vmatmul.bf16.gmra.mxu0 %v2344
    %v2369 = vpop.f32.mrf.mxu0
    %v2370 = vadd.f32 %v122, %v2369
    %v2371 = vpop.f32.mrf.mxu0
    %v2372 = vadd.f32 %v123, %v2371
    %2373 = vmatmul.bf16.gmra.mxu0 %v2345
    %v2374 = vpop.f32.mrf.mxu0
    %v2375 = vadd.f32 %v124, %v2374
    %v2376 = vpop.f32.mrf.mxu0
    %v2377 = vadd.f32 %v125, %v2376
    %2378 = vdwg.mxu0
    %v2379 = vsel %vm869, %v2360, -inf
    %2380 = vmax.xlane.f32.xlu0 %v2379
    %v2381 = vpop.xlane.xlu0 %2380
    %v2382 = vsel %vm869, %v2362, -inf
    %2383 = vmax.xlane.f32.xlu0 %v2382
    %v2384 = vpop.xlane.xlu0 %2383
    %v2385 = vsel %vm869, %v2365, -inf
    %2386 = vmax.xlane.f32.xlu0 %v2385
    %v2387 = vpop.xlane.xlu0 %2386
    %v2388 = vsel %vm869, %v2367, -inf
    %2389 = vmax.xlane.f32.xlu0 %v2388
    %v2390 = vpop.xlane.xlu0 %2389
    %v2391 = vsel %vm869, %v2370, -inf
    %2392 = vmax.xlane.f32.xlu0 %v2391
    %v2393 = vpop.xlane.xlu0 %2392
    %v2394 = vsel %vm869, %v2372, -inf
    %2395 = vmax.xlane.f32.xlu0 %v2394
    %v2396 = vpop.xlane.xlu0 %2395
    %v2397 = vsel %vm869, %v2375, -inf
    %2398 = vmax.xlane.f32.xlu0 %v2397
    %v2399 = vpop.xlane.xlu0 %2398
    %v2400 = vsel %vm869, %v2377, -inf
    %2401 = vmax.xlane.f32.xlu0 %v2400
    %v2402 = vpop.xlane.xlu0 %2401
    %v2403 = vsub.f32 %v2360, %v2381
    %v2404 = vsub.f32 %v2362, %v2384
    %v2405 = vsub.f32 %v2365, %v2387
    %v2406 = vsub.f32 %v2367, %v2390
    %v2407 = vsub.f32 %v2370, %v2393
    %v2408 = vsub.f32 %v2372, %v2396
    %v2409 = vsub.f32 %v2375, %v2399
    %v2410 = vsub.f32 %v2377, %v2402
    %v2411 = vmul.f32 %v2403, 1.442695
    %v2412 = vpow.pop %v2411
    %v2413 = vmul.f32 %v2404, 1.442695
    %v2414 = vpow.pop %v2413
    %v2415 = vmul.f32 %v2405, 1.442695
    %v2416 = vpow.pop %v2415
    %v2417 = vmul.f32 %v2406, 1.442695
    %v2418 = vpow.pop %v2417
    %v2419 = vmul.f32 %v2407, 1.442695
    %v2420 = vpow.pop %v2419
    %v2421 = vmul.f32 %v2408, 1.442695
    %v2422 = vpow.pop %v2421
    %v2423 = vmul.f32 %v2409, 1.442695
    %v2424 = vpow.pop %v2423
    %v2425 = vmul.f32 %v2410, 1.442695
    %v2426 = vpow.pop %v2425
    %v2427 = vsel %vm869, %v2412, 0.0
    %2428 = vadd.xlane.f32.xlu0 %v2427
    %v2429 = vpop.xlane.xlu0 %2428
    %v2430 = vsel %vm869, %v2414, 0.0
    %2431 = vadd.xlane.f32.xlu0 %v2430
    %v2432 = vpop.xlane.xlu0 %2431
    %v2433 = vsel %vm869, %v2416, 0.0
    %2434 = vadd.xlane.f32.xlu0 %v2433
    %v2435 = vpop.xlane.xlu0 %2434
    %v2436 = vsel %vm869, %v2418, 0.0
    %2437 = vadd.xlane.f32.xlu0 %v2436
    %v2438 = vpop.xlane.xlu0 %2437
    %v2439 = vsel %vm869, %v2420, 0.0
    %2440 = vadd.xlane.f32.xlu0 %v2439
    %v2441 = vpop.xlane.xlu0 %2440
    %v2442 = vsel %vm869, %v2422, 0.0
    %2443 = vadd.xlane.f32.xlu0 %v2442
    %v2444 = vpop.xlane.xlu0 %2443
    %v2445 = vsel %vm869, %v2424, 0.0
    %2446 = vadd.xlane.f32.xlu0 %v2445
    %v2447 = vpop.xlane.xlu0 %2446
    %v2448 = vsel %vm869, %v2426, 0.0
    %2449 = vadd.xlane.f32.xlu0 %v2448
    %v2450 = vpop.xlane.xlu0 %2449
    %v2451 = vrcp.pop %v2429
    %v2452 = vrcp.pop %v2432
    %v2453 = vrcp.pop %v2435
    %v2454 = vrcp.pop %v2438
    %v2455 = vrcp.pop %v2441
    %v2456 = vrcp.pop %v2444
    %v2457 = vrcp.pop %v2447
    %v2458 = vrcp.pop %v2450
    %v2459 = vmul.f32 %v2412, %v2451
    %v2460 = vmul.f32 %v2414, %v2452
    %v2461 = vmul.f32 %v2416, %v2453
    %v2462 = vmul.f32 %v2418, %v2454
    %v2463 = vmul.f32 %v2420, %v2455
    %v2464 = vmul.f32 %v2422, %v2456
    %v2465 = vmul.f32 %v2424, %v2457
    %v2466 = vmul.f32 %v2426, %v2458
    %v2467 = vpack.c.bf16 %v2460, %v2459
    %v2468 = vpack.c.bf16 %v2462, %v2461
    %v2469 = vpack.c.bf16 %v2464, %v2463
    %v2470 = vpack.c.bf16 %v2466, %v2465
    %v2471 = vpack.c.bf16 %v2163, %v2161
    %v2472 = vpack.c.bf16 %v2168, %v2166
    %v2473 = vpack.c.bf16 %v2173, %v2171
    %v2474 = vpack.c.bf16 %v2178, %v2176
    %v2476 = vsel %vm869, %v2467, 0
    %v2479 = vsel %vm869, %v2468, 0
    %v2482 = vsel %vm869, %v2469, 0
    %v2485 = vsel %vm869, %v2470, 0
    %2487 = vmatpush.bf16.msra.mxu0 0
    %2488 = vmatpush.bf16.msra.mxu0 0
    %2489 = vmatpush.bf16.msra.mxu0 0
    %2490 = vmatpush.bf16.msra.mxu0 0
    %2491 = vmatpush.bf16.msra.mxu0 %v2474
    %2492 = vmatpush.bf16.msra.mxu0 %v2473
    %2493 = vmatpush.bf16.msra.mxu0 %v2472
    %2494 = vmatpush.bf16.msra.mxu0 %v2471
    %2495 = vmatmul.bf16.gmra.mxu0 %v2476
    %v2496 = vpop.f32.mrf.mxu0
    %v2497 = vadd.f32 0.0, %v2496
    %v2498 = vpop.f32.mrf.mxu0
    %v2499 = vadd.f32 0.0, %v2498
    %2500 = vmatmul.bf16.gmra.mxu0 %v2479
    %v2501 = vpop.f32.mrf.mxu0
    %v2502 = vadd.f32 0.0, %v2501
    %v2503 = vpop.f32.mrf.mxu0
    %v2504 = vadd.f32 0.0, %v2503
    %2505 = vmatmul.bf16.gmra.mxu0 %v2482
    %v2506 = vpop.f32.mrf.mxu0
    %v2507 = vadd.f32 0.0, %v2506
    %v2508 = vpop.f32.mrf.mxu0
    %v2509 = vadd.f32 0.0, %v2508
    %2510 = vmatmul.bf16.gmra.mxu0 %v2485
    %v2511 = vpop.f32.mrf.mxu0
    %v2512 = vadd.f32 0.0, %v2511
    %v2513 = vpop.f32.mrf.mxu0
    %v2514 = vadd.f32 0.0, %v2513
    %2515 = vdwg.mxu0
    %v2517 = vsel %vm869, %v2334, 0
    %v2520 = vsel %vm869, %v2335, 0
    %v2523 = vsel %vm869, %v2336, 0
    %v2526 = vsel %vm869, %v2337, 0
    %2528 = vmatpush.bf16.msra.mxu0 0
    %2529 = vmatpush.bf16.msra.mxu0 0
    %2530 = vmatpush.bf16.msra.mxu0 0
    %2531 = vmatpush.bf16.msra.mxu0 0
    %2532 = vmatpush.bf16.msra.mxu0 %v2341
    %2533 = vmatpush.bf16.msra.mxu0 %v2340
    %2534 = vmatpush.bf16.msra.mxu0 %v2339
    %2535 = vmatpush.bf16.msra.mxu0 %v2338
    %2536 = vmatmul.bf16.gmra.mxu0 %v2517
    %v2537 = vpop.f32.mrf.mxu0
    %v2538 = vadd.f32 %v2497, %v2537
    %v2539 = vpop.f32.mrf.mxu0
    %v2540 = vadd.f32 %v2499, %v2539
    %2541 = vmatmul.bf16.gmra.mxu0 %v2520
    %v2542 = vpop.f32.mrf.mxu0
    %v2543 = vadd.f32 %v2502, %v2542
    %v2544 = vpop.f32.mrf.mxu0
    %v2545 = vadd.f32 %v2504, %v2544
    %2546 = vmatmul.bf16.gmra.mxu0 %v2523
    %v2547 = vpop.f32.mrf.mxu0
    %v2548 = vadd.f32 %v2507, %v2547
    %v2549 = vpop.f32.mrf.mxu0
    %v2550 = vadd.f32 %v2509, %v2549
    %2551 = vmatmul.bf16.gmra.mxu0 %v2526
    %v2552 = vpop.f32.mrf.mxu0
    %v2553 = vadd.f32 %v2512, %v2552
    %v2554 = vpop.f32.mrf.mxu0
    %v2555 = vadd.f32 %v2514, %v2554
    %2556 = vdwg.mxu0
    %v2557 = vmul.f32 %v2538, %v127
    %v2558 = vmul.f32 %v2540, %v128
    %v2559 = vmul.f32 %v2543, %v129
    %v2560 = vmul.f32 %v2545, %v130
    %v2561 = vmul.f32 %v2548, %v131
    %v2562 = vmul.f32 %v2550, %v132
    %v2563 = vmul.f32 %v2553, %v133
    %v2564 = vmul.f32 %v2555, %v134
    %s2565 = scalar_lea.vmem [#allocation10], 4
    %v2566 = vld [vmem:[%s2565] sm:$0x1]
    %s2567 = scalar_lea.vmem [#allocation10], 5
    %v2568 = vld [vmem:[%s2567] sm:$0x1]
    %v2570 = vperm.slane %v2566, 0
    %v2572 = vmul.f32 %v2557, %v2570
    %v2573 = vmul.f32 %v2558, %v2570
    %v2574 = vmul.f32 %v2559, %v2570
    %v2575 = vmul.f32 %v2560, %v2570
    %v2576 = vmul.f32 %v2561, %v2570
    %v2577 = vmul.f32 %v2562, %v2570
    %v2578 = vmul.f32 %v2563, %v2570
    %v2579 = vmul.f32 %v2564, %v2570
    %v2581 = vperm.slane %v2568, 0
    %v2583 = vmul.f32 %v2190, %v2581
    %v2584 = vmul.f32 %v2192, %v2581
    %v2585 = vmul.f32 %v2195, %v2581
    %v2586 = vmul.f32 %v2197, %v2581
    %v2587 = vmul.f32 %v2200, %v2581
    %v2588 = vmul.f32 %v2202, %v2581
    %v2589 = vmul.f32 %v2205, %v2581
    %v2590 = vmul.f32 %v2207, %v2581
    %v2591 = vadd.f32 %v2572, %v2583
    %v2592 = vadd.f32 %v2573, %v2584
    %v2593 = vadd.f32 %v2574, %v2585
    %v2594 = vadd.f32 %v2575, %v2586
    %v2595 = vadd.f32 %v2576, %v2587
    %v2596 = vadd.f32 %v2577, %v2588
    %v2597 = vadd.f32 %v2578, %v2589
    %v2598 = vadd.f32 %v2579, %v2590
    %2599 = vadd.xlane.f32.xlu0 %v2591
    %v2600 = vpop.xlane.xlu0 %2599
    %2601 = vadd.xlane.f32.xlu0 %v2592
    %v2602 = vpop.xlane.xlu0 %2601
    %2603 = vadd.xlane.f32.xlu0 %v2593
    %v2604 = vpop.xlane.xlu0 %2603
    %2605 = vadd.xlane.f32.xlu0 %v2594
    %v2606 = vpop.xlane.xlu0 %2605
    %2607 = vadd.xlane.f32.xlu0 %v2595
    %v2608 = vpop.xlane.xlu0 %2607
    %2609 = vadd.xlane.f32.xlu0 %v2596
    %v2610 = vpop.xlane.xlu0 %2609
    %2611 = vadd.xlane.f32.xlu0 %v2597
    %v2612 = vpop.xlane.xlu0 %2611
    %2613 = vadd.xlane.f32.xlu0 %v2598
    %v2614 = vpop.xlane.xlu0 %2613
    %v2615 = vxor.u32 %v2600, 2147483648
    %v2616 = vxor.u32 %v2602, 2147483648
    %v2617 = vxor.u32 %v2604, 2147483648
    %v2618 = vxor.u32 %v2606, 2147483648
    %v2619 = vxor.u32 %v2608, 2147483648
    %v2620 = vxor.u32 %v2610, 2147483648
    %v2621 = vxor.u32 %v2612, 2147483648
    %v2622 = vxor.u32 %v2614, 2147483648
    %v2623 = vmul.f32 %v2615, 1.442695
    %v2624 = vpow.pop %v2623
    %v2625 = vmul.f32 %v2616, 1.442695
    %v2626 = vpow.pop %v2625
    %v2627 = vmul.f32 %v2617, 1.442695
    %v2628 = vpow.pop %v2627
    %v2629 = vmul.f32 %v2618, 1.442695
    %v2630 = vpow.pop %v2629
    %v2631 = vmul.f32 %v2619, 1.442695
    %v2632 = vpow.pop %v2631
    %v2633 = vmul.f32 %v2620, 1.442695
    %v2634 = vpow.pop %v2633
    %v2635 = vmul.f32 %v2621, 1.442695
    %v2636 = vpow.pop %v2635
    %v2637 = vmul.f32 %v2622, 1.442695
    %v2638 = vpow.pop %v2637
    %v2639 = vadd.f32 %v2624, 1.0
    %v2640 = vadd.f32 %v2626, 1.0
    %v2641 = vadd.f32 %v2628, 1.0
    %v2642 = vadd.f32 %v2630, 1.0
    %v2643 = vadd.f32 %v2632, 1.0
    %v2644 = vadd.f32 %v2634, 1.0
    %v2645 = vadd.f32 %v2636, 1.0
    %v2646 = vadd.f32 %v2638, 1.0
    %v2647 = vrcp.pop %v2639
    %v2648 = vmul.f32 %v2639, %v2647
    %v2649 = vsub.f32 1.0, %v2648
    %v2650 = vmul.f32 %v2647, %v2649
    %v2651 = vadd.f32 %v2647, %v2650
    %vm2652 = vweird.f32 %v2639
    %vm2653 = vweird.f32 %v2647
    %vm2654 = vmor %vm2652, %vm2653
    %v2655 = vsel %vm2654, %v2647, %v2651
    %v2656 = vand.u32 2147483647, %v2639
    %vm2657 = vcmp.eq.f32.partialorder %v2656, 8.507059e+37
    %v2658 = vand.u32 %v2639, 2147483648
    %v2659 = vor.u32 1.1754944e-38, %v2658
    %v2660 = vsel %vm2657, %v2659, %v2655
    %v2661 = vmul.f32 1.0, %v2660
    %v2662 = vrcp.pop %v2640
    %v2663 = vmul.f32 %v2640, %v2662
    %v2664 = vsub.f32 1.0, %v2663
    %v2665 = vmul.f32 %v2662, %v2664
    %v2666 = vadd.f32 %v2662, %v2665
    %vm2667 = vweird.f32 %v2640
    %vm2668 = vweird.f32 %v2662
    %vm2669 = vmor %vm2667, %vm2668
    %v2670 = vsel %vm2669, %v2662, %v2666
    %v2671 = vand.u32 2147483647, %v2640
    %vm2672 = vcmp.eq.f32.partialorder %v2671, 8.507059e+37
    %v2673 = vand.u32 %v2640, 2147483648
    %v2674 = vor.u32 1.1754944e-38, %v2673
    %v2675 = vsel %vm2672, %v2674, %v2670
    %v2676 = vmul.f32 1.0, %v2675
    %v2677 = vrcp.pop %v2641
    %v2678 = vmul.f32 %v2641, %v2677
    %v2679 = vsub.f32 1.0, %v2678
    %v2680 = vmul.f32 %v2677, %v2679
    %v2681 = vadd.f32 %v2677, %v2680
    %vm2682 = vweird.f32 %v2641
    %vm2683 = vweird.f32 %v2677
    %vm2684 = vmor %vm2682, %vm2683
    %v2685 = vsel %vm2684, %v2677, %v2681
    %v2686 = vand.u32 2147483647, %v2641
    %vm2687 = vcmp.eq.f32.partialorder %v2686, 8.507059e+37
    %v2688 = vand.u32 %v2641, 2147483648
    %v2689 = vor.u32 1.1754944e-38, %v2688
    %v2690 = vsel %vm2687, %v2689, %v2685
    %v2691 = vmul.f32 1.0, %v2690
    %v2692 = vrcp.pop %v2642
    %v2693 = vmul.f32 %v2642, %v2692
    %v2694 = vsub.f32 1.0, %v2693
    %v2695 = vmul.f32 %v2692, %v2694
    %v2696 = vadd.f32 %v2692, %v2695
    %vm2697 = vweird.f32 %v2642
    %vm2698 = vweird.f32 %v2692
    %vm2699 = vmor %vm2697, %vm2698
    %v2700 = vsel %vm2699, %v2692, %v2696
    %v2701 = vand.u32 2147483647, %v2642
    %vm2702 = vcmp.eq.f32.partialorder %v2701, 8.507059e+37
    %v2703 = vand.u32 %v2642, 2147483648
    %v2704 = vor.u32 1.1754944e-38, %v2703
    %v2705 = vsel %vm2702, %v2704, %v2700
    %v2706 = vmul.f32 1.0, %v2705
    %v2707 = vrcp.pop %v2643
    %v2708 = vmul.f32 %v2643, %v2707
    %v2709 = vsub.f32 1.0, %v2708
    %v2710 = vmul.f32 %v2707, %v2709
    %v2711 = vadd.f32 %v2707, %v2710
    %vm2712 = vweird.f32 %v2643
    %vm2713 = vweird.f32 %v2707
    %vm2714 = vmor %vm2712, %vm2713
    %v2715 = vsel %vm2714, %v2707, %v2711
    %v2716 = vand.u32 2147483647, %v2643
    %vm2717 = vcmp.eq.f32.partialorder %v2716, 8.507059e+37
    %v2718 = vand.u32 %v2643, 2147483648
    %v2719 = vor.u32 1.1754944e-38, %v2718
    %v2720 = vsel %vm2717, %v2719, %v2715
    %v2721 = vmul.f32 1.0, %v2720
    %v2722 = vrcp.pop %v2644
    %v2723 = vmul.f32 %v2644, %v2722
    %v2724 = vsub.f32 1.0, %v2723
    %v2725 = vmul.f32 %v2722, %v2724
    %v2726 = vadd.f32 %v2722, %v2725
    %vm2727 = vweird.f32 %v2644
    %vm2728 = vweird.f32 %v2722
    %vm2729 = vmor %vm2727, %vm2728
    %v2730 = vsel %vm2729, %v2722, %v2726
    %v2731 = vand.u32 2147483647, %v2644
    %vm2732 = vcmp.eq.f32.partialorder %v2731, 8.507059e+37
    %v2733 = vand.u32 %v2644, 2147483648
    %v2734 = vor.u32 1.1754944e-38, %v2733
    %v2735 = vsel %vm2732, %v2734, %v2730
    %v2736 = vmul.f32 1.0, %v2735
    %v2737 = vrcp.pop %v2645
    %v2738 = vmul.f32 %v2645, %v2737
    %v2739 = vsub.f32 1.0, %v2738
    %v2740 = vmul.f32 %v2737, %v2739
    %v2741 = vadd.f32 %v2737, %v2740
    %vm2742 = vweird.f32 %v2645
    %vm2743 = vweird.f32 %v2737
    %vm2744 = vmor %vm2742, %vm2743
    %v2745 = vsel %vm2744, %v2737, %v2741
    %v2746 = vand.u32 2147483647, %v2645
    %vm2747 = vcmp.eq.f32.partialorder %v2746, 8.507059e+37
    %v2748 = vand.u32 %v2645, 2147483648
    %v2749 = vor.u32 1.1754944e-38, %v2748
    %v2750 = vsel %vm2747, %v2749, %v2745
    %v2751 = vmul.f32 1.0, %v2750
    %v2752 = vrcp.pop %v2646
    %v2753 = vmul.f32 %v2646, %v2752
    %v2754 = vsub.f32 1.0, %v2753
    %v2755 = vmul.f32 %v2752, %v2754
    %v2756 = vadd.f32 %v2752, %v2755
    %vm2757 = vweird.f32 %v2646
    %vm2758 = vweird.f32 %v2752
    %vm2759 = vmor %vm2757, %vm2758
    %v2760 = vsel %vm2759, %v2752, %v2756
    %v2761 = vand.u32 2147483647, %v2646
    %vm2762 = vcmp.eq.f32.partialorder %v2761, 8.507059e+37
    %v2763 = vand.u32 %v2646, 2147483648
    %v2764 = vor.u32 1.1754944e-38, %v2763
    %v2765 = vsel %vm2762, %v2764, %v2760
    %v2766 = vmul.f32 1.0, %v2765
    %v2767 = vmul.f32 %v2661, %v2190
    %v2768 = vmul.f32 %v2676, %v2192
    %v2769 = vmul.f32 %v2691, %v2195
    %v2770 = vmul.f32 %v2706, %v2197
    %v2771 = vmul.f32 %v2721, %v2200
    %v2772 = vmul.f32 %v2736, %v2202
    %v2773 = vmul.f32 %v2751, %v2205
    %v2774 = vmul.f32 %v2766, %v2207
    %v2775 = vsub.f32 1.0, %v2661
    %v2776 = vsub.f32 1.0, %v2676
    %v2777 = vsub.f32 1.0, %v2691
    %v2778 = vsub.f32 1.0, %v2706
    %v2779 = vsub.f32 1.0, %v2721
    %v2780 = vsub.f32 1.0, %v2736
    %v2781 = vsub.f32 1.0, %v2751
    %v2782 = vsub.f32 1.0, %v2766
    %v2783 = vmul.f32 %v2775, %v2557
    %v2784 = vmul.f32 %v2776, %v2558
    %v2785 = vmul.f32 %v2777, %v2559
    %v2786 = vmul.f32 %v2778, %v2560
    %v2787 = vmul.f32 %v2779, %v2561
    %v2788 = vmul.f32 %v2780, %v2562
    %v2789 = vmul.f32 %v2781, %v2563
    %v2790 = vmul.f32 %v2782, %v2564
    %v2791 = vadd.f32 %v2767, %v2783
    %v2792 = vadd.f32 %v2768, %v2784
    %v2793 = vadd.f32 %v2769, %v2785
    %v2794 = vadd.f32 %v2770, %v2786
    %v2795 = vadd.f32 %v2771, %v2787
    %v2796 = vadd.f32 %v2772, %v2788
    %v2797 = vadd.f32 %v2773, %v2789
    %v2798 = vadd.f32 %v2774, %v2790
    %s2799 = scalar_lea.vmem [#allocation10], 6
    %v2800 = vld [vmem:[%s2799] sm:$0x1]
    %s2801 = scalar_lea.vmem [#allocation10], 7
    %v2802 = vld [vmem:[%s2801] sm:$0x1]
    %2803 = vadd.xlane.f32.xlu0 %v2791
    %v2804 = vpop.xlane.xlu0 %2803
    %2805 = vadd.xlane.f32.xlu0 %v2792
    %v2806 = vpop.xlane.xlu0 %2805
    %2807 = vadd.xlane.f32.xlu0 %v2793
    %v2808 = vpop.xlane.xlu0 %2807
    %2809 = vadd.xlane.f32.xlu0 %v2794
    %v2810 = vpop.xlane.xlu0 %2809
    %2811 = vadd.xlane.f32.xlu0 %v2795
    %v2812 = vpop.xlane.xlu0 %2811
    %2813 = vadd.xlane.f32.xlu0 %v2796
    %v2814 = vpop.xlane.xlu0 %2813
    %2815 = vadd.xlane.f32.xlu0 %v2797
    %v2816 = vpop.xlane.xlu0 %2815
    %2817 = vadd.xlane.f32.xlu0 %v2798
    %v2818 = vpop.xlane.xlu0 %2817
    %v2819 = vmul.f32 %v2804, 0.015625
    %v2820 = vmul.f32 %v2806, 0.015625
    %v2821 = vmul.f32 %v2808, 0.015625
    %v2822 = vmul.f32 %v2810, 0.015625
    %v2823 = vmul.f32 %v2812, 0.015625
    %v2824 = vmul.f32 %v2814, 0.015625
    %v2825 = vmul.f32 %v2816, 0.015625
    %v2826 = vmul.f32 %v2818, 0.015625
    %v2827 = vmul.f32 %v2791, %v2791
    %v2828 = vmul.f32 %v2792, %v2792
    %v2829 = vmul.f32 %v2793, %v2793
    %v2830 = vmul.f32 %v2794, %v2794
    %v2831 = vmul.f32 %v2795, %v2795
    %v2832 = vmul.f32 %v2796, %v2796
    %v2833 = vmul.f32 %v2797, %v2797
    %v2834 = vmul.f32 %v2798, %v2798
    %2835 = vadd.xlane.f32.xlu0 %v2827
    %v2836 = vpop.xlane.xlu0 %2835
    %2837 = vadd.xlane.f32.xlu0 %v2828
    %v2838 = vpop.xlane.xlu0 %2837
    %2839 = vadd.xlane.f32.xlu0 %v2829
    %v2840 = vpop.xlane.xlu0 %2839
    %2841 = vadd.xlane.f32.xlu0 %v2830
    %v2842 = vpop.xlane.xlu0 %2841
    %2843 = vadd.xlane.f32.xlu0 %v2831
    %v2844 = vpop.xlane.xlu0 %2843
    %2845 = vadd.xlane.f32.xlu0 %v2832
    %v2846 = vpop.xlane.xlu0 %2845
    %2847 = vadd.xlane.f32.xlu0 %v2833
    %v2848 = vpop.xlane.xlu0 %2847
    %2849 = vadd.xlane.f32.xlu0 %v2834
    %v2850 = vpop.xlane.xlu0 %2849
    %v2851 = vmul.f32 %v2836, 0.015625
    %v2852 = vmul.f32 %v2838, 0.015625
    %v2853 = vmul.f32 %v2840, 0.015625
    %v2854 = vmul.f32 %v2842, 0.015625
    %v2855 = vmul.f32 %v2844, 0.015625
    %v2856 = vmul.f32 %v2846, 0.015625
    %v2857 = vmul.f32 %v2848, 0.015625
    %v2858 = vmul.f32 %v2850, 0.015625
    %v2859 = vmul.f32 %v2819, %v2819
    %v2860 = vmul.f32 %v2820, %v2820
    %v2861 = vmul.f32 %v2821, %v2821
    %v2862 = vmul.f32 %v2822, %v2822
    %v2863 = vmul.f32 %v2823, %v2823
    %v2864 = vmul.f32 %v2824, %v2824
    %v2865 = vmul.f32 %v2825, %v2825
    %v2866 = vmul.f32 %v2826, %v2826
    %v2867 = vsub.f32 %v2851, %v2859
    %v2868 = vsub.f32 %v2852, %v2860
    %v2869 = vsub.f32 %v2853, %v2861
    %v2870 = vsub.f32 %v2854, %v2862
    %v2871 = vsub.f32 %v2855, %v2863
    %v2872 = vsub.f32 %v2856, %v2864
    %v2873 = vsub.f32 %v2857, %v2865
    %v2874 = vsub.f32 %v2858, %v2866
    %v2875 = vsub.f32 %v2791, %v2819
    %v2876 = vsub.f32 %v2792, %v2820
    %v2877 = vsub.f32 %v2793, %v2821
    %v2878 = vsub.f32 %v2794, %v2822
    %v2879 = vsub.f32 %v2795, %v2823
    %v2880 = vsub.f32 %v2796, %v2824
    %v2881 = vsub.f32 %v2797, %v2825
    %v2882 = vsub.f32 %v2798, %v2826
    %v2883 = vadd.f32 %v2867, 1e-05
    %v2884 = vadd.f32 %v2868, 1e-05
    %v2885 = vadd.f32 %v2869, 1e-05
    %v2886 = vadd.f32 %v2870, 1e-05
    %v2887 = vadd.f32 %v2871, 1e-05
    %v2888 = vadd.f32 %v2872, 1e-05
    %v2889 = vadd.f32 %v2873, 1e-05
    %v2890 = vadd.f32 %v2874, 1e-05
    %v2891 = vrsqrt.pop %v2883
    %v2892 = vmul.f32 %v2891, %v2883
    %v2893 = vmul.f32 %v2892, %v2891
    %v2894 = vmul.f32 0.5, %v2893
    %v2895 = vsub.f32 1.5, %v2894
    %v2896 = vmul.f32 %v2891, %v2895
    %vm2897 = vweird.f32 %v2883
    %vm2898 = vweird.f32 %v2891
    %vm2899 = vmor %vm2897, %vm2898
    %v2900 = vsel %vm2899, %v2891, %v2896
    %v2901 = vrsqrt.pop %v2884
    %v2902 = vmul.f32 %v2901, %v2884
    %v2903 = vmul.f32 %v2902, %v2901
    %v2904 = vmul.f32 0.5, %v2903
    %v2905 = vsub.f32 1.5, %v2904
    %v2906 = vmul.f32 %v2901, %v2905
    %vm2907 = vweird.f32 %v2884
    %vm2908 = vweird.f32 %v2901
    %vm2909 = vmor %vm2907, %vm2908
    %v2910 = vsel %vm2909, %v2901, %v2906
    %v2911 = vrsqrt.pop %v2885
    %v2912 = vmul.f32 %v2911, %v2885
    %v2913 = vmul.f32 %v2912, %v2911
    %v2914 = vmul.f32 0.5, %v2913
    %v2915 = vsub.f32 1.5, %v2914
    %v2916 = vmul.f32 %v2911, %v2915
    %vm2917 = vweird.f32 %v2885
    %vm2918 = vweird.f32 %v2911
    %vm2919 = vmor %vm2917, %vm2918
    %v2920 = vsel %vm2919, %v2911, %v2916
    %v2921 = vrsqrt.pop %v2886
    %v2922 = vmul.f32 %v2921, %v2886
    %v2923 = vmul.f32 %v2922, %v2921
    %v2924 = vmul.f32 0.5, %v2923
    %v2925 = vsub.f32 1.5, %v2924
    %v2926 = vmul.f32 %v2921, %v2925
    %vm2927 = vweird.f32 %v2886
    %vm2928 = vweird.f32 %v2921
    %vm2929 = vmor %vm2927, %vm2928
    %v2930 = vsel %vm2929, %v2921, %v2926
    %v2931 = vrsqrt.pop %v2887
    %v2932 = vmul.f32 %v2931, %v2887
    %v2933 = vmul.f32 %v2932, %v2931
    %v2934 = vmul.f32 0.5, %v2933
    %v2935 = vsub.f32 1.5, %v2934
    %v2936 = vmul.f32 %v2931, %v2935
    %vm2937 = vweird.f32 %v2887
    %vm2938 = vweird.f32 %v2931
    %vm2939 = vmor %vm2937, %vm2938
    %v2940 = vsel %vm2939, %v2931, %v2936
    %v2941 = vrsqrt.pop %v2888
    %v2942 = vmul.f32 %v2941, %v2888
    %v2943 = vmul.f32 %v2942, %v2941
    %v2944 = vmul.f32 0.5, %v2943
    %v2945 = vsub.f32 1.5, %v2944
    %v2946 = vmul.f32 %v2941, %v2945
    %vm2947 = vweird.f32 %v2888
    %vm2948 = vweird.f32 %v2941
    %vm2949 = vmor %vm2947, %vm2948
    %v2950 = vsel %vm2949, %v2941, %v2946
    %v2951 = vrsqrt.pop %v2889
    %v2952 = vmul.f32 %v2951, %v2889
    %v2953 = vmul.f32 %v2952, %v2951
    %v2954 = vmul.f32 0.5, %v2953
    %v2955 = vsub.f32 1.5, %v2954
    %v2956 = vmul.f32 %v2951, %v2955
    %vm2957 = vweird.f32 %v2889
    %vm2958 = vweird.f32 %v2951
    %vm2959 = vmor %vm2957, %vm2958
    %v2960 = vsel %vm2959, %v2951, %v2956
    %v2961 = vrsqrt.pop %v2890
    %v2962 = vmul.f32 %v2961, %v2890
    %v2963 = vmul.f32 %v2962, %v2961
    %v2964 = vmul.f32 0.5, %v2963
    %v2965 = vsub.f32 1.5, %v2964
    %v2966 = vmul.f32 %v2961, %v2965
    %vm2967 = vweird.f32 %v2890
    %vm2968 = vweird.f32 %v2961
    %vm2969 = vmor %vm2967, %vm2968
    %v2970 = vsel %vm2969, %v2961, %v2966
    %v2971 = vmul.f32 %v2875, %v2900
    %v2972 = vmul.f32 %v2876, %v2910
    %v2973 = vmul.f32 %v2877, %v2920
    %v2974 = vmul.f32 %v2878, %v2930
    %v2975 = vmul.f32 %v2879, %v2940
    %v2976 = vmul.f32 %v2880, %v2950
    %v2977 = vmul.f32 %v2881, %v2960
    %v2978 = vmul.f32 %v2882, %v2970
    %v2980 = vperm.slane %v2800, 0
    %v2982 = vmul.f32 %v2971, %v2980
    %v2983 = vmul.f32 %v2972, %v2980
    %v2984 = vmul.f32 %v2973, %v2980
    %v2985 = vmul.f32 %v2974, %v2980
    %v2986 = vmul.f32 %v2975, %v2980
    %v2987 = vmul.f32 %v2976, %v2980
    %v2988 = vmul.f32 %v2977, %v2980
    %v2989 = vmul.f32 %v2978, %v2980
    %v2991 = vperm.slane %v2802, 0
    %v2993 = vadd.f32 %v2982, %v2991
    %v2994 = vadd.f32 %v2983, %v2991
    %v2995 = vadd.f32 %v2984, %v2991
    %v2996 = vadd.f32 %v2985, %v2991
    %v2997 = vadd.f32 %v2986, %v2991
    %v2998 = vadd.f32 %v2987, %v2991
    %v2999 = vadd.f32 %v2988, %v2991
    %v3000 = vadd.f32 %v2989, %v2991
    %v3001 = vmax.f32 %v2993, 0.0
    %v3002 = vmax.f32 %v2994, 0.0
    %v3003 = vmax.f32 %v2995, 0.0
    %v3004 = vmax.f32 %v2996, 0.0
    %v3005 = vmax.f32 %v2997, 0.0
    %v3006 = vmax.f32 %v2998, 0.0
    %v3007 = vmax.f32 %v2999, 0.0
    %v3008 = vmax.f32 %v3000, 0.0
    %v3009 = vpack.c.bf16 %v3002, %v3001
    %v3010 = vpack.c.bf16 %v3004, %v3003
    %v3011 = vpack.c.bf16 %v3006, %v3005
    %v3012 = vpack.c.bf16 %v3008, %v3007
    %s3013 = scalar_lea.vmem [#allocation6], 896
    %v3014 = vld [vmem:[%s3013] sm:$0xff]
    %v3015 = vld [vmem:[%s3013 + $0x8] sm:$0xff]
    %v3016 = vld [vmem:[%s3013 + $0x10] sm:$0xff]
    %v3017 = vld [vmem:[%s3013 + $0x18] sm:$0xf]
    %v3018 = vld [vmem:[%s3013 + $0x1c] sm:$0xff]
    %v3019 = vld [vmem:[%s3013 + $0x24] sm:$0xff]
    %v3020 = vld [vmem:[%s3013 + $0x2c] sm:$0xff]
    %v3021 = vld [vmem:[%s3013 + $0x34] sm:$0xf]
    %v3022 = vld [vmem:[%s3013 + $0x38] sm:$0xff]
    %v3023 = vld [vmem:[%s3013 + $0x40] sm:$0xff]
    %v3024 = vld [vmem:[%s3013 + $0x48] sm:$0xff]
    %v3025 = vld [vmem:[%s3013 + $0x50] sm:$0xf]
    %v3026 = vld [vmem:[%s3013 + $0x54] sm:$0xff]
    %v3027 = vld [vmem:[%s3013 + $0x5c] sm:$0xff]
    %v3028 = vld [vmem:[%s3013 + $0x64] sm:$0xff]
    %v3029 = vld [vmem:[%s3013 + $0x6c] sm:$0xf]
    %v3030 = vld [vmem:[%s3013 + $0x70] sm:$0xff]
    %v3031 = vld [vmem:[%s3013 + $0x78] sm:$0xff]
    %v3032 = vld [vmem:[%s3013 + $0x80] sm:$0xff]
    %v3033 = vld [vmem:[%s3013 + $0x88] sm:$0xf]
    %v3034 = vld [vmem:[%s3013 + $0x8c] sm:$0xff]
    %v3035 = vld [vmem:[%s3013 + $0x94] sm:$0xff]
    %v3036 = vld [vmem:[%s3013 + $0x9c] sm:$0xff]
    %v3037 = vld [vmem:[%s3013 + $0xa4] sm:$0xf]
    %v3038 = vld [vmem:[%s3013 + $0xa8] sm:$0xff]
    %v3039 = vld [vmem:[%s3013 + $0xb0] sm:$0xff]
    %v3040 = vld [vmem:[%s3013 + $0xb8] sm:$0xff]
    %v3041 = vld [vmem:[%s3013 + $0xc0] sm:$0xf]
    %v3042 = vld [vmem:[%s3013 + $0xc4] sm:$0xff]
    %v3043 = vld [vmem:[%s3013 + $0xcc] sm:$0xff]
    %v3044 = vld [vmem:[%s3013 + $0xd4] sm:$0xff]
    %v3045 = vld [vmem:[%s3013 + $0xdc] sm:$0xf]
    %v3046 = vld [vmem:[%s3013 + $0xe0] sm:$0xff]
    %v3047 = vld [vmem:[%s3013 + $0xe8] sm:$0xff]
    %v3048 = vld [vmem:[%s3013 + $0xf0] sm:$0xff]
    %v3049 = vld [vmem:[%s3013 + $0xf8] sm:$0xf]
    %v3050 = vld [vmem:[%s3013 + $0xfc] sm:$0xff]
    %v3051 = vld [vmem:[%s3013 + $0x104] sm:$0xff]
    %v3052 = vld [vmem:[%s3013 + $0x10c] sm:$0xff]
    %v3053 = vld [vmem:[%s3013 + $0x114] sm:$0xf]
    %v3054 = vld [vmem:[%s3013 + $0x118] sm:$0xff]
    %v3055 = vld [vmem:[%s3013 + $0x120] sm:$0xff]
    %v3056 = vld [vmem:[%s3013 + $0x128] sm:$0xff]
    %v3057 = vld [vmem:[%s3013 + $0x130] sm:$0xf]
    %v3058 = vld [vmem:[%s3013 + $0x134] sm:$0xff]
    %v3059 = vld [vmem:[%s3013 + $0x13c] sm:$0xff]
    %v3060 = vld [vmem:[%s3013 + $0x144] sm:$0xff]
    %v3061 = vld [vmem:[%s3013 + $0x14c] sm:$0xf]
    %v3062 = vld [vmem:[%s3013 + $0x150] sm:$0xff]
    %v3063 = vld [vmem:[%s3013 + $0x158] sm:$0xff]
    %v3064 = vld [vmem:[%s3013 + $0x160] sm:$0xff]
    %v3065 = vld [vmem:[%s3013 + $0x168] sm:$0xf]
    %v3066 = vld [vmem:[%s3013 + $0x16c] sm:$0xff]
    %v3067 = vld [vmem:[%s3013 + $0x174] sm:$0xff]
    %v3068 = vld [vmem:[%s3013 + $0x17c] sm:$0xff]
    %v3069 = vld [vmem:[%s3013 + $0x184] sm:$0xf]
    %v3070 = vld [vmem:[%s3013 + $0x188] sm:$0xff]
    %v3071 = vld [vmem:[%s3013 + $0x190] sm:$0xff]
    %v3072 = vld [vmem:[%s3013 + $0x198] sm:$0xff]
    %v3073 = vld [vmem:[%s3013 + $0x1a0] sm:$0xf]
    %v3074 = vld [vmem:[%s3013 + $0x1a4] sm:$0xff]
    %v3075 = vld [vmem:[%s3013 + $0x1ac] sm:$0xff]
    %v3076 = vld [vmem:[%s3013 + $0x1b4] sm:$0xff]
    %v3077 = vld [vmem:[%s3013 + $0x1bc] sm:$0xf]
    %s3078 = scalar_lea.vmem [#allocation9], 14
    %v3079 = vld [vmem:[%s3078] sm:$0xff]
    %v3081 = vperm.slane %v3079, 0
    %v3082 = vperm.slane %v3079, 1
    %v3083 = vperm.slane %v3079, 2
    %v3084 = vperm.slane %v3079, 3
    %v3085 = vperm.slane %v3079, 4
    %v3086 = vperm.slane %v3079, 5
    %v3087 = vperm.slane %v3079, 6
    %v3159 = vunpack.c.l.b16 %v3014
    %v3160 = vunpack.c.h.b16 %v3014
    %v3161 = vunpack.c.l.b16 %v3015
    %v3162 = vunpack.c.h.b16 %v3015
    %v3163 = vunpack.c.l.b16 %v3016
    %v3164 = vunpack.c.h.b16 %v3016
    %v3165 = vunpack.c.l.b16 %v3017
    %v3166 = vunpack.c.l.b16 %v3018
    %v3167 = vunpack.c.h.b16 %v3018
    %v3168 = vunpack.c.l.b16 %v3019
    %v3169 = vunpack.c.h.b16 %v3019
    %v3170 = vunpack.c.l.b16 %v3020
    %v3171 = vunpack.c.h.b16 %v3020
    %v3172 = vunpack.c.l.b16 %v3021
    %v3173 = vunpack.c.l.b16 %v3022
    %v3174 = vunpack.c.h.b16 %v3022
    %v3175 = vunpack.c.l.b16 %v3023
    %v3176 = vunpack.c.h.b16 %v3023
    %v3177 = vunpack.c.l.b16 %v3024
    %v3178 = vunpack.c.h.b16 %v3024
    %v3179 = vunpack.c.l.b16 %v3025
    %v3180 = vunpack.c.l.b16 %v3026
    %v3181 = vunpack.c.h.b16 %v3026
    %v3182 = vunpack.c.l.b16 %v3027
    %v3183 = vunpack.c.h.b16 %v3027
    %v3184 = vunpack.c.l.b16 %v3028
    %v3185 = vunpack.c.h.b16 %v3028
    %v3186 = vunpack.c.l.b16 %v3029
    %v3187 = vunpack.c.l.b16 %v3030
    %v3188 = vunpack.c.h.b16 %v3030
    %v3189 = vunpack.c.l.b16 %v3031
    %v3190 = vunpack.c.h.b16 %v3031
    %v3191 = vunpack.c.l.b16 %v3032
    %v3192 = vunpack.c.h.b16 %v3032
    %v3193 = vunpack.c.l.b16 %v3033
    %v3194 = vunpack.c.l.b16 %v3034
    %v3195 = vunpack.c.h.b16 %v3034
    %v3196 = vunpack.c.l.b16 %v3035
    %v3197 = vunpack.c.h.b16 %v3035
    %v3198 = vunpack.c.l.b16 %v3036
    %v3199 = vunpack.c.h.b16 %v3036
    %v3200 = vunpack.c.l.b16 %v3037
    %v3201 = vunpack.c.l.b16 %v3038
    %v3202 = vunpack.c.h.b16 %v3038
    %v3203 = vunpack.c.l.b16 %v3039
    %v3204 = vunpack.c.h.b16 %v3039
    %v3205 = vunpack.c.l.b16 %v3040
    %v3206 = vunpack.c.h.b16 %v3040
    %v3207 = vunpack.c.l.b16 %v3041
    %v3208 = vunpack.c.l.b16 %v3042
    %v3209 = vunpack.c.h.b16 %v3042
    %v3210 = vunpack.c.l.b16 %v3043
    %v3211 = vunpack.c.h.b16 %v3043
    %v3212 = vunpack.c.l.b16 %v3044
    %v3213 = vunpack.c.h.b16 %v3044
    %v3214 = vunpack.c.l.b16 %v3045
    %v3215 = vunpack.c.l.b16 %v3046
    %v3216 = vunpack.c.h.b16 %v3046
    %v3217 = vunpack.c.l.b16 %v3047
    %v3218 = vunpack.c.h.b16 %v3047
    %v3219 = vunpack.c.l.b16 %v3048
    %v3220 = vunpack.c.h.b16 %v3048
    %v3221 = vunpack.c.l.b16 %v3049
    %v3222 = vunpack.c.l.b16 %v3050
    %v3223 = vunpack.c.h.b16 %v3050
    %v3224 = vunpack.c.l.b16 %v3051
    %v3225 = vunpack.c.h.b16 %v3051
    %v3226 = vunpack.c.l.b16 %v3052
    %v3227 = vunpack.c.h.b16 %v3052
    %v3228 = vunpack.c.l.b16 %v3053
    %v3229 = vunpack.c.l.b16 %v3054
    %v3230 = vunpack.c.h.b16 %v3054
    %v3231 = vunpack.c.l.b16 %v3055
    %v3232 = vunpack.c.h.b16 %v3055
    %v3233 = vunpack.c.l.b16 %v3056
    %v3234 = vunpack.c.h.b16 %v3056
    %v3235 = vunpack.c.l.b16 %v3057
    %v3236 = vunpack.c.l.b16 %v3058
    %v3237 = vunpack.c.h.b16 %v3058
    %v3238 = vunpack.c.l.b16 %v3059
    %v3239 = vunpack.c.h.b16 %v3059
    %v3240 = vunpack.c.l.b16 %v3060
    %v3241 = vunpack.c.h.b16 %v3060
    %v3242 = vunpack.c.l.b16 %v3061
    %v3243 = vunpack.c.l.b16 %v3062
    %v3244 = vunpack.c.h.b16 %v3062
    %v3245 = vunpack.c.l.b16 %v3063
    %v3246 = vunpack.c.h.b16 %v3063
    %v3247 = vunpack.c.l.b16 %v3064
    %v3248 = vunpack.c.h.b16 %v3064
    %v3249 = vunpack.c.l.b16 %v3065
    %v3250 = vunpack.c.l.b16 %v3066
    %v3251 = vunpack.c.h.b16 %v3066
    %v3252 = vunpack.c.l.b16 %v3067
    %v3253 = vunpack.c.h.b16 %v3067
    %v3254 = vunpack.c.l.b16 %v3068
    %v3255 = vunpack.c.h.b16 %v3068
    %v3256 = vunpack.c.l.b16 %v3069
    %v3257 = vunpack.c.l.b16 %v3070
    %v3258 = vunpack.c.h.b16 %v3070
    %v3259 = vunpack.c.l.b16 %v3071
    %v3260 = vunpack.c.h.b16 %v3071
    %v3261 = vunpack.c.l.b16 %v3072
    %v3262 = vunpack.c.h.b16 %v3072
    %v3263 = vunpack.c.l.b16 %v3073
    %v3264 = vunpack.c.l.b16 %v3074
    %v3265 = vunpack.c.h.b16 %v3074
    %v3266 = vunpack.c.l.b16 %v3075
    %v3267 = vunpack.c.h.b16 %v3075
    %v3268 = vunpack.c.l.b16 %v3076
    %v3269 = vunpack.c.h.b16 %v3076
    %v3270 = vunpack.c.l.b16 %v3077
    %v3271 = vpack.c.b16 %v3166, %v3159
    %v3272 = vpack.c.b16 %v3167, %v3160
    %v3273 = vpack.c.b16 %v3168, %v3161
    %v3274 = vpack.c.b16 %v3169, %v3162
    %v3275 = vpack.c.b16 %v3170, %v3163
    %v3276 = vpack.c.b16 %v3171, %v3164
    %v3277 = vpack.c.b16 %v3172, %v3165
    %v3278 = vpack.c.b16 %v3180, %v3173
    %v3279 = vpack.c.b16 %v3181, %v3174
    %v3280 = vpack.c.b16 %v3182, %v3175
    %v3281 = vpack.c.b16 %v3183, %v3176
    %v3282 = vpack.c.b16 %v3184, %v3177
    %v3283 = vpack.c.b16 %v3185, %v3178
    %v3284 = vpack.c.b16 %v3186, %v3179
    %v3285 = vpack.c.b16 %v3194, %v3187
    %v3286 = vpack.c.b16 %v3195, %v3188
    %v3287 = vpack.c.b16 %v3196, %v3189
    %v3288 = vpack.c.b16 %v3197, %v3190
    %v3289 = vpack.c.b16 %v3198, %v3191
    %v3290 = vpack.c.b16 %v3199, %v3192
    %v3291 = vpack.c.b16 %v3200, %v3193
    %v3292 = vpack.c.b16 %v3208, %v3201
    %v3293 = vpack.c.b16 %v3209, %v3202
    %v3294 = vpack.c.b16 %v3210, %v3203
    %v3295 = vpack.c.b16 %v3211, %v3204
    %v3296 = vpack.c.b16 %v3212, %v3205
    %v3297 = vpack.c.b16 %v3213, %v3206
    %v3298 = vpack.c.b16 %v3214, %v3207
    %v3299 = vpack.c.b16 %v3222, %v3215
    %v3300 = vpack.c.b16 %v3223, %v3216
    %v3301 = vpack.c.b16 %v3224, %v3217
    %v3302 = vpack.c.b16 %v3225, %v3218
    %v3303 = vpack.c.b16 %v3226, %v3219
    %v3304 = vpack.c.b16 %v3227, %v3220
    %v3305 = vpack.c.b16 %v3228, %v3221
    %v3306 = vpack.c.b16 %v3236, %v3229
    %v3307 = vpack.c.b16 %v3237, %v3230
    %v3308 = vpack.c.b16 %v3238, %v3231
    %v3309 = vpack.c.b16 %v3239, %v3232
    %v3310 = vpack.c.b16 %v3240, %v3233
    %v3311 = vpack.c.b16 %v3241, %v3234
    %v3312 = vpack.c.b16 %v3242, %v3235
    %v3313 = vpack.c.b16 %v3250, %v3243
    %v3314 = vpack.c.b16 %v3251, %v3244
    %v3315 = vpack.c.b16 %v3252, %v3245
    %v3316 = vpack.c.b16 %v3253, %v3246
    %v3317 = vpack.c.b16 %v3254, %v3247
    %v3318 = vpack.c.b16 %v3255, %v3248
    %v3319 = vpack.c.b16 %v3256, %v3249
    %v3320 = vpack.c.b16 %v3264, %v3257
    %v3321 = vpack.c.b16 %v3265, %v3258
    %v3322 = vpack.c.b16 %v3266, %v3259
    %v3323 = vpack.c.b16 %v3267, %v3260
    %v3324 = vpack.c.b16 %v3268, %v3261
    %v3325 = vpack.c.b16 %v3269, %v3262
    %v3326 = vpack.c.b16 %v3270, %v3263
    %3383 = vmatpush.bf16.msra.mxu0 %v3320
    %3384 = vmatpush.bf16.msra.mxu0 %v3313
    %3385 = vmatpush.bf16.msra.mxu0 %v3306
    %3386 = vmatpush.bf16.msra.mxu0 %v3299
    %3387 = vmatpush.bf16.msra.mxu0 %v3292
    %3388 = vmatpush.bf16.msra.mxu0 %v3285
    %3389 = vmatpush.bf16.msra.mxu0 %v3278
    %3390 = vmatpush.bf16.msra.mxu0 %v3271
    %3391 = vmatmul.bf16.gmra.mxu0 %v3009
    %v3392 = vpop.f32.mrf.mxu0
    %v3393 = vadd.f32 %v3081, %v3392
    %v3394 = vpop.f32.mrf.mxu0
    %v3395 = vadd.f32 %v3081, %v3394
    %3396 = vmatmul.bf16.gmra.mxu0 %v3010
    %v3397 = vpop.f32.mrf.mxu0
    %v3398 = vadd.f32 %v3081, %v3397
    %v3399 = vpop.f32.mrf.mxu0
    %v3400 = vadd.f32 %v3081, %v3399
    %3401 = vmatmul.bf16.gmra.mxu0 %v3011
    %v3402 = vpop.f32.mrf.mxu0
    %v3403 = vadd.f32 %v3081, %v3402
    %v3404 = vpop.f32.mrf.mxu0
    %v3405 = vadd.f32 %v3081, %v3404
    %3406 = vmatmul.bf16.gmra.mxu0 %v3012
    %v3407 = vpop.f32.mrf.mxu0
    %v3408 = vadd.f32 %v3081, %v3407
    %v3409 = vpop.f32.mrf.mxu0
    %v3410 = vadd.f32 %v3081, %v3409
    %3411 = vdwg.mxu0
    %3412 = vmatpush.bf16.msra.mxu0 %v3321
    %3413 = vmatpush.bf16.msra.mxu0 %v3314
    %3414 = vmatpush.bf16.msra.mxu0 %v3307
    %3415 = vmatpush.bf16.msra.mxu0 %v3300
    %3416 = vmatpush.bf16.msra.mxu0 %v3293
    %3417 = vmatpush.bf16.msra.mxu0 %v3286
    %3418 = vmatpush.bf16.msra.mxu0 %v3279
    %3419 = vmatpush.bf16.msra.mxu0 %v3272
    %3420 = vmatmul.bf16.gmra.mxu0 %v3009
    %v3421 = vpop.f32.mrf.mxu0
    %v3422 = vadd.f32 %v3082, %v3421
    %v3423 = vpop.f32.mrf.mxu0
    %v3424 = vadd.f32 %v3082, %v3423
    %3425 = vmatmul.bf16.gmra.mxu0 %v3010
    %v3426 = vpop.f32.mrf.mxu0
    %v3427 = vadd.f32 %v3082, %v3426
    %v3428 = vpop.f32.mrf.mxu0
    %v3429 = vadd.f32 %v3082, %v3428
    %3430 = vmatmul.bf16.gmra.mxu0 %v3011
    %v3431 = vpop.f32.mrf.mxu0
    %v3432 = vadd.f32 %v3082, %v3431
    %v3433 = vpop.f32.mrf.mxu0
    %v3434 = vadd.f32 %v3082, %v3433
    %3435 = vmatmul.bf16.gmra.mxu0 %v3012
    %v3436 = vpop.f32.mrf.mxu0
    %v3437 = vadd.f32 %v3082, %v3436
    %v3438 = vpop.f32.mrf.mxu0
    %v3439 = vadd.f32 %v3082, %v3438
    %3440 = vdwg.mxu0
    %3441 = vmatpush.bf16.msra.mxu0 %v3322
    %3442 = vmatpush.bf16.msra.mxu0 %v3315
    %3443 = vmatpush.bf16.msra.mxu0 %v3308
    %3444 = vmatpush.bf16.msra.mxu0 %v3301
    %3445 = vmatpush.bf16.msra.mxu0 %v3294
    %3446 = vmatpush.bf16.msra.mxu0 %v3287
    %3447 = vmatpush.bf16.msra.mxu0 %v3280
    %3448 = vmatpush.bf16.msra.mxu0 %v3273
    %3449 = vmatmul.bf16.gmra.mxu0 %v3009
    %v3450 = vpop.f32.mrf.mxu0
    %v3451 = vadd.f32 %v3083, %v3450
    %v3452 = vpop.f32.mrf.mxu0
    %v3453 = vadd.f32 %v3083, %v3452
    %3454 = vmatmul.bf16.gmra.mxu0 %v3010
    %v3455 = vpop.f32.mrf.mxu0
    %v3456 = vadd.f32 %v3083, %v3455
    %v3457 = vpop.f32.mrf.mxu0
    %v3458 = vadd.f32 %v3083, %v3457
    %3459 = vmatmul.bf16.gmra.mxu0 %v3011
    %v3460 = vpop.f32.mrf.mxu0
    %v3461 = vadd.f32 %v3083, %v3460
    %v3462 = vpop.f32.mrf.mxu0
    %v3463 = vadd.f32 %v3083, %v3462
    %3464 = vmatmul.bf16.gmra.mxu0 %v3012
    %v3465 = vpop.f32.mrf.mxu0
    %v3466 = vadd.f32 %v3083, %v3465
    %v3467 = vpop.f32.mrf.mxu0
    %v3468 = vadd.f32 %v3083, %v3467
    %3469 = vdwg.mxu0
    %3470 = vmatpush.bf16.msra.mxu0 %v3323
    %3471 = vmatpush.bf16.msra.mxu0 %v3316
    %3472 = vmatpush.bf16.msra.mxu0 %v3309
    %3473 = vmatpush.bf16.msra.mxu0 %v3302
    %3474 = vmatpush.bf16.msra.mxu0 %v3295
    %3475 = vmatpush.bf16.msra.mxu0 %v3288
    %3476 = vmatpush.bf16.msra.mxu0 %v3281
    %3477 = vmatpush.bf16.msra.mxu0 %v3274
    %3478 = vmatmul.bf16.gmra.mxu0 %v3009
    %v3479 = vpop.f32.mrf.mxu0
    %v3480 = vadd.f32 %v3084, %v3479
    %v3481 = vpop.f32.mrf.mxu0
    %v3482 = vadd.f32 %v3084, %v3481
    %3483 = vmatmul.bf16.gmra.mxu0 %v3010
    %v3484 = vpop.f32.mrf.mxu0
    %v3485 = vadd.f32 %v3084, %v3484
    %v3486 = vpop.f32.mrf.mxu0
    %v3487 = vadd.f32 %v3084, %v3486
    %3488 = vmatmul.bf16.gmra.mxu0 %v3011
    %v3489 = vpop.f32.mrf.mxu0
    %v3490 = vadd.f32 %v3084, %v3489
    %v3491 = vpop.f32.mrf.mxu0
    %v3492 = vadd.f32 %v3084, %v3491
    %3493 = vmatmul.bf16.gmra.mxu0 %v3012
    %v3494 = vpop.f32.mrf.mxu0
    %v3495 = vadd.f32 %v3084, %v3494
    %v3496 = vpop.f32.mrf.mxu0
    %v3497 = vadd.f32 %v3084, %v3496
    %3498 = vdwg.mxu0
    %3499 = vmatpush.bf16.msra.mxu0 %v3324
    %3500 = vmatpush.bf16.msra.mxu0 %v3317
    %3501 = vmatpush.bf16.msra.mxu0 %v3310
    %3502 = vmatpush.bf16.msra.mxu0 %v3303
    %3503 = vmatpush.bf16.msra.mxu0 %v3296
    %3504 = vmatpush.bf16.msra.mxu0 %v3289
    %3505 = vmatpush.bf16.msra.mxu0 %v3282
    %3506 = vmatpush.bf16.msra.mxu0 %v3275
    %3507 = vmatmul.bf16.gmra.mxu0 %v3009
    %v3508 = vpop.f32.mrf.mxu0
    %v3509 = vadd.f32 %v3085, %v3508
    %v3510 = vpop.f32.mrf.mxu0
    %v3511 = vadd.f32 %v3085, %v3510
    %3512 = vmatmul.bf16.gmra.mxu0 %v3010
    %v3513 = vpop.f32.mrf.mxu0
    %v3514 = vadd.f32 %v3085, %v3513
    %v3515 = vpop.f32.mrf.mxu0
    %v3516 = vadd.f32 %v3085, %v3515
    %3517 = vmatmul.bf16.gmra.mxu0 %v3011
    %v3518 = vpop.f32.mrf.mxu0
    %v3519 = vadd.f32 %v3085, %v3518
    %v3520 = vpop.f32.mrf.mxu0
    %v3521 = vadd.f32 %v3085, %v3520
    %3522 = vmatmul.bf16.gmra.mxu0 %v3012
    %v3523 = vpop.f32.mrf.mxu0
    %v3524 = vadd.f32 %v3085, %v3523
    %v3525 = vpop.f32.mrf.mxu0
    %v3526 = vadd.f32 %v3085, %v3525
    %3527 = vdwg.mxu0
    %3528 = vmatpush.bf16.msra.mxu0 %v3325
    %3529 = vmatpush.bf16.msra.mxu0 %v3318
    %3530 = vmatpush.bf16.msra.mxu0 %v3311
    %3531 = vmatpush.bf16.msra.mxu0 %v3304
    %3532 = vmatpush.bf16.msra.mxu0 %v3297
    %3533 = vmatpush.bf16.msra.mxu0 %v3290
    %3534 = vmatpush.bf16.msra.mxu0 %v3283
    %3535 = vmatpush.bf16.msra.mxu0 %v3276
    %3536 = vmatmul.bf16.gmra.mxu0 %v3009
    %v3537 = vpop.f32.mrf.mxu0
    %v3538 = vadd.f32 %v3086, %v3537
    %v3539 = vpop.f32.mrf.mxu0
    %v3540 = vadd.f32 %v3086, %v3539
    %3541 = vmatmul.bf16.gmra.mxu0 %v3010
    %v3542 = vpop.f32.mrf.mxu0
    %v3543 = vadd.f32 %v3086, %v3542
    %v3544 = vpop.f32.mrf.mxu0
    %v3545 = vadd.f32 %v3086, %v3544
    %3546 = vmatmul.bf16.gmra.mxu0 %v3011
    %v3547 = vpop.f32.mrf.mxu0
    %v3548 = vadd.f32 %v3086, %v3547
    %v3549 = vpop.f32.mrf.mxu0
    %v3550 = vadd.f32 %v3086, %v3549
    %3551 = vmatmul.bf16.gmra.mxu0 %v3012
    %v3552 = vpop.f32.mrf.mxu0
    %v3553 = vadd.f32 %v3086, %v3552
    %v3554 = vpop.f32.mrf.mxu0
    %v3555 = vadd.f32 %v3086, %v3554
    %3556 = vdwg.mxu0
    %3557 = vmatpush.bf16.msra.mxu0 %v3326
    %3558 = vmatpush.bf16.msra.mxu0 %v3319
    %3559 = vmatpush.bf16.msra.mxu0 %v3312
    %3560 = vmatpush.bf16.msra.mxu0 %v3305
    %3561 = vmatpush.bf16.msra.mxu0 %v3298
    %3562 = vmatpush.bf16.msra.mxu0 %v3291
    %3563 = vmatpush.bf16.msra.mxu0 %v3284
    %3564 = vmatpush.bf16.msra.mxu0 %v3277
    %3565 = vmatmul.bf16.gmra.mxu0 %v3009
    %v3566 = vpop.f32.mrf.mxu0
    %v3567 = vadd.f32 %v3087, %v3566
    %v3568 = vpop.f32.mrf.mxu0
    %v3569 = vadd.f32 %v3087, %v3568
    %3570 = vmatmul.bf16.gmra.mxu0 %v3010
    %v3571 = vpop.f32.mrf.mxu0
    %v3572 = vadd.f32 %v3087, %v3571
    %v3573 = vpop.f32.mrf.mxu0
    %v3574 = vadd.f32 %v3087, %v3573
    %3575 = vmatmul.bf16.gmra.mxu0 %v3011
    %v3576 = vpop.f32.mrf.mxu0
    %v3577 = vadd.f32 %v3087, %v3576
    %v3578 = vpop.f32.mrf.mxu0
    %v3579 = vadd.f32 %v3087, %v3578
    %3580 = vmatmul.bf16.gmra.mxu0 %v3012
    %v3581 = vpop.f32.mrf.mxu0
    %v3582 = vadd.f32 %v3087, %v3581
    %v3583 = vpop.f32.mrf.mxu0
    %v3584 = vadd.f32 %v3087, %v3583
    %3585 = vdwg.mxu0
    %v3586 = vpack.c.bf16 %v3395, %v3393
    %v3587 = vpack.c.bf16 %v3400, %v3398
    %v3588 = vpack.c.bf16 %v3405, %v3403
    %v3589 = vpack.c.bf16 %v3410, %v3408
    %v3590 = vpack.c.bf16 %v3453, %v3451
    %v3591 = vpack.c.bf16 %v3458, %v3456
    %v3592 = vpack.c.bf16 %v3463, %v3461
    %v3593 = vpack.c.bf16 %v3468, %v3466
    %3594 = vmatpush.bf16.xpose.msra.mxu0 0
    %3595 = vmatpush.bf16.xpose.msra.mxu0 0
    %3596 = vmatpush.bf16.xpose.msra.mxu0 0
    %3597 = vmatpush.bf16.xpose.msra.mxu0 0
    %3598 = vmatpush.bf16.xpose.msra.mxu0 %v3593
    %3599 = vmatpush.bf16.xpose.msra.mxu0 %v3592
    %3600 = vmatpush.bf16.xpose.msra.mxu0 %v3591
    %3601 = vmatpush.bf16.xpose.msra.mxu0 %v3590
    %3602 = vmatmul.bf16.gmra.mxu0 %v3586
    %v3603 = vpop.f32.mrf.mxu0
    %v3604 = vadd.f32 %v118, %v3603
    %v3605 = vpop.f32.mrf.mxu0
    %v3606 = vadd.f32 %v119, %v3605
    %3607 = vmatmul.bf16.gmra.mxu0 %v3587
    %v3608 = vpop.f32.mrf.mxu0
    %v3609 = vadd.f32 %v120, %v3608
    %v3610 = vpop.f32.mrf.mxu0
    %v3611 = vadd.f32 %v121, %v3610
    %3612 = vmatmul.bf16.gmra.mxu0 %v3588
    %v3613 = vpop.f32.mrf.mxu0
    %v3614 = vadd.f32 %v122, %v3613
    %v3615 = vpop.f32.mrf.mxu0
    %v3616 = vadd.f32 %v123, %v3615
    %3617 = vmatmul.bf16.gmra.mxu0 %v3589
    %v3618 = vpop.f32.mrf.mxu0
    %v3619 = vadd.f32 %v124, %v3618
    %v3620 = vpop.f32.mrf.mxu0
    %v3621 = vadd.f32 %v125, %v3620
    %3622 = vdwg.mxu0
    %v3623 = vsel %vm869, %v3604, -inf
    %3624 = vmax.xlane.f32.xlu0 %v3623
    %v3625 = vpop.xlane.xlu0 %3624
    %v3626 = vsel %vm869, %v3606, -inf
    %3627 = vmax.xlane.f32.xlu0 %v3626
    %v3628 = vpop.xlane.xlu0 %3627
    %v3629 = vsel %vm869, %v3609, -inf
    %3630 = vmax.xlane.f32.xlu0 %v3629
    %v3631 = vpop.xlane.xlu0 %3630
    %v3632 = vsel %vm869, %v3611, -inf
    %3633 = vmax.xlane.f32.xlu0 %v3632
    %v3634 = vpop.xlane.xlu0 %3633
    %v3635 = vsel %vm869, %v3614, -inf
    %3636 = vmax.xlane.f32.xlu0 %v3635
    %v3637 = vpop.xlane.xlu0 %3636
    %v3638 = vsel %vm869, %v3616, -inf
    %3639 = vmax.xlane.f32.xlu0 %v3638
    %v3640 = vpop.xlane.xlu0 %3639
    %v3641 = vsel %vm869, %v3619, -inf
    %3642 = vmax.xlane.f32.xlu0 %v3641
    %v3643 = vpop.xlane.xlu0 %3642
    %v3644 = vsel %vm869, %v3621, -inf
    %3645 = vmax.xlane.f32.xlu0 %v3644
    %v3646 = vpop.xlane.xlu0 %3645
    %v3647 = vsub.f32 %v3604, %v3625
    %v3648 = vsub.f32 %v3606, %v3628
    %v3649 = vsub.f32 %v3609, %v3631
    %v3650 = vsub.f32 %v3611, %v3634
    %v3651 = vsub.f32 %v3614, %v3637
    %v3652 = vsub.f32 %v3616, %v3640
    %v3653 = vsub.f32 %v3619, %v3643
    %v3654 = vsub.f32 %v3621, %v3646
    %v3655 = vmul.f32 %v3647, 1.442695
    %v3656 = vpow.pop %v3655
    %v3657 = vmul.f32 %v3648, 1.442695
    %v3658 = vpow.pop %v3657
    %v3659 = vmul.f32 %v3649, 1.442695
    %v3660 = vpow.pop %v3659
    %v3661 = vmul.f32 %v3650, 1.442695
    %v3662 = vpow.pop %v3661
    %v3663 = vmul.f32 %v3651, 1.442695
    %v3664 = vpow.pop %v3663
    %v3665 = vmul.f32 %v3652, 1.442695
    %v3666 = vpow.pop %v3665
    %v3667 = vmul.f32 %v3653, 1.442695
    %v3668 = vpow.pop %v3667
    %v3669 = vmul.f32 %v3654, 1.442695
    %v3670 = vpow.pop %v3669
    %v3671 = vsel %vm869, %v3656, 0.0
    %3672 = vadd.xlane.f32.xlu0 %v3671
    %v3673 = vpop.xlane.xlu0 %3672
    %v3674 = vsel %vm869, %v3658, 0.0
    %3675 = vadd.xlane.f32.xlu0 %v3674
    %v3676 = vpop.xlane.xlu0 %3675
    %v3677 = vsel %vm869, %v3660, 0.0
    %3678 = vadd.xlane.f32.xlu0 %v3677
    %v3679 = vpop.xlane.xlu0 %3678
    %v3680 = vsel %vm869, %v3662, 0.0
    %3681 = vadd.xlane.f32.xlu0 %v3680
    %v3682 = vpop.xlane.xlu0 %3681
    %v3683 = vsel %vm869, %v3664, 0.0
    %3684 = vadd.xlane.f32.xlu0 %v3683
    %v3685 = vpop.xlane.xlu0 %3684
    %v3686 = vsel %vm869, %v3666, 0.0
    %3687 = vadd.xlane.f32.xlu0 %v3686
    %v3688 = vpop.xlane.xlu0 %3687
    %v3689 = vsel %vm869, %v3668, 0.0
    %3690 = vadd.xlane.f32.xlu0 %v3689
    %v3691 = vpop.xlane.xlu0 %3690
    %v3692 = vsel %vm869, %v3670, 0.0
    %3693 = vadd.xlane.f32.xlu0 %v3692
    %v3694 = vpop.xlane.xlu0 %3693
    %v3695 = vrcp.pop %v3673
    %v3696 = vrcp.pop %v3676
    %v3697 = vrcp.pop %v3679
    %v3698 = vrcp.pop %v3682
    %v3699 = vrcp.pop %v3685
    %v3700 = vrcp.pop %v3688
    %v3701 = vrcp.pop %v3691
    %v3702 = vrcp.pop %v3694
    %v3703 = vmul.f32 %v3656, %v3695
    %v3704 = vmul.f32 %v3658, %v3696
    %v3705 = vmul.f32 %v3660, %v3697
    %v3706 = vmul.f32 %v3662, %v3698
    %v3707 = vmul.f32 %v3664, %v3699
    %v3708 = vmul.f32 %v3666, %v3700
    %v3709 = vmul.f32 %v3668, %v3701
    %v3710 = vmul.f32 %v3670, %v3702
    %v3711 = vpack.c.bf16 %v3704, %v3703
    %v3712 = vpack.c.bf16 %v3706, %v3705
    %v3713 = vpack.c.bf16 %v3708, %v3707
    %v3714 = vpack.c.bf16 %v3710, %v3709
    %v3715 = vpack.c.bf16 %v3511, %v3509
    %v3716 = vpack.c.bf16 %v3516, %v3514
    %v3717 = vpack.c.bf16 %v3521, %v3519
    %v3718 = vpack.c.bf16 %v3526, %v3524
    %v3719 = vpack.c.bf16 %v3424, %v3422
    %v3720 = vpack.c.bf16 %v3429, %v3427
    %v3721 = vpack.c.bf16 %v3434, %v3432
    %v3722 = vpack.c.bf16 %v3439, %v3437
    %v3723 = vpack.c.bf16 %v3482, %v3480
    %v3724 = vpack.c.bf16 %v3487, %v3485
    %v3725 = vpack.c.bf16 %v3492, %v3490
    %v3726 = vpack.c.bf16 %v3497, %v3495
    %3727 = vmatpush.bf16.xpose.msra.mxu0 0
    %3728 = vmatpush.bf16.xpose.msra.mxu0 0
    %3729 = vmatpush.bf16.xpose.msra.mxu0 0
    %3730 = vmatpush.bf16.xpose.msra.mxu0 0
    %3731 = vmatpush.bf16.xpose.msra.mxu0 %v3726
    %3732 = vmatpush.bf16.xpose.msra.mxu0 %v3725
    %3733 = vmatpush.bf16.xpose.msra.mxu0 %v3724
    %3734 = vmatpush.bf16.xpose.msra.mxu0 %v3723
    %3735 = vmatmul.bf16.gmra.mxu0 %v3719
    %v3736 = vpop.f32.mrf.mxu0
    %v3737 = vadd.f32 %v118, %v3736
    %v3738 = vpop.f32.mrf.mxu0
    %v3739 = vadd.f32 %v119, %v3738
    %3740 = vmatmul.bf16.gmra.mxu0 %v3720
    %v3741 = vpop.f32.mrf.mxu0
    %v3742 = vadd.f32 %v120, %v3741
    %v3743 = vpop.f32.mrf.mxu0
    %v3744 = vadd.f32 %v121, %v3743
    %3745 = vmatmul.bf16.gmra.mxu0 %v3721
    %v3746 = vpop.f32.mrf.mxu0
    %v3747 = vadd.f32 %v122, %v3746
    %v3748 = vpop.f32.mrf.mxu0
    %v3749 = vadd.f32 %v123, %v3748
    %3750 = vmatmul.bf16.gmra.mxu0 %v3722
    %v3751 = vpop.f32.mrf.mxu0
    %v3752 = vadd.f32 %v124, %v3751
    %v3753 = vpop.f32.mrf.mxu0
    %v3754 = vadd.f32 %v125, %v3753
    %3755 = vdwg.mxu0
    %v3756 = vsel %vm869, %v3737, -inf
    %3757 = vmax.xlane.f32.xlu0 %v3756
    %v3758 = vpop.xlane.xlu0 %3757
    %v3759 = vsel %vm869, %v3739, -inf
    %3760 = vmax.xlane.f32.xlu0 %v3759
    %v3761 = vpop.xlane.xlu0 %3760
    %v3762 = vsel %vm869, %v3742, -inf
    %3763 = vmax.xlane.f32.xlu0 %v3762
    %v3764 = vpop.xlane.xlu0 %3763
    %v3765 = vsel %vm869, %v3744, -inf
    %3766 = vmax.xlane.f32.xlu0 %v3765
    %v3767 = vpop.xlane.xlu0 %3766
    %v3768 = vsel %vm869, %v3747, -inf
    %3769 = vmax.xlane.f32.xlu0 %v3768
    %v3770 = vpop.xlane.xlu0 %3769
    %v3771 = vsel %vm869, %v3749, -inf
    %3772 = vmax.xlane.f32.xlu0 %v3771
    %v3773 = vpop.xlane.xlu0 %3772
    %v3774 = vsel %vm869, %v3752, -inf
    %3775 = vmax.xlane.f32.xlu0 %v3774
    %v3776 = vpop.xlane.xlu0 %3775
    %v3777 = vsel %vm869, %v3754, -inf
    %3778 = vmax.xlane.f32.xlu0 %v3777
    %v3779 = vpop.xlane.xlu0 %3778
    %v3780 = vsub.f32 %v3737, %v3758
    %v3781 = vsub.f32 %v3739, %v3761
    %v3782 = vsub.f32 %v3742, %v3764
    %v3783 = vsub.f32 %v3744, %v3767
    %v3784 = vsub.f32 %v3747, %v3770
    %v3785 = vsub.f32 %v3749, %v3773
    %v3786 = vsub.f32 %v3752, %v3776
    %v3787 = vsub.f32 %v3754, %v3779
    %v3788 = vmul.f32 %v3780, 1.442695
    %v3789 = vpow.pop %v3788
    %v3790 = vmul.f32 %v3781, 1.442695
    %v3791 = vpow.pop %v3790
    %v3792 = vmul.f32 %v3782, 1.442695
    %v3793 = vpow.pop %v3792
    %v3794 = vmul.f32 %v3783, 1.442695
    %v3795 = vpow.pop %v3794
    %v3796 = vmul.f32 %v3784, 1.442695
    %v3797 = vpow.pop %v3796
    %v3798 = vmul.f32 %v3785, 1.442695
    %v3799 = vpow.pop %v3798
    %v3800 = vmul.f32 %v3786, 1.442695
    %v3801 = vpow.pop %v3800
    %v3802 = vmul.f32 %v3787, 1.442695
    %v3803 = vpow.pop %v3802
    %v3804 = vsel %vm869, %v3789, 0.0
    %3805 = vadd.xlane.f32.xlu0 %v3804
    %v3806 = vpop.xlane.xlu0 %3805
    %v3807 = vsel %vm869, %v3791, 0.0
    %3808 = vadd.xlane.f32.xlu0 %v3807
    %v3809 = vpop.xlane.xlu0 %3808
    %v3810 = vsel %vm869, %v3793, 0.0
    %3811 = vadd.xlane.f32.xlu0 %v3810
    %v3812 = vpop.xlane.xlu0 %3811
    %v3813 = vsel %vm869, %v3795, 0.0
    %3814 = vadd.xlane.f32.xlu0 %v3813
    %v3815 = vpop.xlane.xlu0 %3814
    %v3816 = vsel %vm869, %v3797, 0.0
    %3817 = vadd.xlane.f32.xlu0 %v3816
    %v3818 = vpop.xlane.xlu0 %3817
    %v3819 = vsel %vm869, %v3799, 0.0
    %3820 = vadd.xlane.f32.xlu0 %v3819
    %v3821 = vpop.xlane.xlu0 %3820
    %v3822 = vsel %vm869, %v3801, 0.0
    %3823 = vadd.xlane.f32.xlu0 %v3822
    %v3824 = vpop.xlane.xlu0 %3823
    %v3825 = vsel %vm869, %v3803, 0.0
    %3826 = vadd.xlane.f32.xlu0 %v3825
    %v3827 = vpop.xlane.xlu0 %3826
    %v3828 = vrcp.pop %v3806
    %v3829 = vrcp.pop %v3809
    %v3830 = vrcp.pop %v3812
    %v3831 = vrcp.pop %v3815
    %v3832 = vrcp.pop %v3818
    %v3833 = vrcp.pop %v3821
    %v3834 = vrcp.pop %v3824
    %v3835 = vrcp.pop %v3827
    %v3836 = vmul.f32 %v3789, %v3828
    %v3837 = vmul.f32 %v3791, %v3829
    %v3838 = vmul.f32 %v3793, %v3830
    %v3839 = vmul.f32 %v3795, %v3831
    %v3840 = vmul.f32 %v3797, %v3832
    %v3841 = vmul.f32 %v3799, %v3833
    %v3842 = vmul.f32 %v3801, %v3834
    %v3843 = vmul.f32 %v3803, %v3835
    %v3844 = vpack.c.bf16 %v3837, %v3836
    %v3845 = vpack.c.bf16 %v3839, %v3838
    %v3846 = vpack.c.bf16 %v3841, %v3840
    %v3847 = vpack.c.bf16 %v3843, %v3842
    %v3848 = vpack.c.bf16 %v3540, %v3538
    %v3849 = vpack.c.bf16 %v3545, %v3543
    %v3850 = vpack.c.bf16 %v3550, %v3548
    %v3851 = vpack.c.bf16 %v3555, %v3553
    %v3853 = vsel %vm869, %v3844, 0
    %v3856 = vsel %vm869, %v3845, 0
    %v3859 = vsel %vm869, %v3846, 0
    %v3862 = vsel %vm869, %v3847, 0
    %3864 = vmatpush.bf16.msra.mxu0 0
    %3865 = vmatpush.bf16.msra.mxu0 0
    %3866 = vmatpush.bf16.msra.mxu0 0
    %3867 = vmatpush.bf16.msra.mxu0 0
    %3868 = vmatpush.bf16.msra.mxu0 %v3851
    %3869 = vmatpush.bf16.msra.mxu0 %v3850
    %3870 = vmatpush.bf16.msra.mxu0 %v3849
    %3871 = vmatpush.bf16.msra.mxu0 %v3848
    %3872 = vmatmul.bf16.gmra.mxu0 %v3853
    %v3873 = vpop.f32.mrf.mxu0
    %v3874 = vadd.f32 0.0, %v3873
    %v3875 = vpop.f32.mrf.mxu0
    %v3876 = vadd.f32 0.0, %v3875
    %3877 = vmatmul.bf16.gmra.mxu0 %v3856
    %v3878 = vpop.f32.mrf.mxu0
    %v3879 = vadd.f32 0.0, %v3878
    %v3880 = vpop.f32.mrf.mxu0
    %v3881 = vadd.f32 0.0, %v3880
    %3882 = vmatmul.bf16.gmra.mxu0 %v3859
    %v3883 = vpop.f32.mrf.mxu0
    %v3884 = vadd.f32 0.0, %v3883
    %v3885 = vpop.f32.mrf.mxu0
    %v3886 = vadd.f32 0.0, %v3885
    %3887 = vmatmul.bf16.gmra.mxu0 %v3862
    %v3888 = vpop.f32.mrf.mxu0
    %v3889 = vadd.f32 0.0, %v3888
    %v3890 = vpop.f32.mrf.mxu0
    %v3891 = vadd.f32 0.0, %v3890
    %3892 = vdwg.mxu0
    %v3894 = vsel %vm869, %v3711, 0
    %v3897 = vsel %vm869, %v3712, 0
    %v3900 = vsel %vm869, %v3713, 0
    %v3903 = vsel %vm869, %v3714, 0
    %3905 = vmatpush.bf16.msra.mxu0 0
    %3906 = vmatpush.bf16.msra.mxu0 0
    %3907 = vmatpush.bf16.msra.mxu0 0
    %3908 = vmatpush.bf16.msra.mxu0 0
    %3909 = vmatpush.bf16.msra.mxu0 %v3718
    %3910 = vmatpush.bf16.msra.mxu0 %v3717
    %3911 = vmatpush.bf16.msra.mxu0 %v3716
    %3912 = vmatpush.bf16.msra.mxu0 %v3715
    %3913 = vmatmul.bf16.gmra.mxu0 %v3894
    %v3914 = vpop.f32.mrf.mxu0
    %v3915 = vadd.f32 %v3874, %v3914
    %v3916 = vpop.f32.mrf.mxu0
    %v3917 = vadd.f32 %v3876, %v3916
    %3918 = vmatmul.bf16.gmra.mxu0 %v3897
    %v3919 = vpop.f32.mrf.mxu0
    %v3920 = vadd.f32 %v3879, %v3919
    %v3921 = vpop.f32.mrf.mxu0
    %v3922 = vadd.f32 %v3881, %v3921
    %3923 = vmatmul.bf16.gmra.mxu0 %v3900
    %v3924 = vpop.f32.mrf.mxu0
    %v3925 = vadd.f32 %v3884, %v3924
    %v3926 = vpop.f32.mrf.mxu0
    %v3927 = vadd.f32 %v3886, %v3926
    %3928 = vmatmul.bf16.gmra.mxu0 %v3903
    %v3929 = vpop.f32.mrf.mxu0
    %v3930 = vadd.f32 %v3889, %v3929
    %v3931 = vpop.f32.mrf.mxu0
    %v3932 = vadd.f32 %v3891, %v3931
    %3933 = vdwg.mxu0
    %v3934 = vmul.f32 %v3915, 0.5
    %v3935 = vmul.f32 %v3917, 0.5
    %v3936 = vmul.f32 %v3920, 0.5
    %v3937 = vmul.f32 %v3922, 0.5
    %v3938 = vmul.f32 %v3925, 0.5
    %v3939 = vmul.f32 %v3927, 0.5
    %v3940 = vmul.f32 %v3930, 0.5
    %v3941 = vmul.f32 %v3932, 0.5
    %v3942 = vmul.f32 %v3934, %v127
    %v3943 = vmul.f32 %v3935, %v128
    %v3944 = vmul.f32 %v3936, %v129
    %v3945 = vmul.f32 %v3937, %v130
    %v3946 = vmul.f32 %v3938, %v131
    %v3947 = vmul.f32 %v3939, %v132
    %v3948 = vmul.f32 %v3940, %v133
    %v3949 = vmul.f32 %v3941, %v134
    %s3950 = scalar_lea.vmem [#allocation10], 8
    %v3951 = vld [vmem:[%s3950] sm:$0x1]
    %s3952 = scalar_lea.vmem [#allocation10], 9
    %v3953 = vld [vmem:[%s3952] sm:$0x1]
    %v3955 = vperm.slane %v3951, 0
    %v3957 = vmul.f32 %v3942, %v3955
    %v3958 = vmul.f32 %v3943, %v3955
    %v3959 = vmul.f32 %v3944, %v3955
    %v3960 = vmul.f32 %v3945, %v3955
    %v3961 = vmul.f32 %v3946, %v3955
    %v3962 = vmul.f32 %v3947, %v3955
    %v3963 = vmul.f32 %v3948, %v3955
    %v3964 = vmul.f32 %v3949, %v3955
    %v3966 = vperm.slane %v3953, 0
    %v3968 = vmul.f32 %v3567, %v3966
    %v3969 = vmul.f32 %v3569, %v3966
    %v3970 = vmul.f32 %v3572, %v3966
    %v3971 = vmul.f32 %v3574, %v3966
    %v3972 = vmul.f32 %v3577, %v3966
    %v3973 = vmul.f32 %v3579, %v3966
    %v3974 = vmul.f32 %v3582, %v3966
    %v3975 = vmul.f32 %v3584, %v3966
    %v3976 = vadd.f32 %v3957, %v3968
    %v3977 = vadd.f32 %v3958, %v3969
    %v3978 = vadd.f32 %v3959, %v3970
    %v3979 = vadd.f32 %v3960, %v3971
    %v3980 = vadd.f32 %v3961, %v3972
    %v3981 = vadd.f32 %v3962, %v3973
    %v3982 = vadd.f32 %v3963, %v3974
    %v3983 = vadd.f32 %v3964, %v3975
    %3984 = vadd.xlane.f32.xlu0 %v3976
    %v3985 = vpop.xlane.xlu0 %3984
    %3986 = vadd.xlane.f32.xlu0 %v3977
    %v3987 = vpop.xlane.xlu0 %3986
    %3988 = vadd.xlane.f32.xlu0 %v3978
    %v3989 = vpop.xlane.xlu0 %3988
    %3990 = vadd.xlane.f32.xlu0 %v3979
    %v3991 = vpop.xlane.xlu0 %3990
    %3992 = vadd.xlane.f32.xlu0 %v3980
    %v3993 = vpop.xlane.xlu0 %3992
    %3994 = vadd.xlane.f32.xlu0 %v3981
    %v3995 = vpop.xlane.xlu0 %3994
    %3996 = vadd.xlane.f32.xlu0 %v3982
    %v3997 = vpop.xlane.xlu0 %3996
    %3998 = vadd.xlane.f32.xlu0 %v3983
    %v3999 = vpop.xlane.xlu0 %3998
    %v4000 = vxor.u32 %v3985, 2147483648
    %v4001 = vxor.u32 %v3987, 2147483648
    %v4002 = vxor.u32 %v3989, 2147483648
    %v4003 = vxor.u32 %v3991, 2147483648
    %v4004 = vxor.u32 %v3993, 2147483648
    %v4005 = vxor.u32 %v3995, 2147483648
    %v4006 = vxor.u32 %v3997, 2147483648
    %v4007 = vxor.u32 %v3999, 2147483648
    %v4008 = vmul.f32 %v4000, 1.442695
    %v4009 = vpow.pop %v4008
    %v4010 = vmul.f32 %v4001, 1.442695
    %v4011 = vpow.pop %v4010
    %v4012 = vmul.f32 %v4002, 1.442695
    %v4013 = vpow.pop %v4012
    %v4014 = vmul.f32 %v4003, 1.442695
    %v4015 = vpow.pop %v4014
    %v4016 = vmul.f32 %v4004, 1.442695
    %v4017 = vpow.pop %v4016
    %v4018 = vmul.f32 %v4005, 1.442695
    %v4019 = vpow.pop %v4018
    %v4020 = vmul.f32 %v4006, 1.442695
    %v4021 = vpow.pop %v4020
    %v4022 = vmul.f32 %v4007, 1.442695
    %v4023 = vpow.pop %v4022
    %v4024 = vadd.f32 %v4009, 1.0
    %v4025 = vadd.f32 %v4011, 1.0
    %v4026 = vadd.f32 %v4013, 1.0
    %v4027 = vadd.f32 %v4015, 1.0
    %v4028 = vadd.f32 %v4017, 1.0
    %v4029 = vadd.f32 %v4019, 1.0
    %v4030 = vadd.f32 %v4021, 1.0
    %v4031 = vadd.f32 %v4023, 1.0
    %v4032 = vrcp.pop %v4024
    %v4033 = vmul.f32 %v4024, %v4032
    %v4034 = vsub.f32 1.0, %v4033
    %v4035 = vmul.f32 %v4032, %v4034
    %v4036 = vadd.f32 %v4032, %v4035
    %vm4037 = vweird.f32 %v4024
    %vm4038 = vweird.f32 %v4032
    %vm4039 = vmor %vm4037, %vm4038
    %v4040 = vsel %vm4039, %v4032, %v4036
    %v4041 = vand.u32 2147483647, %v4024
    %vm4042 = vcmp.eq.f32.partialorder %v4041, 8.507059e+37
    %v4043 = vand.u32 %v4024, 2147483648
    %v4044 = vor.u32 1.1754944e-38, %v4043
    %v4045 = vsel %vm4042, %v4044, %v4040
    %v4046 = vmul.f32 1.0, %v4045
    %v4047 = vrcp.pop %v4025
    %v4048 = vmul.f32 %v4025, %v4047
    %v4049 = vsub.f32 1.0, %v4048
    %v4050 = vmul.f32 %v4047, %v4049
    %v4051 = vadd.f32 %v4047, %v4050
    %vm4052 = vweird.f32 %v4025
    %vm4053 = vweird.f32 %v4047
    %vm4054 = vmor %vm4052, %vm4053
    %v4055 = vsel %vm4054, %v4047, %v4051
    %v4056 = vand.u32 2147483647, %v4025
    %vm4057 = vcmp.eq.f32.partialorder %v4056, 8.507059e+37
    %v4058 = vand.u32 %v4025, 2147483648
    %v4059 = vor.u32 1.1754944e-38, %v4058
    %v4060 = vsel %vm4057, %v4059, %v4055
    %v4061 = vmul.f32 1.0, %v4060
    %v4062 = vrcp.pop %v4026
    %v4063 = vmul.f32 %v4026, %v4062
    %v4064 = vsub.f32 1.0, %v4063
    %v4065 = vmul.f32 %v4062, %v4064
    %v4066 = vadd.f32 %v4062, %v4065
    %vm4067 = vweird.f32 %v4026
    %vm4068 = vweird.f32 %v4062
    %vm4069 = vmor %vm4067, %vm4068
    %v4070 = vsel %vm4069, %v4062, %v4066
    %v4071 = vand.u32 2147483647, %v4026
    %vm4072 = vcmp.eq.f32.partialorder %v4071, 8.507059e+37
    %v4073 = vand.u32 %v4026, 2147483648
    %v4074 = vor.u32 1.1754944e-38, %v4073
    %v4075 = vsel %vm4072, %v4074, %v4070
    %v4076 = vmul.f32 1.0, %v4075
    %v4077 = vrcp.pop %v4027
    %v4078 = vmul.f32 %v4027, %v4077
    %v4079 = vsub.f32 1.0, %v4078
    %v4080 = vmul.f32 %v4077, %v4079
    %v4081 = vadd.f32 %v4077, %v4080
    %vm4082 = vweird.f32 %v4027
    %vm4083 = vweird.f32 %v4077
    %vm4084 = vmor %vm4082, %vm4083
    %v4085 = vsel %vm4084, %v4077, %v4081
    %v4086 = vand.u32 2147483647, %v4027
    %vm4087 = vcmp.eq.f32.partialorder %v4086, 8.507059e+37
    %v4088 = vand.u32 %v4027, 2147483648
    %v4089 = vor.u32 1.1754944e-38, %v4088
    %v4090 = vsel %vm4087, %v4089, %v4085
    %v4091 = vmul.f32 1.0, %v4090
    %v4092 = vrcp.pop %v4028
    %v4093 = vmul.f32 %v4028, %v4092
    %v4094 = vsub.f32 1.0, %v4093
    %v4095 = vmul.f32 %v4092, %v4094
    %v4096 = vadd.f32 %v4092, %v4095
    %vm4097 = vweird.f32 %v4028
    %vm4098 = vweird.f32 %v4092
    %vm4099 = vmor %vm4097, %vm4098
    %v4100 = vsel %vm4099, %v4092, %v4096
    %v4101 = vand.u32 2147483647, %v4028
    %vm4102 = vcmp.eq.f32.partialorder %v4101, 8.507059e+37
    %v4103 = vand.u32 %v4028, 2147483648
    %v4104 = vor.u32 1.1754944e-38, %v4103
    %v4105 = vsel %vm4102, %v4104, %v4100
    %v4106 = vmul.f32 1.0, %v4105
    %v4107 = vrcp.pop %v4029
    %v4108 = vmul.f32 %v4029, %v4107
    %v4109 = vsub.f32 1.0, %v4108
    %v4110 = vmul.f32 %v4107, %v4109
    %v4111 = vadd.f32 %v4107, %v4110
    %vm4112 = vweird.f32 %v4029
    %vm4113 = vweird.f32 %v4107
    %vm4114 = vmor %vm4112, %vm4113
    %v4115 = vsel %vm4114, %v4107, %v4111
    %v4116 = vand.u32 2147483647, %v4029
    %vm4117 = vcmp.eq.f32.partialorder %v4116, 8.507059e+37
    %v4118 = vand.u32 %v4029, 2147483648
    %v4119 = vor.u32 1.1754944e-38, %v4118
    %v4120 = vsel %vm4117, %v4119, %v4115
    %v4121 = vmul.f32 1.0, %v4120
    %v4122 = vrcp.pop %v4030
    %v4123 = vmul.f32 %v4030, %v4122
    %v4124 = vsub.f32 1.0, %v4123
    %v4125 = vmul.f32 %v4122, %v4124
    %v4126 = vadd.f32 %v4122, %v4125
    %vm4127 = vweird.f32 %v4030
    %vm4128 = vweird.f32 %v4122
    %vm4129 = vmor %vm4127, %vm4128
    %v4130 = vsel %vm4129, %v4122, %v4126
    %v4131 = vand.u32 2147483647, %v4030
    %vm4132 = vcmp.eq.f32.partialorder %v4131, 8.507059e+37
    %v4133 = vand.u32 %v4030, 2147483648
    %v4134 = vor.u32 1.1754944e-38, %v4133
    %v4135 = vsel %vm4132, %v4134, %v4130
    %v4136 = vmul.f32 1.0, %v4135
    %v4137 = vrcp.pop %v4031
    %v4138 = vmul.f32 %v4031, %v4137
    %v4139 = vsub.f32 1.0, %v4138
    %v4140 = vmul.f32 %v4137, %v4139
    %v4141 = vadd.f32 %v4137, %v4140
    %vm4142 = vweird.f32 %v4031
    %vm4143 = vweird.f32 %v4137
    %vm4144 = vmor %vm4142, %vm4143
    %v4145 = vsel %vm4144, %v4137, %v4141
    %v4146 = vand.u32 2147483647, %v4031
    %vm4147 = vcmp.eq.f32.partialorder %v4146, 8.507059e+37
    %v4148 = vand.u32 %v4031, 2147483648
    %v4149 = vor.u32 1.1754944e-38, %v4148
    %v4150 = vsel %vm4147, %v4149, %v4145
    %v4151 = vmul.f32 1.0, %v4150
    %v4152 = vmul.f32 %v4046, %v3567
    %v4153 = vmul.f32 %v4061, %v3569
    %v4154 = vmul.f32 %v4076, %v3572
    %v4155 = vmul.f32 %v4091, %v3574
    %v4156 = vmul.f32 %v4106, %v3577
    %v4157 = vmul.f32 %v4121, %v3579
    %v4158 = vmul.f32 %v4136, %v3582
    %v4159 = vmul.f32 %v4151, %v3584
    %v4160 = vsub.f32 1.0, %v4046
    %v4161 = vsub.f32 1.0, %v4061
    %v4162 = vsub.f32 1.0, %v4076
    %v4163 = vsub.f32 1.0, %v4091
    %v4164 = vsub.f32 1.0, %v4106
    %v4165 = vsub.f32 1.0, %v4121
    %v4166 = vsub.f32 1.0, %v4136
    %v4167 = vsub.f32 1.0, %v4151
    %v4168 = vmul.f32 %v4160, %v3942
    %v4169 = vmul.f32 %v4161, %v3943
    %v4170 = vmul.f32 %v4162, %v3944
    %v4171 = vmul.f32 %v4163, %v3945
    %v4172 = vmul.f32 %v4164, %v3946
    %v4173 = vmul.f32 %v4165, %v3947
    %v4174 = vmul.f32 %v4166, %v3948
    %v4175 = vmul.f32 %v4167, %v3949
    %v4176 = vadd.f32 %v4152, %v4168
    %v4177 = vadd.f32 %v4153, %v4169
    %v4178 = vadd.f32 %v4154, %v4170
    %v4179 = vadd.f32 %v4155, %v4171
    %v4180 = vadd.f32 %v4156, %v4172
    %v4181 = vadd.f32 %v4157, %v4173
    %v4182 = vadd.f32 %v4158, %v4174
    %v4183 = vadd.f32 %v4159, %v4175
    %v4184 = vpack.c.bf16 %v4176, %v4176
    %v4185 = vpack.c.bf16 %v4177, %v4177
    %v4186 = vpack.c.bf16 %v4178, %v4178
    %v4187 = vpack.c.bf16 %v4179, %v4179
    %v4188 = vpack.c.bf16 %v4180, %v4180
    %v4189 = vpack.c.bf16 %v4181, %v4181
    %v4190 = vpack.c.bf16 %v4182, %v4182
    %v4191 = vpack.c.bf16 %v4183, %v4183
    %4192 = vst [vmem:[%s6] sm:$0xf] %v4184
    %4193 = vst [vmem:[%s6 + $0x4] sm:$0xf] %v4185
    %4194 = vst [vmem:[%s6 + $0x8] sm:$0xf] %v4186
    %4195 = vst [vmem:[%s6 + $0xc] sm:$0xf] %v4187
    %4196 = vst [vmem:[%s6 + $0x10] sm:$0xf] %v4188
    %4197 = vst [vmem:[%s6 + $0x14] sm:$0xf] %v4189
    %4198 = vst [vmem:[%s6 + $0x18] sm:$0xf] %v4190
    %4199 = vst [vmem:[%s6 + $0x1c] sm:$0xf] %v4191
    // Predicated region
    $region50: #{unimp_forward.1} parent=1 // pred_check
      _
    $region51: #{unimp_forward.1} parent=1 // pred_check_branch
      %4201 = sbr.rel (0) target = $region53
    $region52: #{unimp_forward.1} parent=1 // pred_region
      _
    $region53: #{unimp_forward.1} parent=1 // pred_fallthru
      _
    // Predicated region
    $region54: #{unimp_forward.1} parent=1 // pred_check
      _
    $region55: #{unimp_forward.1} parent=1 // pred_check_branch
      %4203 = sbr.rel (0) target = $region57
    $region56: #{unimp_forward.1} parent=1 // pred_region
      _
    $region57: #{unimp_forward.1} parent=1 // pred_fallthru
      _
    %4204 = vsyncpa [#allocation3], 1
    %4205 = vsyncpa [#allocation5], 1
    %4206 = vsyncpa [#allocation8], 1
    %4207 = vsyncpa [#allocation11], 1

</llo_original>
